<compile_context>
chip_gen: v6e
topology: v6e:2x2x1
jax: 0.10.0
libtpu: 0.0.40
codegen_flags: <defaults>
</compile_context>

<pallas_src>
import functools
import math

import jax
import jax.numpy as jnp
from jax import lax
from jax.experimental import pallas as pl
from jax.experimental.pallas import tpu as pltpu


@functools.lru_cache(maxsize=None)
def _vmem_limit_bytes(default=64 * 1024 * 1024):
    """Generation-aware scoped-VMEM limit: ~85% of physical, with headroom."""
    try:
        info = pltpu.get_tpu_info()
        cap = int(getattr(info, "vmem_capacity_bytes", 0))
        if cap > 0:
            return min(cap - 8 * 1024 * 1024, int(cap * 0.85))
    except Exception:
        pass
    return default


def _pick_tile(dim, target, align):
    """Largest multiple of `align` that divides `dim` and is <= target.

    Falls back to the full dimension only when the dimension itself is small
    (<= target); otherwise raises so a ragged axis never silently explodes the
    per-step VMEM footprint (most dangerous on v7x's 64 MiB VMEM).
    """
    if dim % align == 0:
        t = min(target, dim)
        t = (t // align) * align
        while t >= align:
            if dim % t == 0:
                return t
            t -= align
    if dim <= target:
        return dim
    raise ValueError(
        f"dim {dim} has no {align}-aligned tile <= {target}; pad the input")


# ---------------------------------------------------------------------------
# Tiled linear (matmul + bias) kernel: grid=(M/tm, N/tn, K/tk), f32 accumulator
# ---------------------------------------------------------------------------
def _linear_kernel(x_ref, w_ref, b_ref, o_ref, acc_ref):
    @pl.when(pl.program_id(2) == 0)
    def _init():
        acc_ref[...] = jnp.zeros_like(acc_ref)

    # Native (bf16) operands straight into the MXU; f32 accumulation.
    acc_ref[...] += jnp.dot(x_ref[...], w_ref[...],
                            preferred_element_type=jnp.float32)

    @pl.when(pl.program_id(2) == pl.num_programs(2) - 1)
    def _finalize():
        o_ref[...] = (acc_ref[...] + b_ref[...].astype(jnp.float32)
                      ).astype(o_ref.dtype)


def linear(x, w, b, *, out_dtype=None, tm=512, tn=768, tk=768):
    """x: (M, K), w: (K, N), b: (N,) f32 -> (M, N), tiled + pipelined."""
    m, kdim = x.shape
    n = w.shape[1]
    out_dtype = out_dtype or x.dtype
    tm = _pick_tile(m, tm, 16)      # 16: bf16 sublane packing
    tn = _pick_tile(n, tn, 128)
    tk = _pick_tile(kdim, tk, 128)
    grid = (m // tm, n // tn, kdim // tk)
    return pl.pallas_call(
        _linear_kernel,
        grid=grid,
        in_specs=[
            pl.BlockSpec((tm, tk), lambda i, j, k: (i, k)),
            pl.BlockSpec((tk, tn), lambda i, j, k: (k, j)),
            pl.BlockSpec((1, tn), lambda i, j, k: (0, j)),
        ],
        out_specs=pl.BlockSpec((tm, tn), lambda i, j, k: (i, j)),
        out_shape=jax.ShapeDtypeStruct((m, n), out_dtype),
        scratch_shapes=[pltpu.VMEM((tm, tn), jnp.float32)],
        compiler_params=pltpu.CompilerParams(
            dimension_semantics=("parallel", "parallel", "arbitrary"),
            vmem_limit_bytes=_vmem_limit_bytes()),
    )(x, w, b.astype(jnp.float32).reshape(1, n))


# ---------------------------------------------------------------------------
# Flash-style multi-head attention kernel
#   qkv layout: (B, S, 3D) with [Q | K | V] packed lane-dense along the last
#   axis; grid = (B, S/tq, S/tkv); online softmax with f32 m/l/acc scratch.
#   The 1/sqrt(dh) scale is pre-folded into the Q projection weights.
# ---------------------------------------------------------------------------
def _flash_attn_kernel(q_ref, k_ref, v_ref, bias_ref, o_ref,
                       m_sc, l_sc, acc_sc, *, num_heads, head_dim):
    ki = pl.program_id(2)

    @pl.when(ki == 0)
    def _init():
        m_sc[...] = jnp.full_like(m_sc, -jnp.inf)
        l_sc[...] = jnp.zeros_like(l_sc)
        acc_sc[...] = jnp.zeros_like(acc_sc)

    bias = bias_ref[0].astype(jnp.float32)          # (1, tkv) additive key bias

    # Static unroll over heads: plain 2-D bf16 MXU matmuls per head, no
    # transposes (K contracted on its head_dim axis).
    # TODO(synk): with head_dim=64 odd heads start at lane offset 64; if the
    # bundle dump shows per-head relayout copies, process head pairs instead.
    for h in range(num_heads):
        sl = slice(h * head_dim, (h + 1) * head_dim)
        q = q_ref[0, :, sl]                          # (tq,  dh) bf16, pre-scaled
        k = k_ref[0, :, sl]                          # (tkv, dh) bf16
        v = v_ref[0, :, sl]                          # (tkv, dh) bf16

        s = lax.dot_general(q, k, (((1,), (1,)), ((), ())),
                            preferred_element_type=jnp.float32)   # (tq, tkv)
        # The -1e30 mask bias is only safe with f32 score math.
        assert s.dtype == jnp.float32
        s = s + bias

        m_prev = m_sc[h]                                           # (tq, 1)
        m_new = jnp.maximum(m_prev, jnp.max(s, axis=-1, keepdims=True))
        alpha = jnp.exp(m_prev - m_new)
        p = jnp.exp(s - m_new)                                     # (tq, tkv) f32
        l_sc[h] = alpha * l_sc[h] + jnp.sum(p, axis=-1, keepdims=True)
        acc_sc[h] = alpha * acc_sc[h] + jnp.dot(
            p.astype(v.dtype), v, preferred_element_type=jnp.float32)
        m_sc[h] = m_new

    @pl.when(ki == pl.num_programs(2) - 1)
    def _finalize():
        # Write every head into the dense (tq, D) output tile at its column
        # offset -> one lane-dense HBM writeback slab per q-tile.
        for h in range(num_heads):
            inv_l = pl.reciprocal(l_sc[h], approx=False)   # once per q-tile
            o_ref[0, :, h * head_dim:(h + 1) * head_dim] = (
                acc_sc[h] * inv_l).astype(o_ref.dtype)


def mha(qkv, bias, *, num_heads, tq=256, tkv=256):
    """qkv: (B, S, 3D) packed [Q|K|V]; bias: (B, 1, S) f32 additive key mask.
    Returns (B, S, D).  A row with all keys masked yields inf/NaN (same as the
    reference softmax)."""
    b, s, d3 = qkv.shape
    d = d3 // 3
    assert d % num_heads == 0
    dh = d // num_heads
    assert d % 128 == 0, (
        "embedding dim must be a multiple of 128 for the lane-dense fused-QKV "
        "layout")  # TODO(synk): pad D otherwise.
    tq = _pick_tile(s, tq, 16)
    tkv = _pick_tile(s, tkv, 128)
    grid = (b, s // tq, s // tkv)

    q_spec = pl.BlockSpec((1, tq, d), lambda bi, qi, ki: (bi, qi, 0))
    k_spec = pl.BlockSpec((1, tkv, d), lambda bi, qi, ki: (bi, ki, 1))
    v_spec = pl.BlockSpec((1, tkv, d), lambda bi, qi, ki: (bi, ki, 2))
    bias_spec = pl.BlockSpec((1, 1, tkv), lambda bi, qi, ki: (bi, 0, ki))
    o_spec = pl.BlockSpec((1, tq, d), lambda bi, qi, ki: (bi, qi, 0))

    return pl.pallas_call(
        functools.partial(_flash_attn_kernel,
                          num_heads=num_heads, head_dim=dh),
        grid=grid,
        in_specs=[q_spec, k_spec, v_spec, bias_spec],
        out_specs=o_spec,
        out_shape=jax.ShapeDtypeStruct((b, s, d), qkv.dtype),
        scratch_shapes=[pltpu.VMEM((num_heads, tq, 1), jnp.float32),
                        pltpu.VMEM((num_heads, tq, 1), jnp.float32),
                        pltpu.VMEM((num_heads, tq, dh), jnp.float32)],
        compiler_params=pltpu.CompilerParams(
            dimension_semantics=("parallel", "parallel", "arbitrary"),
            vmem_limit_bytes=_vmem_limit_bytes()),
    )(qkv, qkv, qkv, bias)


# ---------------------------------------------------------------------------
# RobertaAttention forward (fused q/k/v proj -> SDPA -> out proj), eval mode
# ---------------------------------------------------------------------------
def init_params(key, embed_dim, num_heads, dtype=jnp.float32):
    assert embed_dim % num_heads == 0
    ks = jax.random.split(key, 8)
    scale = 0.02

    def nrm(k, shape):
        return (scale * jax.random.normal(k, shape, jnp.float32)).astype(dtype)

    wq, wk, wv, wo = (nrm(ks[i], (embed_dim, embed_dim)) for i in range(4))
    bq, bk, bv, bo = (nrm(ks[4 + i], (embed_dim,)) for i in range(4))
    return {
        "num_heads": num_heads,
        "w_qkv": jnp.concatenate([wq, wk, wv], axis=1),   # (D, 3D)
        "b_qkv": jnp.concatenate([bq, bk, bv]),           # (3D,)
        "w_out": wo,
        "b_out": bo,
    }


def roberta_attention(params, x, attention_mask=None, *,
                      compute_dtype=jnp.bfloat16):
    """x: (B, S, D).  attention_mask: None, bool (B,S) keep-mask, or float
    (B,S) additive key bias.  Eval mode (dropout = identity)."""
    b, s, d = x.shape
    h = params["num_heads"]
    dh = d // h
    out_dtype = x.dtype

    # Fold 1/sqrt(dh) into the Q columns of the fused QKV weights (f32 math,
    # then cast to bf16) so the attention kernel does no score/Q scaling.
    # (In production this fold + cast would happen once at weight-load time.)
    scale = 1.0 / math.sqrt(dh)
    col_scale = jnp.concatenate(
        [jnp.full((d,), scale, jnp.float32), jnp.ones((2 * d,), jnp.float32)])
    w_qkv = (params["w_qkv"].astype(jnp.float32) * col_scale[None, :]
             ).astype(compute_dtype)
    b_qkv = params["b_qkv"].astype(jnp.float32) * col_scale
    w_out = params["w_out"].astype(compute_dtype)
    b_out = params["b_out"].astype(jnp.float32)

    xb = x.astype(compute_dtype).reshape(b * s, d)

    # Fused Q/K/V projection: one tiled matmul, x streamed from HBM once.
    qkv = linear(xb, w_qkv, b_qkv, out_dtype=compute_dtype)   # (B*S, 3D) bf16
    qkv = qkv.reshape(b, s, 3 * d)                            # free reshape

    if attention_mask is None:
        bias = jnp.zeros((b, 1, s), jnp.float32)
    elif attention_mask.dtype == jnp.bool_:
        bias = jnp.where(attention_mask, 0.0, -1e30).astype(jnp.float32)
        bias = bias.reshape(b, 1, s)
    else:
        bias = attention_mask.astype(jnp.float32).reshape(b, 1, s)
    # TODO(synk): only per-key (B,S) masks supported; general (B,H,S,S) attn_mask
    # broadcasting of F.scaled_dot_product_attention is not implemented.
    # TODO(synk): attention_dropout_p applies only in training; eval = identity.

    ctx = mha(qkv, bias, num_heads=h)                          # (B, S, D) bf16
    # TODO(synk): on v5e the out-projection could be fused into the attention
    # finalize to save one HBM round-trip of ctx.
    out = linear(ctx.reshape(b * s, d), w_out, b_out, out_dtype=out_dtype)
    return out.reshape(b, s, d)


# ---------------------------------------------------------------------------
# Pure-JAX f32 reference (same params) for a numerical sanity check
# ---------------------------------------------------------------------------
def reference_attention(params, x, attention_mask=None):
    b, s, d = x.shape
    h = params["num_heads"]
    dh = d // h
    wq, wk, wv = jnp.split(params["w_qkv"], 3, axis=1)
    bq, bk, bv = jnp.split(params["b_qkv"], 3)
    q = (x @ wq + bq).reshape(b, s, h, dh).transpose(0, 2, 1, 3)
    k = (x @ wk + bk).reshape(b, s, h, dh).transpose(0, 2, 1, 3)
    v = (x @ wv + bv).reshape(b, s, h, dh).transpose(0, 2, 1, 3)
    scores = jnp.einsum("bhqd,bhkd->bhqk", q, k) / math.sqrt(dh)
    if attention_mask is not None:
        if attention_mask.dtype == jnp.bool_:
            add = jnp.where(attention_mask, 0.0, -1e30)
        else:
            add = attention_mask.astype(jnp.float32)
        scores = scores + add[:, None, None, :]
    p = jax.nn.softmax(scores, axis=-1)
    ctx = jnp.einsum("bhqk,bhkd->bhqd", p, v).transpose(0, 2, 1, 3).reshape(b, s, d)
    return ctx @ params["w_out"] + params["b_out"]


if __name__ == "__main__":
    # Small but TPU-friendly shapes: D multiple of 128 (lane-dense fused QKV),
    # S large enough to exercise multiple q-tiles and KV steps of the online
    # softmax (tq = tkv = 256 -> grid (2, 2, 2)).
    B, S, D, H = 2, 512, 128, 4

    root = jax.random.PRNGKey(0)
    k_params, k_x = jax.random.split(root)
    params = init_params(k_params, D, H)
    x = jax.random.normal(k_x, (B, S, D), jnp.float32)
    # second sequence: last four key positions masked out
    attention_mask = jnp.ones((B, S), dtype=bool).at[1, S - 4:].set(False)

    out = roberta_attention(params, x, attention_mask)
    jax.block_until_ready(out)

    assert out.shape == (B, S, D)
    assert out.dtype == x.dtype
    assert bool(jnp.all(jnp.isfinite(out)))

    ref = reference_attention(params, x, attention_mask)
    max_err = float(jnp.max(jnp.abs(out - ref)))
    assert max_err < 5e-3, f"max abs err {max_err}"

    print("KERNEL_OK")
</pallas_src>

<mosaic_0001>
module attributes {stable_mosaic.version = 11 : i64} {
  func.func @_linear_kernel(%arg0: i32, %arg1: i32, %arg2: i32, %arg3: memref<512x128xbf16, #tpu.memory_space<vmem>>, %arg4: memref<128x384xbf16, #tpu.memory_space<vmem>>, %arg5: memref<1x384xf32, #tpu.memory_space<vmem>>, %arg6: memref<512x384xbf16, #tpu.memory_space<vmem>>, %arg7: memref<512x384xf32, #tpu.memory_space<vmem>>) attributes {dimension_semantics = [#tpu.dimension_semantics<parallel>, #tpu.dimension_semantics<parallel>, #tpu.dimension_semantics<arbitrary>], iteration_bounds = array<i64: 2, 1, 1>, scalar_prefetch = 0 : i64, scratch_operands = 1 : i64, tpu.core_type = #tpu.core_type<tc>, window_params = [{transform_indices = @transform_0, window_bounds = array<i64: 512, 128>}, {transform_indices = @transform_1, window_bounds = array<i64: 128, 384>}, {transform_indices = @transform_2, window_bounds = array<i64: 1, 384>}, {transform_indices = @transform_3, window_bounds = array<i64: 512, 384>}]} {
    %c0_i32 = arith.constant 0 : i32
    %0 = arith.cmpi eq, %arg2, %c0_i32 : i32
    %1 = arith.extui %0 : i1 to i32
    %c0_i32_0 = arith.constant 0 : i32
    %2 = arith.cmpi ne, %1, %c0_i32_0 : i32
    scf.if %2 {
      %cst_10 = arith.constant 0.000000e+00 : f32
      %12 = vector.broadcast %cst_10 : f32 to vector<512x384xf32>
      %c0_11 = arith.constant 0 : index
      %c0_12 = arith.constant 0 : index
      %13 = vector.load %arg7[%c0_11, %c0_12] : memref<512x384xf32, #tpu.memory_space<vmem>>, vector<512x384xf32>
      tpu.vector_store %arg7[%c0_11, %c0_12], %12 {strides = array<i32>} : memref<512x384xf32, #tpu.memory_space<vmem>>, vector<512x384xf32>,
    } else {
    }
    %c0 = arith.constant 0 : index
    %c0_1 = arith.constant 0 : index
    %3 = vector.load %arg7[%c0, %c0_1] : memref<512x384xf32, #tpu.memory_space<vmem>>, vector<512x384xf32>
    %c0_2 = arith.constant 0 : index
    %c0_3 = arith.constant 0 : index
    %4 = vector.load %arg3[%c0_2, %c0_3] : memref<512x128xbf16, #tpu.memory_space<vmem>>, vector<512x128xbf16>
    %c0_4 = arith.constant 0 : index
    %c0_5 = arith.constant 0 : index
    %5 = vector.load %arg4[%c0_4, %c0_5] : memref<128x384xbf16, #tpu.memory_space<vmem>>, vector<128x384xbf16>
    %cst = arith.constant dense<0.000000e+00> : vector<512x384xf32>
    %6 = tpu.matmul %4, %5, %cst {dimension_numbers = #tpu.dot_dimension_numbers<[1], [0], [0], [1], [0, 0, 1, 1], [], []>} : vector<512x128xbf16>, vector<128x384xbf16>, vector<512x384xf32> -> vector<512x384xf32>
    %7 = arith.addf %3, %6 : vector<512x384xf32>
    %c0_6 = arith.constant 0 : index
    %c0_7 = arith.constant 0 : index
    %8 = vector.load %arg7[%c0_6, %c0_7] : memref<512x384xf32, #tpu.memory_space<vmem>>, vector<512x384xf32>
    tpu.vector_store %arg7[%c0_6, %c0_7], %7 {strides = array<i32>} : memref<512x384xf32, #tpu.memory_space<vmem>>, vector<512x384xf32>,
    %c0_i32_8 = arith.constant 0 : i32
    %9 = arith.cmpi eq, %arg2, %c0_i32_8 : i32
    %10 = arith.extui %9 : i1 to i32
    %c0_i32_9 = arith.constant 0 : i32
    %11 = arith.cmpi ne, %10, %c0_i32_9 : i32
    scf.if %11 {
      %c0_10 = arith.constant 0 : index
      %c0_11 = arith.constant 0 : index
      %12 = vector.load %arg7[%c0_10, %c0_11] : memref<512x384xf32, #tpu.memory_space<vmem>>, vector<512x384xf32>
      %c0_12 = arith.constant 0 : index
      %c0_13 = arith.constant 0 : index
      %13 = vector.load %arg5[%c0_12, %c0_13] : memref<1x384xf32, #tpu.memory_space<vmem>>, vector<1x384xf32>
      %14 = vector.broadcast %13 : vector<1x384xf32> to vector<512x384xf32>
      %15 = arith.addf %12, %14 : vector<512x384xf32>
      %16 = arith.truncf %15 : vector<512x384xf32> to vector<512x384xbf16>
      %c0_14 = arith.constant 0 : index
      %c0_15 = arith.constant 0 : index
      %17 = vector.load %arg6[%c0_14, %c0_15] : memref<512x384xbf16, #tpu.memory_space<vmem>>, vector<512x384xbf16>
      tpu.vector_store %arg6[%c0_14, %c0_15], %16 {strides = array<i32>} : memref<512x384xbf16, #tpu.memory_space<vmem>>, vector<512x384xbf16>,
    } else {
    }
    return
  }
  func.func @transform_0(%arg0: i32, %arg1: i32, %arg2: i32) -> (i32, i32) {
    %c0_i32 = arith.constant 0 : i32
    return %arg0, %arg2 : i32, i32
  }
  func.func @transform_1(%arg0: i32, %arg1: i32, %arg2: i32) -> (i32, i32) {
    %c0_i32 = arith.constant 0 : i32
    return %arg2, %arg1 : i32, i32
  }
  func.func @transform_2(%arg0: i32, %arg1: i32, %arg2: i32) -> (i32, i32) {
    %c0_i32 = arith.constant 0 : i32
    %c0_i32_0 = arith.constant 0 : i32
    return %c0_i32, %arg1 : i32, i32
  }
  func.func @transform_3(%arg0: i32, %arg1: i32, %arg2: i32) -> (i32, i32) {
    %c0_i32 = arith.constant 0 : i32
    return %arg0, %arg1 : i32, i32
  }
}

</mosaic_0001>

<llo_original>
// kernel: tpu_custom_call.1
$region0: #{tpu_custom_call.1}
  #allocation0 [shape = 'u32[]', space=smem, size = 0x4, offset = 0x4, fixed_abs, tag = 'smem constant byte address 0x4 - core index']
  #allocation1 [shape = 'u32[144,128]{1,0:T(1,128)}', space=vmem, size = 0x12000, scoped, tag = 'internal scratch']
  #allocation2 [shape = 'f32[512,384]{1,0:T(8,128)}', space=vmem, size = 0xc0000, scoped, tag = 'scratch operand']
  %s0 = inlined_call_operand.hbm [shape: bf16[1024,128], index: 0, kind: input, shape index: {}]
  %s1 = inlined_call_operand.hbm [shape: bf16[128,384], index: 1, kind: input, shape index: {}]
  %s2 = inlined_call_operand.vmem [shape: f32[1,384], index: 2, kind: input, shape index: {}]
  %s3 = inlined_call_operand.hbm [shape: bf16[1024,384], index: 3, kind: output, shape index: {}]
  %s4 = sld [smem:[#allocation0]]
  $region61: #{tpu_custom_call.1} parent=0
    _
  %s6 = ssub.s32 1, %s4
  %s7 = scalar_select 0, %s6, %s4
  $region1: #{tpu_custom_call.1} parent=0
    #allocation3 [shape = 'u8[262144]{0}', space=vmem, size = 0x40000, scoped, tag = 'input window, operand 0']
    #allocation4 [shape = 's32[2]{0}', space=sflag, size = 0x8, scoped, tag = 'scoped memory for tpu_custom_call.1']
    #allocation5 [shape = 's32[2]{0}', space=sflag, size = 0x8, scoped, tag = 'scoped memory for tpu_custom_call.1']
    #allocation6 [shape = 'u8[98304]{0}', space=vmem, size = 0x18000, scoped, tag = 'input window, operand 1, single buffered']
    #allocation7 [shape = 's32[1]{0}', space=sflag, size = 0x4, scoped, tag = 'scoped memory for tpu_custom_call.1']
    #allocation8 [shape = 'u8[786432]{0}', space=vmem, size = 0xc0000, scoped, tag = 'output window, operand 0']
    %8 = vsyncpa [#allocation4], 0
    %s9 = scalar_lea.sflag [#allocation4], 1
    %10 = vsyncpa %s9, 0
    %11 = vsyncpa [#allocation7], 0
    %12 = vsyncpa [#allocation5], 0
    %s13 = scalar_lea.sflag [#allocation5], 1
    %14 = vsyncpa %s13, 0
    loop: start=0, step=1, limit=4
    $region2: #{tpu_custom_call.1} parent=1 // loop_pre_header
      _
    $region3: #{tpu_custom_call.1} parent=1 // loop_header
      %s16 = sphi 0, %s20
      %p17 = scmp.ge.s32.totalorder %s16, 4
      %s23 = sphi 0, %s42
      %s24 = sphi 0, %s38
      %s25 = sphi 0, %s34
      %s26 = sphi 0, %s23
      %s27 = sphi 0, %s24
      %s28 = sphi 0, %s25
      %s29 = sphi 0, %s26
      %s30 = sphi 0, %s27
      %s31 = sphi 0, %s28
      %s47 = sphi 0, %s49
      %s50 = sphi 0, %s47
      %s51 = sphi 0, %s50
      %s67 = sphi 0, %s51
      %s75 = sphi 0, %s77
      %s78 = sphi 0, %s75
      %s79 = sphi 0, %s78
      %s95 = sphi 0, %s79
      %s101 = sphi 0, %s103
      %s104 = sphi 0, %s101
      %s105 = sphi 0, %s104
      %s121 = sphi 0, %s105
      %s129 = sphi 0, %s131
      %s132 = sphi 0, %s129
      %s133 = sphi 0, %s132
      %s149 = sphi 0, %s133
    $region4: #{tpu_custom_call.1} parent=1 // loop_header_branch
      %19 = sbr.rel (%p17) target = $region8
    $region5: #{tpu_custom_call.1} parent=1 // loop_body
      %s21 = ssub.s32 %s16, 1
      %s22 = ssub.s32 %s16, 2
      %s32 = sadd.s32 1, %s25
      %p33 = scmp.ge.s32.totalorder %s32, 1
      %s34 = scalar_select %p33, 0, %s32
      %s35 = sadd.s32 1, %s24
      %s36 = scalar_select %p33, %s35, %s24
      %p37 = scmp.ge.s32.totalorder %s36, 1
      %s38 = scalar_select %p37, 0, %s36
      %s39 = sadd.s32 1, %s23
      %s40 = scalar_select %p37, %s39, %s23
      %p41 = scmp.ge.s32.totalorder %s40, 2
      %s42 = scalar_select %p41, 0, %s40
      %s43 = ssub.s32 %s23, %s42
      %s44 = ssub.s32 %s25, %s34
      %s45 = sor.u32 %s43, %s44
      %p46 = scmp.eq.s32.totalorder %s45, 0
      %s48 = sadd.s32 %s47, 1
      %s49 = scalar_select %p46, %s47, %s48
      %p52 = pneg %p46
      %p53 = scmp.eq.s32.totalorder %s16, 1
      %p54 = por %p52, %p53
      %p55 = scmp.ne.s32.totalorder %s47, %s50
      %p56 = scmp.eq.s32.totalorder %s16, 0
      %p57 = por %p55, %p56
      %p58 = scmp.ne.s32.totalorder %s47, %s50
      %p59 = scmp.eq.s32.totalorder %s21, 1
      %p60 = por %p58, %p59
      %p61 = scmp.ne.s32.totalorder %s50, %s51
      %p62 = scmp.eq.s32.totalorder %s21, 0
      %p63 = por %p61, %p62
      %p64 = scmp.ne.s32.totalorder %s50, %s51
      %p65 = scmp.eq.s32.totalorder %s22, 1
      %p66 = por %p64, %p65
      %p68 = scmp.ne.s32.totalorder %s51, %s67
      %p69 = scmp.eq.s32.totalorder %s22, 0
      %p70 = por %p68, %p69
      %s71 = ssub.s32 %s25, %s34
      %s72 = ssub.s32 %s24, %s38
      %s73 = sor.u32 %s71, %s72
      %p74 = scmp.eq.s32.totalorder %s73, 0
      %s76 = sadd.s32 %s75, 1
      %s77 = scalar_select %p74, %s75, %s76
      %p80 = pneg %p74
      %p81 = scmp.eq.s32.totalorder %s16, 1
      %p82 = por %p80, %p81
      %p83 = scmp.ne.s32.totalorder %s75, %s78
      %p84 = scmp.eq.s32.totalorder %s16, 0
      %p85 = por %p83, %p84
      %p86 = scmp.ne.s32.totalorder %s75, %s78
      %p87 = scmp.eq.s32.totalorder %s21, 1
      %p88 = por %p86, %p87
      %p89 = scmp.ne.s32.totalorder %s78, %s79
      %p90 = scmp.eq.s32.totalorder %s21, 0
      %p91 = por %p89, %p90
      %p92 = scmp.ne.s32.totalorder %s78, %s79
      %p93 = scmp.eq.s32.totalorder %s22, 1
      %p94 = por %p92, %p93
      %p96 = scmp.ne.s32.totalorder %s79, %s95
      %p97 = scmp.eq.s32.totalorder %s22, 0
      %p98 = por %p96, %p97
      %s99 = ssub.s32 %s24, %s38
      %p100 = scmp.eq.s32.totalorder %s99, 0
      %s102 = sadd.s32 %s101, 1
      %s103 = scalar_select %p100, %s101, %s102
      %p106 = pneg %p100
      %p107 = scmp.eq.s32.totalorder %s16, 1
      %p108 = por %p106, %p107
      %p109 = scmp.ne.s32.totalorder %s101, %s104
      %p110 = scmp.eq.s32.totalorder %s16, 0
      %p111 = por %p109, %p110
      %p112 = scmp.ne.s32.totalorder %s101, %s104
      %p113 = scmp.eq.s32.totalorder %s21, 1
      %p114 = por %p112, %p113
      %p115 = scmp.ne.s32.totalorder %s104, %s105
      %p116 = scmp.eq.s32.totalorder %s21, 0
      %p117 = por %p115, %p116
      %p118 = scmp.ne.s32.totalorder %s104, %s105
      %p119 = scmp.eq.s32.totalorder %s22, 1
      %p120 = por %p118, %p119
      %p122 = scmp.ne.s32.totalorder %s105, %s121
      %p123 = scmp.eq.s32.totalorder %s22, 0
      %p124 = por %p122, %p123
      %s125 = ssub.s32 %s23, %s42
      %s126 = ssub.s32 %s24, %s38
      %s127 = sor.u32 %s125, %s126
      %p128 = scmp.eq.s32.totalorder %s127, 0
      %s130 = sadd.s32 %s129, 1
      %s131 = scalar_select %p128, %s129, %s130
      %p134 = pneg %p128
      %p135 = scmp.eq.s32.totalorder %s16, 1
      %p136 = por %p134, %p135
      %p137 = scmp.ne.s32.totalorder %s129, %s132
      %p138 = scmp.eq.s32.totalorder %s16, 0
      %p139 = por %p137, %p138
      %p140 = scmp.ne.s32.totalorder %s129, %s132
      %p141 = scmp.eq.s32.totalorder %s21, 1
      %p142 = por %p140, %p141
      %p143 = scmp.ne.s32.totalorder %s132, %s133
      %p144 = scmp.eq.s32.totalorder %s21, 0
      %p145 = por %p143, %p144
      %p146 = scmp.ne.s32.totalorder %s132, %s133
      %p147 = scmp.eq.s32.totalorder %s22, 1
      %p148 = por %p146, %p147
      %p150 = scmp.ne.s32.totalorder %s133, %s149
      %p151 = scmp.eq.s32.totalorder %s22, 0
      %p152 = por %p150, %p151
      %p153 = scmp.le.s32.totalorder 1, %s16
      %p154 = scmp.lt.s32.totalorder %s16, 3
      %p155 = pnand %p153, %p154
      %p156 = pneg %p155
      // Predicated region
      $region9: #{tpu_custom_call.1} parent=5 // pred_check
        _
      $region10: #{tpu_custom_call.1} parent=5 // pred_check_branch
        %158 = sbr.rel (%p155) target = $region12
      $region11: #{tpu_custom_call.1} parent=5 // pred_region
        %s159 = ssub.s32 %s16, 1
        // Predicated region
        $region13: #{tpu_custom_call.1} parent=11 // pred_check
          %p160 = pneg %p91
        $region14: #{tpu_custom_call.1} parent=11 // pred_check_branch
          %162 = sbr.rel (%p160) target = $region16
        $region15: #{tpu_custom_call.1} parent=11 // pred_region
          %s163 = smul.u32 16, %s28
          %s164 = smul.u32 3, %s27
          %s166 = ssub.s32 3072, 3072
          %167 = vsyncadd [#allocation7], %s166
          %s168 = smul.addr %s163, 3
          %s169 = sadd.s32 %s164, %s168
          %s170 = smul.addr %s169, 64
          %s171 = scalar_lea.hbm %s1, %s170
          %s172 = sshll.u32 [#allocation6], 4
          %s173 = int_to_ptr.vmem [resolvable:$true] %s172
          %178 = dma.hbm_to_vmem [thread:$0]  %s171, 3072, %s173, [#allocation7], 192, 192, 12
        $region16: #{tpu_custom_call.1} parent=11 // pred_fallthru
          _
        // Predicated region
        $region17: #{tpu_custom_call.1} parent=11 // pred_check
          %p179 = pneg %p117
        $region18: #{tpu_custom_call.1} parent=11 // pred_check_branch
          %181 = sbr.rel (%p179) target = $region20
        $region19: #{tpu_custom_call.1} parent=11 // pred_region
          %s182 = smul.u32 3, %s27
          %p183 = scmp.lt.s32.totalorder %s182, 2
          %s184 = scalar_select %p183, %s182, 2
          %s185 = scalar_lea.vmem %s2, %s184
          %s186 = smul.u32 3, %s27
        $region20: #{tpu_custom_call.1} parent=11 // pred_fallthru
          _
      $region12: #{tpu_custom_call.1} parent=5 // pred_fallthru
        _
      %p187 = scmp.lt.s32.totalorder %s16, 2
      // Predicated region
      $region21: #{tpu_custom_call.1} parent=5 // pred_check
        %p188 = pneg %p187
      $region22: #{tpu_custom_call.1} parent=5 // pred_check_branch
        %190 = sbr.rel (%p188) target = $region24
      $region23: #{tpu_custom_call.1} parent=5 // pred_region
        // Predicated region
        $region25: #{tpu_custom_call.1} parent=23 // pred_check
          %p191 = pneg %p57
        $region26: #{tpu_custom_call.1} parent=23 // pred_check_branch
          %193 = sbr.rel (%p191) target = $region28
        $region27: #{tpu_custom_call.1} parent=23 // pred_region
          %s194 = sand.u32 %s47, 1
          %s195 = scalar_lea.sflag [#allocation4], %s194
          %s196 = sand.u32 %s47, 1
          %s197 = smul.addr %s196, 256
          %s198 = scalar_lea.vmem [#allocation3], %s197
          %s199 = smul.u32 64, %s23
          %s201 = ssub.s32 4096, 4096
          %202 = vsyncadd %s195, %s201
          %s203 = sadd.s32 %s25, %s199
          %s204 = smul.addr %s203, 64
          %s205 = scalar_lea.hbm %s0, %s204
          %s206 = sshll.u32 %s198, 4
          %s207 = int_to_ptr.vmem [resolvable:$true] %s206
          %212 = dma.hbm_to_vmem [thread:$0]  %s205, 4096, %s207, %s195, 64, 64, 4
        $region28: #{tpu_custom_call.1} parent=23 // pred_fallthru
          _
      $region24: #{tpu_custom_call.1} parent=5 // pred_fallthru
        _
      %p213 = scmp.le.s32.totalorder 1, %s16
      %p214 = scmp.lt.s32.totalorder %s16, 3
      %p215 = pnand %p213, %p214
      %p216 = pneg %p215
      // Predicated region
      $region29: #{tpu_custom_call.1} parent=5 // pred_check
        _
      $region30: #{tpu_custom_call.1} parent=5 // pred_check_branch
        %218 = sbr.rel (%p215) target = $region32
      $region31: #{tpu_custom_call.1} parent=5 // pred_region
        %s219 = ssub.s32 %s16, 1
        %s220 = sand.u32 %s50, 1
        %s221 = scalar_lea.sflag [#allocation4], %s220
        %s222 = sand.u32 %s50, 1
        %s223 = smul.addr %s222, 256
        %s224 = scalar_lea.vmem [#allocation3], %s223
        // Predicated region
        $region33: #{tpu_custom_call.1} parent=31 // pred_check
          %p225 = pneg %p63
        $region34: #{tpu_custom_call.1} parent=31 // pred_check_branch
          %227 = sbr.rel (%p225) target = $region36
        $region35: #{tpu_custom_call.1} parent=31 // pred_region
          %228 = dma.done %s221, 4096
        $region36: #{tpu_custom_call.1} parent=31 // pred_fallthru
          _
        // Predicated region
        $region37: #{tpu_custom_call.1} parent=31 // pred_check
          %p229 = pneg %p91
        $region38: #{tpu_custom_call.1} parent=31 // pred_check_branch
          %231 = sbr.rel (%p229) target = $region40
        $region39: #{tpu_custom_call.1} parent=31 // pred_region
          %232 = dma.done [#allocation7], 3072
        $region40: #{tpu_custom_call.1} parent=31 // pred_fallthru
          _
        %s233 = sand.u32 %s50, 1
        %s234 = scalar_lea.sflag [#allocation4], %s233
        %s235 = sand.u32 %s50, 1
        %s236 = smul.addr %s235, 256
        %s237 = scalar_lea.vmem [#allocation3], %s236
        %p238 = pneg %p63
        %p239 = pneg %p60
        %p240 = pneg %p91
        %p241 = pneg %p88
        %s242 = smul.u32 3, %s27
        %p243 = scmp.lt.s32.totalorder %s242, 2
        %s244 = scalar_select %p243, %s242, 2
        %s245 = scalar_lea.vmem %s2, %s244
        %p246 = pneg %p117
        %p247 = pneg %p114
        %p248 = pneg %p145
        %p249 = pneg %p142
        %s250 = sand.u32 %s132, 1
        %s251 = scalar_lea.sflag [#allocation5], %s250
        %s252 = sand.u32 %s132, 1
        %s253 = smul.addr %s252, 768
        %s254 = scalar_lea.vmem [#allocation8], %s253
        %s255 = smul.u32 64, %s26
        %s256 = smul.u32 16, %s28
        %s257 = smul.u32 3, %s27
        %s258 = smul.u32 3, %s27
        %p259 = scmp.lt.s32.totalorder %s258, 2
        %s260 = scalar_select %p259, %s258, 2
        %s261 = scalar_lea.vmem %s2, %s260
        %s262 = smul.u32 3, %s27
        %s263 = smul.u32 64, %s26
        %s264 = smul.u32 3, %s27
        %p266 = scmp.eq.s32.totalorder %s28, 0
        // Predicated region
        $region41: #{tpu_custom_call.1} parent=31 // pred_check
          %p267 = pneg %p266
        $region42: #{tpu_custom_call.1} parent=31 // pred_check_branch
          %269 = sbr.rel (%p267) target = $region44
        $region43: #{tpu_custom_call.1} parent=31 // pred_region
          %270 = vst [vmem:[#allocation2] sm:$0xff] 0.0
          %271 = vst [vmem:[#allocation2 + $0x8] sm:$0xff] 0.0
          %272 = vst [vmem:[#allocation2 + $0x10] sm:$0xff] 0.0
          %273 = vst [vmem:[#allocation2 + $0x18] sm:$0xff] 0.0
          %274 = vst [vmem:[#allocation2 + $0x20] sm:$0xff] 0.0
          %275 = vst [vmem:[#allocation2 + $0x28] sm:$0xff] 0.0
          %276 = vst [vmem:[#allocation2 + $0x30] sm:$0xff] 0.0
          %277 = vst [vmem:[#allocation2 + $0x38] sm:$0xff] 0.0
          %278 = vst [vmem:[#allocation2 + $0x40] sm:$0xff] 0.0
          %279 = vst [vmem:[#allocation2 + $0x48] sm:$0xff] 0.0
          %280 = vst [vmem:[#allocation2 + $0x50] sm:$0xff] 0.0
          %281 = vst [vmem:[#allocation2 + $0x58] sm:$0xff] 0.0
          %282 = vst [vmem:[#allocation2 + $0x60] sm:$0xff] 0.0
          %283 = vst [vmem:[#allocation2 + $0x68] sm:$0xff] 0.0
          %284 = vst [vmem:[#allocation2 + $0x70] sm:$0xff] 0.0
          %285 = vst [vmem:[#allocation2 + $0x78] sm:$0xff] 0.0
          %286 = vst [vmem:[#allocation2 + $0x80] sm:$0xff] 0.0
          %287 = vst [vmem:[#allocation2 + $0x88] sm:$0xff] 0.0
          %288 = vst [vmem:[#allocation2 + $0x90] sm:$0xff] 0.0
          %289 = vst [vmem:[#allocation2 + $0x98] sm:$0xff] 0.0
          %290 = vst [vmem:[#allocation2 + $0xa0] sm:$0xff] 0.0
          %291 = vst [vmem:[#allocation2 + $0xa8] sm:$0xff] 0.0
          %292 = vst [vmem:[#allocation2 + $0xb0] sm:$0xff] 0.0
          %293 = vst [vmem:[#allocation2 + $0xb8] sm:$0xff] 0.0
          %294 = vst [vmem:[#allocation2 + $0xc0] sm:$0xff] 0.0
          %295 = vst [vmem:[#allocation2 + $0xc8] sm:$0xff] 0.0
          %296 = vst [vmem:[#allocation2 + $0xd0] sm:$0xff] 0.0
          %297 = vst [vmem:[#allocation2 + $0xd8] sm:$0xff] 0.0
          %298 = vst [vmem:[#allocation2 + $0xe0] sm:$0xff] 0.0
          %299 = vst [vmem:[#allocation2 + $0xe8] sm:$0xff] 0.0
          %300 = vst [vmem:[#allocation2 + $0xf0] sm:$0xff] 0.0
          %301 = vst [vmem:[#allocation2 + $0xf8] sm:$0xff] 0.0
          %302 = vst [vmem:[#allocation2 + $0x100] sm:$0xff] 0.0
          %303 = vst [vmem:[#allocation2 + $0x108] sm:$0xff] 0.0
          %304 = vst [vmem:[#allocation2 + $0x110] sm:$0xff] 0.0
          %305 = vst [vmem:[#allocation2 + $0x118] sm:$0xff] 0.0
          %306 = vst [vmem:[#allocation2 + $0x120] sm:$0xff] 0.0
          %307 = vst [vmem:[#allocation2 + $0x128] sm:$0xff] 0.0
          %308 = vst [vmem:[#allocation2 + $0x130] sm:$0xff] 0.0
          %309 = vst [vmem:[#allocation2 + $0x138] sm:$0xff] 0.0
          %310 = vst [vmem:[#allocation2 + $0x140] sm:$0xff] 0.0
          %311 = vst [vmem:[#allocation2 + $0x148] sm:$0xff] 0.0
          %312 = vst [vmem:[#allocation2 + $0x150] sm:$0xff] 0.0
          %313 = vst [vmem:[#allocation2 + $0x158] sm:$0xff] 0.0
          %314 = vst [vmem:[#allocation2 + $0x160] sm:$0xff] 0.0
          %315 = vst [vmem:[#allocation2 + $0x168] sm:$0xff] 0.0
          %316 = vst [vmem:[#allocation2 + $0x170] sm:$0xff] 0.0
          %317 = vst [vmem:[#allocation2 + $0x178] sm:$0xff] 0.0
          %318 = vst [vmem:[#allocation2 + $0x180] sm:$0xff] 0.0
          %319 = vst [vmem:[#allocation2 + $0x188] sm:$0xff] 0.0
          %320 = vst [vmem:[#allocation2 + $0x190] sm:$0xff] 0.0
          %321 = vst [vmem:[#allocation2 + $0x198] sm:$0xff] 0.0
          %322 = vst [vmem:[#allocation2 + $0x1a0] sm:$0xff] 0.0
          %323 = vst [vmem:[#allocation2 + $0x1a8] sm:$0xff] 0.0
          %324 = vst [vmem:[#allocation2 + $0x1b0] sm:$0xff] 0.0
          %325 = vst [vmem:[#allocation2 + $0x1b8] sm:$0xff] 0.0
          %326 = vst [vmem:[#allocation2 + $0x1c0] sm:$0xff] 0.0
          %327 = vst [vmem:[#allocation2 + $0x1c8] sm:$0xff] 0.0
          %328 = vst [vmem:[#allocation2 + $0x1d0] sm:$0xff] 0.0
          %329 = vst [vmem:[#allocation2 + $0x1d8] sm:$0xff] 0.0
          %330 = vst [vmem:[#allocation2 + $0x1e0] sm:$0xff] 0.0
          %331 = vst [vmem:[#allocation2 + $0x1e8] sm:$0xff] 0.0
          %332 = vst [vmem:[#allocation2 + $0x1f0] sm:$0xff] 0.0
          %333 = vst [vmem:[#allocation2 + $0x1f8] sm:$0xff] 0.0
          %334 = vst [vmem:[#allocation2 + $0x200] sm:$0xff] 0.0
          %335 = vst [vmem:[#allocation2 + $0x208] sm:$0xff] 0.0
          %336 = vst [vmem:[#allocation2 + $0x210] sm:$0xff] 0.0
          %337 = vst [vmem:[#allocation2 + $0x218] sm:$0xff] 0.0
          %338 = vst [vmem:[#allocation2 + $0x220] sm:$0xff] 0.0
          %339 = vst [vmem:[#allocation2 + $0x228] sm:$0xff] 0.0
          %340 = vst [vmem:[#allocation2 + $0x230] sm:$0xff] 0.0
          %341 = vst [vmem:[#allocation2 + $0x238] sm:$0xff] 0.0
          %342 = vst [vmem:[#allocation2 + $0x240] sm:$0xff] 0.0
          %343 = vst [vmem:[#allocation2 + $0x248] sm:$0xff] 0.0
          %344 = vst [vmem:[#allocation2 + $0x250] sm:$0xff] 0.0
          %345 = vst [vmem:[#allocation2 + $0x258] sm:$0xff] 0.0
          %346 = vst [vmem:[#allocation2 + $0x260] sm:$0xff] 0.0
          %347 = vst [vmem:[#allocation2 + $0x268] sm:$0xff] 0.0
          %348 = vst [vmem:[#allocation2 + $0x270] sm:$0xff] 0.0
          %349 = vst [vmem:[#allocation2 + $0x278] sm:$0xff] 0.0
          %350 = vst [vmem:[#allocation2 + $0x280] sm:$0xff] 0.0
          %351 = vst [vmem:[#allocation2 + $0x288] sm:$0xff] 0.0
          %352 = vst [vmem:[#allocation2 + $0x290] sm:$0xff] 0.0
          %353 = vst [vmem:[#allocation2 + $0x298] sm:$0xff] 0.0
          %354 = vst [vmem:[#allocation2 + $0x2a0] sm:$0xff] 0.0
          %355 = vst [vmem:[#allocation2 + $0x2a8] sm:$0xff] 0.0
          %356 = vst [vmem:[#allocation2 + $0x2b0] sm:$0xff] 0.0
          %357 = vst [vmem:[#allocation2 + $0x2b8] sm:$0xff] 0.0
          %358 = vst [vmem:[#allocation2 + $0x2c0] sm:$0xff] 0.0
          %359 = vst [vmem:[#allocation2 + $0x2c8] sm:$0xff] 0.0
          %360 = vst [vmem:[#allocation2 + $0x2d0] sm:$0xff] 0.0
          %361 = vst [vmem:[#allocation2 + $0x2d8] sm:$0xff] 0.0
          %362 = vst [vmem:[#allocation2 + $0x2e0] sm:$0xff] 0.0
          %363 = vst [vmem:[#allocation2 + $0x2e8] sm:$0xff] 0.0
          %364 = vst [vmem:[#allocation2 + $0x2f0] sm:$0xff] 0.0
          %365 = vst [vmem:[#allocation2 + $0x2f8] sm:$0xff] 0.0
          %366 = vst [vmem:[#allocation2 + $0x300] sm:$0xff] 0.0
          %367 = vst [vmem:[#allocation2 + $0x308] sm:$0xff] 0.0
          %368 = vst [vmem:[#allocation2 + $0x310] sm:$0xff] 0.0
          %369 = vst [vmem:[#allocation2 + $0x318] sm:$0xff] 0.0
          %370 = vst [vmem:[#allocation2 + $0x320] sm:$0xff] 0.0
          %371 = vst [vmem:[#allocation2 + $0x328] sm:$0xff] 0.0
          %372 = vst [vmem:[#allocation2 + $0x330] sm:$0xff] 0.0
          %373 = vst [vmem:[#allocation2 + $0x338] sm:$0xff] 0.0
          %374 = vst [vmem:[#allocation2 + $0x340] sm:$0xff] 0.0
          %375 = vst [vmem:[#allocation2 + $0x348] sm:$0xff] 0.0
          %376 = vst [vmem:[#allocation2 + $0x350] sm:$0xff] 0.0
          %377 = vst [vmem:[#allocation2 + $0x358] sm:$0xff] 0.0
          %378 = vst [vmem:[#allocation2 + $0x360] sm:$0xff] 0.0
          %379 = vst [vmem:[#allocation2 + $0x368] sm:$0xff] 0.0
          %380 = vst [vmem:[#allocation2 + $0x370] sm:$0xff] 0.0
          %381 = vst [vmem:[#allocation2 + $0x378] sm:$0xff] 0.0
          %382 = vst [vmem:[#allocation2 + $0x380] sm:$0xff] 0.0
          %383 = vst [vmem:[#allocation2 + $0x388] sm:$0xff] 0.0
          %384 = vst [vmem:[#allocation2 + $0x390] sm:$0xff] 0.0
          %385 = vst [vmem:[#allocation2 + $0x398] sm:$0xff] 0.0
          %386 = vst [vmem:[#allocation2 + $0x3a0] sm:$0xff] 0.0
          %387 = vst [vmem:[#allocation2 + $0x3a8] sm:$0xff] 0.0
          %388 = vst [vmem:[#allocation2 + $0x3b0] sm:$0xff] 0.0
          %389 = vst [vmem:[#allocation2 + $0x3b8] sm:$0xff] 0.0
          %390 = vst [vmem:[#allocation2 + $0x3c0] sm:$0xff] 0.0
          %391 = vst [vmem:[#allocation2 + $0x3c8] sm:$0xff] 0.0
          %392 = vst [vmem:[#allocation2 + $0x3d0] sm:$0xff] 0.0
          %393 = vst [vmem:[#allocation2 + $0x3d8] sm:$0xff] 0.0
          %394 = vst [vmem:[#allocation2 + $0x3e0] sm:$0xff] 0.0
          %395 = vst [vmem:[#allocation2 + $0x3e8] sm:$0xff] 0.0
          %396 = vst [vmem:[#allocation2 + $0x3f0] sm:$0xff] 0.0
          %397 = vst [vmem:[#allocation2 + $0x3f8] sm:$0xff] 0.0
          %398 = vst [vmem:[#allocation2 + $0x400] sm:$0xff] 0.0
          %399 = vst [vmem:[#allocation2 + $0x408] sm:$0xff] 0.0
          %400 = vst [vmem:[#allocation2 + $0x410] sm:$0xff] 0.0
          %401 = vst [vmem:[#allocation2 + $0x418] sm:$0xff] 0.0
          %402 = vst [vmem:[#allocation2 + $0x420] sm:$0xff] 0.0
          %403 = vst [vmem:[#allocation2 + $0x428] sm:$0xff] 0.0
          %404 = vst [vmem:[#allocation2 + $0x430] sm:$0xff] 0.0
          %405 = vst [vmem:[#allocation2 + $0x438] sm:$0xff] 0.0
          %406 = vst [vmem:[#allocation2 + $0x440] sm:$0xff] 0.0
          %407 = vst [vmem:[#allocation2 + $0x448] sm:$0xff] 0.0
          %408 = vst [vmem:[#allocation2 + $0x450] sm:$0xff] 0.0
          %409 = vst [vmem:[#allocation2 + $0x458] sm:$0xff] 0.0
          %410 = vst [vmem:[#allocation2 + $0x460] sm:$0xff] 0.0
          %411 = vst [vmem:[#allocation2 + $0x468] sm:$0xff] 0.0
          %412 = vst [vmem:[#allocation2 + $0x470] sm:$0xff] 0.0
          %413 = vst [vmem:[#allocation2 + $0x478] sm:$0xff] 0.0
          %414 = vst [vmem:[#allocation2 + $0x480] sm:$0xff] 0.0
          %415 = vst [vmem:[#allocation2 + $0x488] sm:$0xff] 0.0
          %416 = vst [vmem:[#allocation2 + $0x490] sm:$0xff] 0.0
          %417 = vst [vmem:[#allocation2 + $0x498] sm:$0xff] 0.0
          %418 = vst [vmem:[#allocation2 + $0x4a0] sm:$0xff] 0.0
          %419 = vst [vmem:[#allocation2 + $0x4a8] sm:$0xff] 0.0
          %420 = vst [vmem:[#allocation2 + $0x4b0] sm:$0xff] 0.0
          %421 = vst [vmem:[#allocation2 + $0x4b8] sm:$0xff] 0.0
          %422 = vst [vmem:[#allocation2 + $0x4c0] sm:$0xff] 0.0
          %423 = vst [vmem:[#allocation2 + $0x4c8] sm:$0xff] 0.0
          %424 = vst [vmem:[#allocation2 + $0x4d0] sm:$0xff] 0.0
          %425 = vst [vmem:[#allocation2 + $0x4d8] sm:$0xff] 0.0
          %426 = vst [vmem:[#allocation2 + $0x4e0] sm:$0xff] 0.0
          %427 = vst [vmem:[#allocation2 + $0x4e8] sm:$0xff] 0.0
          %428 = vst [vmem:[#allocation2 + $0x4f0] sm:$0xff] 0.0
          %429 = vst [vmem:[#allocation2 + $0x4f8] sm:$0xff] 0.0
          %430 = vst [vmem:[#allocation2 + $0x500] sm:$0xff] 0.0
          %431 = vst [vmem:[#allocation2 + $0x508] sm:$0xff] 0.0
          %432 = vst [vmem:[#allocation2 + $0x510] sm:$0xff] 0.0
          %433 = vst [vmem:[#allocation2 + $0x518] sm:$0xff] 0.0
          %434 = vst [vmem:[#allocation2 + $0x520] sm:$0xff] 0.0
          %435 = vst [vmem:[#allocation2 + $0x528] sm:$0xff] 0.0
          %436 = vst [vmem:[#allocation2 + $0x530] sm:$0xff] 0.0
          %437 = vst [vmem:[#allocation2 + $0x538] sm:$0xff] 0.0
          %438 = vst [vmem:[#allocation2 + $0x540] sm:$0xff] 0.0
          %439 = vst [vmem:[#allocation2 + $0x548] sm:$0xff] 0.0
          %440 = vst [vmem:[#allocation2 + $0x550] sm:$0xff] 0.0
          %441 = vst [vmem:[#allocation2 + $0x558] sm:$0xff] 0.0
          %442 = vst [vmem:[#allocation2 + $0x560] sm:$0xff] 0.0
          %443 = vst [vmem:[#allocation2 + $0x568] sm:$0xff] 0.0
          %444 = vst [vmem:[#allocation2 + $0x570] sm:$0xff] 0.0
          %445 = vst [vmem:[#allocation2 + $0x578] sm:$0xff] 0.0
          %446 = vst [vmem:[#allocation2 + $0x580] sm:$0xff] 0.0
          %447 = vst [vmem:[#allocation2 + $0x588] sm:$0xff] 0.0
          %448 = vst [vmem:[#allocation2 + $0x590] sm:$0xff] 0.0
          %449 = vst [vmem:[#allocation2 + $0x598] sm:$0xff] 0.0
          %450 = vst [vmem:[#allocation2 + $0x5a0] sm:$0xff] 0.0
          %451 = vst [vmem:[#allocation2 + $0x5a8] sm:$0xff] 0.0
          %452 = vst [vmem:[#allocation2 + $0x5b0] sm:$0xff] 0.0
          %453 = vst [vmem:[#allocation2 + $0x5b8] sm:$0xff] 0.0
          %454 = vst [vmem:[#allocation2 + $0x5c0] sm:$0xff] 0.0
          %455 = vst [vmem:[#allocation2 + $0x5c8] sm:$0xff] 0.0
          %456 = vst [vmem:[#allocation2 + $0x5d0] sm:$0xff] 0.0
          %457 = vst [vmem:[#allocation2 + $0x5d8] sm:$0xff] 0.0
          %458 = vst [vmem:[#allocation2 + $0x5e0] sm:$0xff] 0.0
          %459 = vst [vmem:[#allocation2 + $0x5e8] sm:$0xff] 0.0
          %460 = vst [vmem:[#allocation2 + $0x5f0] sm:$0xff] 0.0
          %461 = vst [vmem:[#allocation2 + $0x5f8] sm:$0xff] 0.0
        $region44: #{tpu_custom_call.1} parent=31 // pred_fallthru
          _
        %v462 = vld [vmem:[#allocation2] sm:$0xff]
        %v463 = vld [vmem:[#allocation2 + $0x8] sm:$0xff]
        %v464 = vld [vmem:[#allocation2 + $0x10] sm:$0xff]
        %v465 = vld [vmem:[#allocation2 + $0x18] sm:$0xff]
        %v466 = vld [vmem:[#allocation2 + $0x20] sm:$0xff]
        %v467 = vld [vmem:[#allocation2 + $0x28] sm:$0xff]
        %v468 = vld [vmem:[#allocation2 + $0x30] sm:$0xff]
        %v469 = vld [vmem:[#allocation2 + $0x38] sm:$0xff]
        %v470 = vld [vmem:[#allocation2 + $0x40] sm:$0xff]
        %v471 = vld [vmem:[#allocation2 + $0x48] sm:$0xff]
        %v472 = vld [vmem:[#allocation2 + $0x50] sm:$0xff]
        %v473 = vld [vmem:[#allocation2 + $0x58] sm:$0xff]
        %v474 = vld [vmem:[#allocation2 + $0x60] sm:$0xff]
        %v475 = vld [vmem:[#allocation2 + $0x68] sm:$0xff]
        %v476 = vld [vmem:[#allocation2 + $0x70] sm:$0xff]
        %v477 = vld [vmem:[#allocation2 + $0x78] sm:$0xff]
        %v478 = vld [vmem:[#allocation2 + $0x80] sm:$0xff]
        %v479 = vld [vmem:[#allocation2 + $0x88] sm:$0xff]
        %v480 = vld [vmem:[#allocation2 + $0x90] sm:$0xff]
        %v481 = vld [vmem:[#allocation2 + $0x98] sm:$0xff]
        %v482 = vld [vmem:[#allocation2 + $0xa0] sm:$0xff]
        %v483 = vld [vmem:[#allocation2 + $0xa8] sm:$0xff]
        %v484 = vld [vmem:[#allocation2 + $0xb0] sm:$0xff]
        %v485 = vld [vmem:[#allocation2 + $0xb8] sm:$0xff]
        %v486 = vld [vmem:[#allocation2 + $0xc0] sm:$0xff]
        %v487 = vld [vmem:[#allocation2 + $0xc8] sm:$0xff]
        %v488 = vld [vmem:[#allocation2 + $0xd0] sm:$0xff]
        %v489 = vld [vmem:[#allocation2 + $0xd8] sm:$0xff]
        %v490 = vld [vmem:[#allocation2 + $0xe0] sm:$0xff]
        %v491 = vld [vmem:[#allocation2 + $0xe8] sm:$0xff]
        %v492 = vld [vmem:[#allocation2 + $0xf0] sm:$0xff]
        %v493 = vld [vmem:[#allocation2 + $0xf8] sm:$0xff]
        %v494 = vld [vmem:[#allocation2 + $0x100] sm:$0xff]
        %v495 = vld [vmem:[#allocation2 + $0x108] sm:$0xff]
        %v496 = vld [vmem:[#allocation2 + $0x110] sm:$0xff]
        %v497 = vld [vmem:[#allocation2 + $0x118] sm:$0xff]
        %v498 = vld [vmem:[#allocation2 + $0x120] sm:$0xff]
        %v499 = vld [vmem:[#allocation2 + $0x128] sm:$0xff]
        %v500 = vld [vmem:[#allocation2 + $0x130] sm:$0xff]
        %v501 = vld [vmem:[#allocation2 + $0x138] sm:$0xff]
        %v502 = vld [vmem:[#allocation2 + $0x140] sm:$0xff]
        %v503 = vld [vmem:[#allocation2 + $0x148] sm:$0xff]
        %v504 = vld [vmem:[#allocation2 + $0x150] sm:$0xff]
        %v505 = vld [vmem:[#allocation2 + $0x158] sm:$0xff]
        %v506 = vld [vmem:[#allocation2 + $0x160] sm:$0xff]
        %v507 = vld [vmem:[#allocation2 + $0x168] sm:$0xff]
        %v508 = vld [vmem:[#allocation2 + $0x170] sm:$0xff]
        %v509 = vld [vmem:[#allocation2 + $0x178] sm:$0xff]
        %v510 = vld [vmem:[#allocation2 + $0x180] sm:$0xff]
        %v511 = vld [vmem:[#allocation2 + $0x188] sm:$0xff]
        %v512 = vld [vmem:[#allocation2 + $0x190] sm:$0xff]
        %v513 = vld [vmem:[#allocation2 + $0x198] sm:$0xff]
        %v514 = vld [vmem:[#allocation2 + $0x1a0] sm:$0xff]
        %v515 = vld [vmem:[#allocation2 + $0x1a8] sm:$0xff]
        %v516 = vld [vmem:[#allocation2 + $0x1b0] sm:$0xff]
        %v517 = vld [vmem:[#allocation2 + $0x1b8] sm:$0xff]
        %v518 = vld [vmem:[#allocation2 + $0x1c0] sm:$0xff]
        %v519 = vld [vmem:[#allocation2 + $0x1c8] sm:$0xff]
        %v520 = vld [vmem:[#allocation2 + $0x1d0] sm:$0xff]
        %v521 = vld [vmem:[#allocation2 + $0x1d8] sm:$0xff]
        %v522 = vld [vmem:[#allocation2 + $0x1e0] sm:$0xff]
        %v523 = vld [vmem:[#allocation2 + $0x1e8] sm:$0xff]
        %v524 = vld [vmem:[#allocation2 + $0x1f0] sm:$0xff]
        %v525 = vld [vmem:[#allocation2 + $0x1f8] sm:$0xff]
        %v526 = vld [vmem:[#allocation2 + $0x200] sm:$0xff]
        %v527 = vld [vmem:[#allocation2 + $0x208] sm:$0xff]
        %v528 = vld [vmem:[#allocation2 + $0x210] sm:$0xff]
        %v529 = vld [vmem:[#allocation2 + $0x218] sm:$0xff]
        %v530 = vld [vmem:[#allocation2 + $0x220] sm:$0xff]
        %v531 = vld [vmem:[#allocation2 + $0x228] sm:$0xff]
        %v532 = vld [vmem:[#allocation2 + $0x230] sm:$0xff]
        %v533 = vld [vmem:[#allocation2 + $0x238] sm:$0xff]
        %v534 = vld [vmem:[#allocation2 + $0x240] sm:$0xff]
        %v535 = vld [vmem:[#allocation2 + $0x248] sm:$0xff]
        %v536 = vld [vmem:[#allocation2 + $0x250] sm:$0xff]
        %v537 = vld [vmem:[#allocation2 + $0x258] sm:$0xff]
        %v538 = vld [vmem:[#allocation2 + $0x260] sm:$0xff]
        %v539 = vld [vmem:[#allocation2 + $0x268] sm:$0xff]
        %v540 = vld [vmem:[#allocation2 + $0x270] sm:$0xff]
        %v541 = vld [vmem:[#allocation2 + $0x278] sm:$0xff]
        %v542 = vld [vmem:[#allocation2 + $0x280] sm:$0xff]
        %v543 = vld [vmem:[#allocation2 + $0x288] sm:$0xff]
        %v544 = vld [vmem:[#allocation2 + $0x290] sm:$0xff]
        %v545 = vld [vmem:[#allocation2 + $0x298] sm:$0xff]
        %v546 = vld [vmem:[#allocation2 + $0x2a0] sm:$0xff]
        %v547 = vld [vmem:[#allocation2 + $0x2a8] sm:$0xff]
        %v548 = vld [vmem:[#allocation2 + $0x2b0] sm:$0xff]
        %v549 = vld [vmem:[#allocation2 + $0x2b8] sm:$0xff]
        %v550 = vld [vmem:[#allocation2 + $0x2c0] sm:$0xff]
        %v551 = vld [vmem:[#allocation2 + $0x2c8] sm:$0xff]
        %v552 = vld [vmem:[#allocation2 + $0x2d0] sm:$0xff]
        %v553 = vld [vmem:[#allocation2 + $0x2d8] sm:$0xff]
        %v554 = vld [vmem:[#allocation2 + $0x2e0] sm:$0xff]
        %v555 = vld [vmem:[#allocation2 + $0x2e8] sm:$0xff]
        %v556 = vld [vmem:[#allocation2 + $0x2f0] sm:$0xff]
        %v557 = vld [vmem:[#allocation2 + $0x2f8] sm:$0xff]
        %v558 = vld [vmem:[#allocation2 + $0x300] sm:$0xff]
        %v559 = vld [vmem:[#allocation2 + $0x308] sm:$0xff]
        %v560 = vld [vmem:[#allocation2 + $0x310] sm:$0xff]
        %v561 = vld [vmem:[#allocation2 + $0x318] sm:$0xff]
        %v562 = vld [vmem:[#allocation2 + $0x320] sm:$0xff]
        %v563 = vld [vmem:[#allocation2 + $0x328] sm:$0xff]
        %v564 = vld [vmem:[#allocation2 + $0x330] sm:$0xff]
        %v565 = vld [vmem:[#allocation2 + $0x338] sm:$0xff]
        %v566 = vld [vmem:[#allocation2 + $0x340] sm:$0xff]
        %v567 = vld [vmem:[#allocation2 + $0x348] sm:$0xff]
        %v568 = vld [vmem:[#allocation2 + $0x350] sm:$0xff]
        %v569 = vld [vmem:[#allocation2 + $0x358] sm:$0xff]
        %v570 = vld [vmem:[#allocation2 + $0x360] sm:$0xff]
        %v571 = vld [vmem:[#allocation2 + $0x368] sm:$0xff]
        %v572 = vld [vmem:[#allocation2 + $0x370] sm:$0xff]
        %v573 = vld [vmem:[#allocation2 + $0x378] sm:$0xff]
        %v574 = vld [vmem:[#allocation2 + $0x380] sm:$0xff]
        %v575 = vld [vmem:[#allocation2 + $0x388] sm:$0xff]
        %v576 = vld [vmem:[#allocation2 + $0x390] sm:$0xff]
        %v577 = vld [vmem:[#allocation2 + $0x398] sm:$0xff]
        %v578 = vld [vmem:[#allocation2 + $0x3a0] sm:$0xff]
        %v579 = vld [vmem:[#allocation2 + $0x3a8] sm:$0xff]
        %v580 = vld [vmem:[#allocation2 + $0x3b0] sm:$0xff]
        %v581 = vld [vmem:[#allocation2 + $0x3b8] sm:$0xff]
        %v582 = vld [vmem:[#allocation2 + $0x3c0] sm:$0xff]
        %v583 = vld [vmem:[#allocation2 + $0x3c8] sm:$0xff]
        %v584 = vld [vmem:[#allocation2 + $0x3d0] sm:$0xff]
        %v585 = vld [vmem:[#allocation2 + $0x3d8] sm:$0xff]
        %v586 = vld [vmem:[#allocation2 + $0x3e0] sm:$0xff]
        %v587 = vld [vmem:[#allocation2 + $0x3e8] sm:$0xff]
        %v588 = vld [vmem:[#allocation2 + $0x3f0] sm:$0xff]
        %v589 = vld [vmem:[#allocation2 + $0x3f8] sm:$0xff]
        %v590 = vld [vmem:[#allocation2 + $0x400] sm:$0xff]
        %v591 = vld [vmem:[#allocation2 + $0x408] sm:$0xff]
        %v592 = vld [vmem:[#allocation2 + $0x410] sm:$0xff]
        %v593 = vld [vmem:[#allocation2 + $0x418] sm:$0xff]
        %v594 = vld [vmem:[#allocation2 + $0x420] sm:$0xff]
        %v595 = vld [vmem:[#allocation2 + $0x428] sm:$0xff]
        %v596 = vld [vmem:[#allocation2 + $0x430] sm:$0xff]
        %v597 = vld [vmem:[#allocation2 + $0x438] sm:$0xff]
        %v598 = vld [vmem:[#allocation2 + $0x440] sm:$0xff]
        %v599 = vld [vmem:[#allocation2 + $0x448] sm:$0xff]
        %v600 = vld [vmem:[#allocation2 + $0x450] sm:$0xff]
        %v601 = vld [vmem:[#allocation2 + $0x458] sm:$0xff]
        %v602 = vld [vmem:[#allocation2 + $0x460] sm:$0xff]
        %v603 = vld [vmem:[#allocation2 + $0x468] sm:$0xff]
        %v604 = vld [vmem:[#allocation2 + $0x470] sm:$0xff]
        %v605 = vld [vmem:[#allocation2 + $0x478] sm:$0xff]
        %v606 = vld [vmem:[#allocation2 + $0x480] sm:$0xff]
        %v607 = vld [vmem:[#allocation2 + $0x488] sm:$0xff]
        %v608 = vld [vmem:[#allocation2 + $0x490] sm:$0xff]
        %v609 = vld [vmem:[#allocation2 + $0x498] sm:$0xff]
        %v610 = vld [vmem:[#allocation2 + $0x4a0] sm:$0xff]
        %v611 = vld [vmem:[#allocation2 + $0x4a8] sm:$0xff]
        %v612 = vld [vmem:[#allocation2 + $0x4b0] sm:$0xff]
        %v613 = vld [vmem:[#allocation2 + $0x4b8] sm:$0xff]
        %v614 = vld [vmem:[#allocation2 + $0x4c0] sm:$0xff]
        %v615 = vld [vmem:[#allocation2 + $0x4c8] sm:$0xff]
        %v616 = vld [vmem:[#allocation2 + $0x4d0] sm:$0xff]
        %v617 = vld [vmem:[#allocation2 + $0x4d8] sm:$0xff]
        %v618 = vld [vmem:[#allocation2 + $0x4e0] sm:$0xff]
        %v619 = vld [vmem:[#allocation2 + $0x4e8] sm:$0xff]
        %v620 = vld [vmem:[#allocation2 + $0x4f0] sm:$0xff]
        %v621 = vld [vmem:[#allocation2 + $0x4f8] sm:$0xff]
        %v622 = vld [vmem:[#allocation2 + $0x500] sm:$0xff]
        %v623 = vld [vmem:[#allocation2 + $0x508] sm:$0xff]
        %v624 = vld [vmem:[#allocation2 + $0x510] sm:$0xff]
        %v625 = vld [vmem:[#allocation2 + $0x518] sm:$0xff]
        %v626 = vld [vmem:[#allocation2 + $0x520] sm:$0xff]
        %v627 = vld [vmem:[#allocation2 + $0x528] sm:$0xff]
        %v628 = vld [vmem:[#allocation2 + $0x530] sm:$0xff]
        %v629 = vld [vmem:[#allocation2 + $0x538] sm:$0xff]
        %v630 = vld [vmem:[#allocation2 + $0x540] sm:$0xff]
        %v631 = vld [vmem:[#allocation2 + $0x548] sm:$0xff]
        %v632 = vld [vmem:[#allocation2 + $0x550] sm:$0xff]
        %v633 = vld [vmem:[#allocation2 + $0x558] sm:$0xff]
        %v634 = vld [vmem:[#allocation2 + $0x560] sm:$0xff]
        %v635 = vld [vmem:[#allocation2 + $0x568] sm:$0xff]
        %v636 = vld [vmem:[#allocation2 + $0x570] sm:$0xff]
        %v637 = vld [vmem:[#allocation2 + $0x578] sm:$0xff]
        %v638 = vld [vmem:[#allocation2 + $0x580] sm:$0xff]
        %v639 = vld [vmem:[#allocation2 + $0x588] sm:$0xff]
        %v640 = vld [vmem:[#allocation2 + $0x590] sm:$0xff]
        %v641 = vld [vmem:[#allocation2 + $0x598] sm:$0xff]
        %v642 = vld [vmem:[#allocation2 + $0x5a0] sm:$0xff]
        %v643 = vld [vmem:[#allocation2 + $0x5a8] sm:$0xff]
        %v644 = vld [vmem:[#allocation2 + $0x5b0] sm:$0xff]
        %v645 = vld [vmem:[#allocation2 + $0x5b8] sm:$0xff]
        %v646 = vld [vmem:[#allocation2 + $0x5c0] sm:$0xff]
        %v647 = vld [vmem:[#allocation2 + $0x5c8] sm:$0xff]
        %v648 = vld [vmem:[#allocation2 + $0x5d0] sm:$0xff]
        %v649 = vld [vmem:[#allocation2 + $0x5d8] sm:$0xff]
        %v650 = vld [vmem:[#allocation2 + $0x5e0] sm:$0xff]
        %v651 = vld [vmem:[#allocation2 + $0x5e8] sm:$0xff]
        %v652 = vld [vmem:[#allocation2 + $0x5f0] sm:$0xff]
        %v653 = vld [vmem:[#allocation2 + $0x5f8] sm:$0xff]
        %v654 = vld [vmem:[%s224] sm:$0xf]
        %v655 = vld [vmem:[%s224 + $0x4] sm:$0xf]
        %v656 = vld [vmem:[%s224 + $0x8] sm:$0xf]
        %v657 = vld [vmem:[%s224 + $0xc] sm:$0xf]
        %v658 = vld [vmem:[%s224 + $0x10] sm:$0xf]
        %v659 = vld [vmem:[%s224 + $0x14] sm:$0xf]
        %v660 = vld [vmem:[%s224 + $0x18] sm:$0xf]
        %v661 = vld [vmem:[%s224 + $0x1c] sm:$0xf]
        %v662 = vld [vmem:[%s224 + $0x20] sm:$0xf]
        %v663 = vld [vmem:[%s224 + $0x24] sm:$0xf]
        %v664 = vld [vmem:[%s224 + $0x28] sm:$0xf]
        %v665 = vld [vmem:[%s224 + $0x2c] sm:$0xf]
        %v666 = vld [vmem:[%s224 + $0x30] sm:$0xf]
        %v667 = vld [vmem:[%s224 + $0x34] sm:$0xf]
        %v668 = vld [vmem:[%s224 + $0x38] sm:$0xf]
        %v669 = vld [vmem:[%s224 + $0x3c] sm:$0xf]
        %v670 = vld [vmem:[%s224 + $0x40] sm:$0xf]
        %v671 = vld [vmem:[%s224 + $0x44] sm:$0xf]
        %v672 = vld [vmem:[%s224 + $0x48] sm:$0xf]
        %v673 = vld [vmem:[%s224 + $0x4c] sm:$0xf]
        %v674 = vld [vmem:[%s224 + $0x50] sm:$0xf]
        %v675 = vld [vmem:[%s224 + $0x54] sm:$0xf]
        %v676 = vld [vmem:[%s224 + $0x58] sm:$0xf]
        %v677 = vld [vmem:[%s224 + $0x5c] sm:$0xf]
        %v678 = vld [vmem:[%s224 + $0x60] sm:$0xf]
        %v679 = vld [vmem:[%s224 + $0x64] sm:$0xf]
        %v680 = vld [vmem:[%s224 + $0x68] sm:$0xf]
        %v681 = vld [vmem:[%s224 + $0x6c] sm:$0xf]
        %v682 = vld [vmem:[%s224 + $0x70] sm:$0xf]
        %v683 = vld [vmem:[%s224 + $0x74] sm:$0xf]
        %v684 = vld [vmem:[%s224 + $0x78] sm:$0xf]
        %v685 = vld [vmem:[%s224 + $0x7c] sm:$0xf]
        %v686 = vld [vmem:[%s224 + $0x80] sm:$0xf]
        %v687 = vld [vmem:[%s224 + $0x84] sm:$0xf]
        %v688 = vld [vmem:[%s224 + $0x88] sm:$0xf]
        %v689 = vld [vmem:[%s224 + $0x8c] sm:$0xf]
        %v690 = vld [vmem:[%s224 + $0x90] sm:$0xf]
        %v691 = vld [vmem:[%s224 + $0x94] sm:$0xf]
        %v692 = vld [vmem:[%s224 + $0x98] sm:$0xf]
        %v693 = vld [vmem:[%s224 + $0x9c] sm:$0xf]
        %v694 = vld [vmem:[%s224 + $0xa0] sm:$0xf]
        %v695 = vld [vmem:[%s224 + $0xa4] sm:$0xf]
        %v696 = vld [vmem:[%s224 + $0xa8] sm:$0xf]
        %v697 = vld [vmem:[%s224 + $0xac] sm:$0xf]
        %v698 = vld [vmem:[%s224 + $0xb0] sm:$0xf]
        %v699 = vld [vmem:[%s224 + $0xb4] sm:$0xf]
        %v700 = vld [vmem:[%s224 + $0xb8] sm:$0xf]
        %v701 = vld [vmem:[%s224 + $0xbc] sm:$0xf]
        %v702 = vld [vmem:[%s224 + $0xc0] sm:$0xf]
        %v703 = vld [vmem:[%s224 + $0xc4] sm:$0xf]
        %v704 = vld [vmem:[%s224 + $0xc8] sm:$0xf]
        %v705 = vld [vmem:[%s224 + $0xcc] sm:$0xf]
        %v706 = vld [vmem:[%s224 + $0xd0] sm:$0xf]
        %v707 = vld [vmem:[%s224 + $0xd4] sm:$0xf]
        %v708 = vld [vmem:[%s224 + $0xd8] sm:$0xf]
        %v709 = vld [vmem:[%s224 + $0xdc] sm:$0xf]
        %v710 = vld [vmem:[%s224 + $0xe0] sm:$0xf]
        %v711 = vld [vmem:[%s224 + $0xe4] sm:$0xf]
        %v712 = vld [vmem:[%s224 + $0xe8] sm:$0xf]
        %v713 = vld [vmem:[%s224 + $0xec] sm:$0xf]
        %v714 = vld [vmem:[%s224 + $0xf0] sm:$0xf]
        %v715 = vld [vmem:[%s224 + $0xf4] sm:$0xf]
        %v716 = vld [vmem:[%s224 + $0xf8] sm:$0xf]
        %v717 = vld [vmem:[%s224 + $0xfc] sm:$0xf]
        %v718 = vld [vmem:[#allocation6] sm:$0xff]
        %v719 = vld [vmem:[#allocation6 + $0x8] sm:$0xf]
        %v720 = vld [vmem:[#allocation6 + $0xc] sm:$0xff]
        %v721 = vld [vmem:[#allocation6 + $0x14] sm:$0xf]
        %v722 = vld [vmem:[#allocation6 + $0x18] sm:$0xff]
        %v723 = vld [vmem:[#allocation6 + $0x20] sm:$0xf]
        %v724 = vld [vmem:[#allocation6 + $0x24] sm:$0xff]
        %v725 = vld [vmem:[#allocation6 + $0x2c] sm:$0xf]
        %v726 = vld [vmem:[#allocation6 + $0x30] sm:$0xff]
        %v727 = vld [vmem:[#allocation6 + $0x38] sm:$0xf]
        %v728 = vld [vmem:[#allocation6 + $0x3c] sm:$0xff]
        %v729 = vld [vmem:[#allocation6 + $0x44] sm:$0xf]
        %v730 = vld [vmem:[#allocation6 + $0x48] sm:$0xff]
        %v731 = vld [vmem:[#allocation6 + $0x50] sm:$0xf]
        %v732 = vld [vmem:[#allocation6 + $0x54] sm:$0xff]
        %v733 = vld [vmem:[#allocation6 + $0x5c] sm:$0xf]
        %v734 = vld [vmem:[#allocation6 + $0x60] sm:$0xff]
        %v735 = vld [vmem:[#allocation6 + $0x68] sm:$0xf]
        %v736 = vld [vmem:[#allocation6 + $0x6c] sm:$0xff]
        %v737 = vld [vmem:[#allocation6 + $0x74] sm:$0xf]
        %v738 = vld [vmem:[#allocation6 + $0x78] sm:$0xff]
        %v739 = vld [vmem:[#allocation6 + $0x80] sm:$0xf]
        %v740 = vld [vmem:[#allocation6 + $0x84] sm:$0xff]
        %v741 = vld [vmem:[#allocation6 + $0x8c] sm:$0xf]
        %v742 = vld [vmem:[#allocation6 + $0x90] sm:$0xff]
        %v743 = vld [vmem:[#allocation6 + $0x98] sm:$0xf]
        %v744 = vld [vmem:[#allocation6 + $0x9c] sm:$0xff]
        %v745 = vld [vmem:[#allocation6 + $0xa4] sm:$0xf]
        %v746 = vld [vmem:[#allocation6 + $0xa8] sm:$0xff]
        %v747 = vld [vmem:[#allocation6 + $0xb0] sm:$0xf]
        %v748 = vld [vmem:[#allocation6 + $0xb4] sm:$0xff]
        %v749 = vld [vmem:[#allocation6 + $0xbc] sm:$0xf]
        %v814 = vunpack.c.l.b16 %v654
        %v815 = vunpack.c.l.b16 %v655
        %v816 = vunpack.c.l.b16 %v656
        %v817 = vunpack.c.l.b16 %v657
        %v818 = vunpack.c.l.b16 %v658
        %v819 = vunpack.c.l.b16 %v659
        %v820 = vunpack.c.l.b16 %v660
        %v821 = vunpack.c.l.b16 %v661
        %v822 = vunpack.c.l.b16 %v662
        %v823 = vunpack.c.l.b16 %v663
        %v824 = vunpack.c.l.b16 %v664
        %v825 = vunpack.c.l.b16 %v665
        %v826 = vunpack.c.l.b16 %v666
        %v827 = vunpack.c.l.b16 %v667
        %v828 = vunpack.c.l.b16 %v668
        %v829 = vunpack.c.l.b16 %v669
        %v830 = vunpack.c.l.b16 %v670
        %v831 = vunpack.c.l.b16 %v671
        %v832 = vunpack.c.l.b16 %v672
        %v833 = vunpack.c.l.b16 %v673
        %v834 = vunpack.c.l.b16 %v674
        %v835 = vunpack.c.l.b16 %v675
        %v836 = vunpack.c.l.b16 %v676
        %v837 = vunpack.c.l.b16 %v677
        %v838 = vunpack.c.l.b16 %v678
        %v839 = vunpack.c.l.b16 %v679
        %v840 = vunpack.c.l.b16 %v680
        %v841 = vunpack.c.l.b16 %v681
        %v842 = vunpack.c.l.b16 %v682
        %v843 = vunpack.c.l.b16 %v683
        %v844 = vunpack.c.l.b16 %v684
        %v845 = vunpack.c.l.b16 %v685
        %v846 = vunpack.c.l.b16 %v686
        %v847 = vunpack.c.l.b16 %v687
        %v848 = vunpack.c.l.b16 %v688
        %v849 = vunpack.c.l.b16 %v689
        %v850 = vunpack.c.l.b16 %v690
        %v851 = vunpack.c.l.b16 %v691
        %v852 = vunpack.c.l.b16 %v692
        %v853 = vunpack.c.l.b16 %v693
        %v854 = vunpack.c.l.b16 %v694
        %v855 = vunpack.c.l.b16 %v695
        %v856 = vunpack.c.l.b16 %v696
        %v857 = vunpack.c.l.b16 %v697
        %v858 = vunpack.c.l.b16 %v698
        %v859 = vunpack.c.l.b16 %v699
        %v860 = vunpack.c.l.b16 %v700
        %v861 = vunpack.c.l.b16 %v701
        %v862 = vunpack.c.l.b16 %v702
        %v863 = vunpack.c.l.b16 %v703
        %v864 = vunpack.c.l.b16 %v704
        %v865 = vunpack.c.l.b16 %v705
        %v866 = vunpack.c.l.b16 %v706
        %v867 = vunpack.c.l.b16 %v707
        %v868 = vunpack.c.l.b16 %v708
        %v869 = vunpack.c.l.b16 %v709
        %v870 = vunpack.c.l.b16 %v710
        %v871 = vunpack.c.l.b16 %v711
        %v872 = vunpack.c.l.b16 %v712
        %v873 = vunpack.c.l.b16 %v713
        %v874 = vunpack.c.l.b16 %v714
        %v875 = vunpack.c.l.b16 %v715
        %v876 = vunpack.c.l.b16 %v716
        %v877 = vunpack.c.l.b16 %v717
        %v878 = vpack.c.b16 %v815, %v814
        %v879 = vpack.c.b16 %v817, %v816
        %v880 = vpack.c.b16 %v819, %v818
        %v881 = vpack.c.b16 %v821, %v820
        %v882 = vpack.c.b16 %v823, %v822
        %v883 = vpack.c.b16 %v825, %v824
        %v884 = vpack.c.b16 %v827, %v826
        %v885 = vpack.c.b16 %v829, %v828
        %v886 = vpack.c.b16 %v831, %v830
        %v887 = vpack.c.b16 %v833, %v832
        %v888 = vpack.c.b16 %v835, %v834
        %v889 = vpack.c.b16 %v837, %v836
        %v890 = vpack.c.b16 %v839, %v838
        %v891 = vpack.c.b16 %v841, %v840
        %v892 = vpack.c.b16 %v843, %v842
        %v893 = vpack.c.b16 %v845, %v844
        %v894 = vpack.c.b16 %v847, %v846
        %v895 = vpack.c.b16 %v849, %v848
        %v896 = vpack.c.b16 %v851, %v850
        %v897 = vpack.c.b16 %v853, %v852
        %v898 = vpack.c.b16 %v855, %v854
        %v899 = vpack.c.b16 %v857, %v856
        %v900 = vpack.c.b16 %v859, %v858
        %v901 = vpack.c.b16 %v861, %v860
        %v902 = vpack.c.b16 %v863, %v862
        %v903 = vpack.c.b16 %v865, %v864
        %v904 = vpack.c.b16 %v867, %v866
        %v905 = vpack.c.b16 %v869, %v868
        %v906 = vpack.c.b16 %v871, %v870
        %v907 = vpack.c.b16 %v873, %v872
        %v908 = vpack.c.b16 %v875, %v874
        %v909 = vpack.c.b16 %v877, %v876
        %v974 = vunpack.c.l.b16 %v718
        %v975 = vunpack.c.h.b16 %v718
        %v976 = vunpack.c.l.b16 %v719
        %v977 = vunpack.c.l.b16 %v720
        %v978 = vunpack.c.h.b16 %v720
        %v979 = vunpack.c.l.b16 %v721
        %v980 = vunpack.c.l.b16 %v722
        %v981 = vunpack.c.h.b16 %v722
        %v982 = vunpack.c.l.b16 %v723
        %v983 = vunpack.c.l.b16 %v724
        %v984 = vunpack.c.h.b16 %v724
        %v985 = vunpack.c.l.b16 %v725
        %v986 = vunpack.c.l.b16 %v726
        %v987 = vunpack.c.h.b16 %v726
        %v988 = vunpack.c.l.b16 %v727
        %v989 = vunpack.c.l.b16 %v728
        %v990 = vunpack.c.h.b16 %v728
        %v991 = vunpack.c.l.b16 %v729
        %v992 = vunpack.c.l.b16 %v730
        %v993 = vunpack.c.h.b16 %v730
        %v994 = vunpack.c.l.b16 %v731
        %v995 = vunpack.c.l.b16 %v732
        %v996 = vunpack.c.h.b16 %v732
        %v997 = vunpack.c.l.b16 %v733
        %v998 = vunpack.c.l.b16 %v734
        %v999 = vunpack.c.h.b16 %v734
        %v1000 = vunpack.c.l.b16 %v735
        %v1001 = vunpack.c.l.b16 %v736
        %v1002 = vunpack.c.h.b16 %v736
        %v1003 = vunpack.c.l.b16 %v737
        %v1004 = vunpack.c.l.b16 %v738
        %v1005 = vunpack.c.h.b16 %v738
        %v1006 = vunpack.c.l.b16 %v739
        %v1007 = vunpack.c.l.b16 %v740
        %v1008 = vunpack.c.h.b16 %v740
        %v1009 = vunpack.c.l.b16 %v741
        %v1010 = vunpack.c.l.b16 %v742
        %v1011 = vunpack.c.h.b16 %v742
        %v1012 = vunpack.c.l.b16 %v743
        %v1013 = vunpack.c.l.b16 %v744
        %v1014 = vunpack.c.h.b16 %v744
        %v1015 = vunpack.c.l.b16 %v745
        %v1016 = vunpack.c.l.b16 %v746
        %v1017 = vunpack.c.h.b16 %v746
        %v1018 = vunpack.c.l.b16 %v747
        %v1019 = vunpack.c.l.b16 %v748
        %v1020 = vunpack.c.h.b16 %v748
        %v1021 = vunpack.c.l.b16 %v749
        %v1022 = vpack.c.b16 %v977, %v974
        %v1023 = vpack.c.b16 %v978, %v975
        %v1024 = vpack.c.b16 %v979, %v976
        %v1025 = vpack.c.b16 %v983, %v980
        %v1026 = vpack.c.b16 %v984, %v981
        %v1027 = vpack.c.b16 %v985, %v982
        %v1028 = vpack.c.b16 %v989, %v986
        %v1029 = vpack.c.b16 %v990, %v987
        %v1030 = vpack.c.b16 %v991, %v988
        %v1031 = vpack.c.b16 %v995, %v992
        %v1032 = vpack.c.b16 %v996, %v993
        %v1033 = vpack.c.b16 %v997, %v994
        %v1034 = vpack.c.b16 %v1001, %v998
        %v1035 = vpack.c.b16 %v1002, %v999
        %v1036 = vpack.c.b16 %v1003, %v1000
        %v1037 = vpack.c.b16 %v1007, %v1004
        %v1038 = vpack.c.b16 %v1008, %v1005
        %v1039 = vpack.c.b16 %v1009, %v1006
        %v1040 = vpack.c.b16 %v1013, %v1010
        %v1041 = vpack.c.b16 %v1014, %v1011
        %v1042 = vpack.c.b16 %v1015, %v1012
        %v1043 = vpack.c.b16 %v1019, %v1016
        %v1044 = vpack.c.b16 %v1020, %v1017
        %v1045 = vpack.c.b16 %v1021, %v1018
        %1070 = vmatprep.subr.bf16.mxu0 %v1044
        %1071 = vmatpush1.bf16.msra.mxu0 %v1043
        %1072 = vmatprep.subr.bf16.mxu0 %v1041
        %1073 = vmatpush1.bf16.msra.mxu0 %v1040
        %1074 = vmatprep.subr.bf16.mxu0 %v1038
        %1075 = vmatpush1.bf16.msra.mxu0 %v1037
        %1076 = vmatprep.subr.bf16.mxu0 %v1035
        %1077 = vmatpush1.bf16.msra.mxu0 %v1034
        %1078 = vmatprep.subr.bf16.mxu0 %v1032
        %1079 = vmatpush1.bf16.msra.mxu0 %v1031
        %1080 = vmatprep.subr.bf16.mxu0 %v1029
        %1081 = vmatpush1.bf16.msra.mxu0 %v1028
        %1082 = vmatprep.subr.bf16.mxu0 %v1026
        %1083 = vmatpush1.bf16.msra.mxu0 %v1025
        %1084 = vmatprep.subr.bf16.mxu0 %v1023
        %1085 = vmatpush1.bf16.msra.mxu0 %v1022
        %1086 = vmatprep.subr.bf16.mxu0 0
        %1087 = vmatpush2.bf16.msra.mxu0 0
        %1088 = vmatprep.subr.bf16.mxu0 0
        %1089 = vmatpush2.bf16.msra.mxu0 0
        %1090 = vmatprep.subr.bf16.mxu0 0
        %1091 = vmatpush2.bf16.msra.mxu0 0
        %1092 = vmatprep.subr.bf16.mxu0 0
        %1093 = vmatpush2.bf16.msra.mxu0 0
        %1094 = vmatprep.subr.bf16.mxu0 0
        %1095 = vmatpush2.bf16.msra.mxu0 0
        %1096 = vmatprep.subr.bf16.mxu0 0
        %1097 = vmatpush2.bf16.msra.mxu0 0
        %1098 = vmatprep.subr.bf16.mxu0 0
        %1099 = vmatpush2.bf16.msra.mxu0 0
        %1100 = vmatprep.subr.bf16.mxu0 0
        %1101 = vmatpush2.bf16.msra.mxu0 0
        %1102 = vmatprep.mubr.bf16.mxu0 0
        %1103 = vmatmul.mubr.bf16.gmra.mxu0 %v878
        %v1104 = vpop.f32.mrf.mxu0
        %v1105 = vadd.f32 0.0, %v1104
        %v1106 = vpop.f32.mrf.mxu0
        %v1107 = vadd.f32 0.0, %v1106
        %v1108 = vpop.f32.mrf.mxu0
        %v1109 = vadd.f32 0.0, %v1108
        %v1110 = vpop.f32.mrf.mxu0
        %v1111 = vadd.f32 0.0, %v1110
        %1112 = vmatprep.mubr.bf16.mxu0 0
        %1113 = vmatmul.mubr.bf16.gmra.mxu0 %v879
        %v1114 = vpop.f32.mrf.mxu0
        %v1115 = vadd.f32 0.0, %v1114
        %v1116 = vpop.f32.mrf.mxu0
        %v1117 = vadd.f32 0.0, %v1116
        %v1118 = vpop.f32.mrf.mxu0
        %v1119 = vadd.f32 0.0, %v1118
        %v1120 = vpop.f32.mrf.mxu0
        %v1121 = vadd.f32 0.0, %v1120
        %1122 = vmatprep.mubr.bf16.mxu0 0
        %1123 = vmatmul.mubr.bf16.gmra.mxu0 %v880
        %v1124 = vpop.f32.mrf.mxu0
        %v1125 = vadd.f32 0.0, %v1124
        %v1126 = vpop.f32.mrf.mxu0
        %v1127 = vadd.f32 0.0, %v1126
        %v1128 = vpop.f32.mrf.mxu0
        %v1129 = vadd.f32 0.0, %v1128
        %v1130 = vpop.f32.mrf.mxu0
        %v1131 = vadd.f32 0.0, %v1130
        %1132 = vmatprep.mubr.bf16.mxu0 0
        %1133 = vmatmul.mubr.bf16.gmra.mxu0 %v881
        %v1134 = vpop.f32.mrf.mxu0
        %v1135 = vadd.f32 0.0, %v1134
        %v1136 = vpop.f32.mrf.mxu0
        %v1137 = vadd.f32 0.0, %v1136
        %v1138 = vpop.f32.mrf.mxu0
        %v1139 = vadd.f32 0.0, %v1138
        %v1140 = vpop.f32.mrf.mxu0
        %v1141 = vadd.f32 0.0, %v1140
        %1142 = vmatprep.mubr.bf16.mxu0 0
        %1143 = vmatmul.mubr.bf16.gmra.mxu0 %v882
        %v1144 = vpop.f32.mrf.mxu0
        %v1145 = vadd.f32 0.0, %v1144
        %v1146 = vpop.f32.mrf.mxu0
        %v1147 = vadd.f32 0.0, %v1146
        %v1148 = vpop.f32.mrf.mxu0
        %v1149 = vadd.f32 0.0, %v1148
        %v1150 = vpop.f32.mrf.mxu0
        %v1151 = vadd.f32 0.0, %v1150
        %1152 = vmatprep.mubr.bf16.mxu0 0
        %1153 = vmatmul.mubr.bf16.gmra.mxu0 %v883
        %v1154 = vpop.f32.mrf.mxu0
        %v1155 = vadd.f32 0.0, %v1154
        %v1156 = vpop.f32.mrf.mxu0
        %v1157 = vadd.f32 0.0, %v1156
        %v1158 = vpop.f32.mrf.mxu0
        %v1159 = vadd.f32 0.0, %v1158
        %v1160 = vpop.f32.mrf.mxu0
        %v1161 = vadd.f32 0.0, %v1160
        %1162 = vmatprep.mubr.bf16.mxu0 0
        %1163 = vmatmul.mubr.bf16.gmra.mxu0 %v884
        %v1164 = vpop.f32.mrf.mxu0
        %v1165 = vadd.f32 0.0, %v1164
        %v1166 = vpop.f32.mrf.mxu0
        %v1167 = vadd.f32 0.0, %v1166
        %v1168 = vpop.f32.mrf.mxu0
        %v1169 = vadd.f32 0.0, %v1168
        %v1170 = vpop.f32.mrf.mxu0
        %v1171 = vadd.f32 0.0, %v1170
        %1172 = vmatprep.mubr.bf16.mxu0 0
        %1173 = vmatmul.mubr.bf16.gmra.mxu0 %v885
        %v1174 = vpop.f32.mrf.mxu0
        %v1175 = vadd.f32 0.0, %v1174
        %v1176 = vpop.f32.mrf.mxu0
        %v1177 = vadd.f32 0.0, %v1176
        %v1178 = vpop.f32.mrf.mxu0
        %v1179 = vadd.f32 0.0, %v1178
        %v1180 = vpop.f32.mrf.mxu0
        %v1181 = vadd.f32 0.0, %v1180
        %1182 = vmatprep.mubr.bf16.mxu0 0
        %1183 = vmatmul.mubr.bf16.gmra.mxu0 %v886
        %v1184 = vpop.f32.mrf.mxu0
        %v1185 = vadd.f32 0.0, %v1184
        %v1186 = vpop.f32.mrf.mxu0
        %v1187 = vadd.f32 0.0, %v1186
        %v1188 = vpop.f32.mrf.mxu0
        %v1189 = vadd.f32 0.0, %v1188
        %v1190 = vpop.f32.mrf.mxu0
        %v1191 = vadd.f32 0.0, %v1190
        %1192 = vmatprep.mubr.bf16.mxu0 0
        %1193 = vmatmul.mubr.bf16.gmra.mxu0 %v887
        %v1194 = vpop.f32.mrf.mxu0
        %v1195 = vadd.f32 0.0, %v1194
        %v1196 = vpop.f32.mrf.mxu0
        %v1197 = vadd.f32 0.0, %v1196
        %v1198 = vpop.f32.mrf.mxu0
        %v1199 = vadd.f32 0.0, %v1198
        %v1200 = vpop.f32.mrf.mxu0
        %v1201 = vadd.f32 0.0, %v1200
        %1202 = vmatprep.mubr.bf16.mxu0 0
        %1203 = vmatmul.mubr.bf16.gmra.mxu0 %v888
        %v1204 = vpop.f32.mrf.mxu0
        %v1205 = vadd.f32 0.0, %v1204
        %v1206 = vpop.f32.mrf.mxu0
        %v1207 = vadd.f32 0.0, %v1206
        %v1208 = vpop.f32.mrf.mxu0
        %v1209 = vadd.f32 0.0, %v1208
        %v1210 = vpop.f32.mrf.mxu0
        %v1211 = vadd.f32 0.0, %v1210
        %1212 = vmatprep.mubr.bf16.mxu0 0
        %1213 = vmatmul.mubr.bf16.gmra.mxu0 %v889
        %v1214 = vpop.f32.mrf.mxu0
        %v1215 = vadd.f32 0.0, %v1214
        %v1216 = vpop.f32.mrf.mxu0
        %v1217 = vadd.f32 0.0, %v1216
        %v1218 = vpop.f32.mrf.mxu0
        %v1219 = vadd.f32 0.0, %v1218
        %v1220 = vpop.f32.mrf.mxu0
        %v1221 = vadd.f32 0.0, %v1220
        %1222 = vmatprep.mubr.bf16.mxu0 0
        %1223 = vmatmul.mubr.bf16.gmra.mxu0 %v890
        %v1224 = vpop.f32.mrf.mxu0
        %v1225 = vadd.f32 0.0, %v1224
        %v1226 = vpop.f32.mrf.mxu0
        %v1227 = vadd.f32 0.0, %v1226
        %v1228 = vpop.f32.mrf.mxu0
        %v1229 = vadd.f32 0.0, %v1228
        %v1230 = vpop.f32.mrf.mxu0
        %v1231 = vadd.f32 0.0, %v1230
        %1232 = vmatprep.mubr.bf16.mxu0 0
        %1233 = vmatmul.mubr.bf16.gmra.mxu0 %v891
        %v1234 = vpop.f32.mrf.mxu0
        %v1235 = vadd.f32 0.0, %v1234
        %v1236 = vpop.f32.mrf.mxu0
        %v1237 = vadd.f32 0.0, %v1236
        %v1238 = vpop.f32.mrf.mxu0
        %v1239 = vadd.f32 0.0, %v1238
        %v1240 = vpop.f32.mrf.mxu0
        %v1241 = vadd.f32 0.0, %v1240
        %1242 = vmatprep.mubr.bf16.mxu0 0
        %1243 = vmatmul.mubr.bf16.gmra.mxu0 %v892
        %v1244 = vpop.f32.mrf.mxu0
        %v1245 = vadd.f32 0.0, %v1244
        %v1246 = vpop.f32.mrf.mxu0
        %v1247 = vadd.f32 0.0, %v1246
        %v1248 = vpop.f32.mrf.mxu0
        %v1249 = vadd.f32 0.0, %v1248
        %v1250 = vpop.f32.mrf.mxu0
        %v1251 = vadd.f32 0.0, %v1250
        %1252 = vmatprep.mubr.bf16.mxu0 0
        %1253 = vmatmul.mubr.bf16.gmra.mxu0 %v893
        %v1254 = vpop.f32.mrf.mxu0
        %v1255 = vadd.f32 0.0, %v1254
        %v1256 = vpop.f32.mrf.mxu0
        %v1257 = vadd.f32 0.0, %v1256
        %v1258 = vpop.f32.mrf.mxu0
        %v1259 = vadd.f32 0.0, %v1258
        %v1260 = vpop.f32.mrf.mxu0
        %v1261 = vadd.f32 0.0, %v1260
        %1262 = vmatprep.mubr.bf16.mxu0 0
        %1263 = vmatmul.mubr.bf16.gmra.mxu0 %v894
        %v1264 = vpop.f32.mrf.mxu0
        %v1265 = vadd.f32 0.0, %v1264
        %v1266 = vpop.f32.mrf.mxu0
        %v1267 = vadd.f32 0.0, %v1266
        %v1268 = vpop.f32.mrf.mxu0
        %v1269 = vadd.f32 0.0, %v1268
        %v1270 = vpop.f32.mrf.mxu0
        %v1271 = vadd.f32 0.0, %v1270
        %1272 = vmatprep.mubr.bf16.mxu0 0
        %1273 = vmatmul.mubr.bf16.gmra.mxu0 %v895
        %v1274 = vpop.f32.mrf.mxu0
        %v1275 = vadd.f32 0.0, %v1274
        %v1276 = vpop.f32.mrf.mxu0
        %v1277 = vadd.f32 0.0, %v1276
        %v1278 = vpop.f32.mrf.mxu0
        %v1279 = vadd.f32 0.0, %v1278
        %v1280 = vpop.f32.mrf.mxu0
        %v1281 = vadd.f32 0.0, %v1280
        %1282 = vmatprep.mubr.bf16.mxu0 0
        %1283 = vmatmul.mubr.bf16.gmra.mxu0 %v896
        %v1284 = vpop.f32.mrf.mxu0
        %v1285 = vadd.f32 0.0, %v1284
        %v1286 = vpop.f32.mrf.mxu0
        %v1287 = vadd.f32 0.0, %v1286
        %v1288 = vpop.f32.mrf.mxu0
        %v1289 = vadd.f32 0.0, %v1288
        %v1290 = vpop.f32.mrf.mxu0
        %v1291 = vadd.f32 0.0, %v1290
        %1292 = vmatprep.mubr.bf16.mxu0 0
        %1293 = vmatmul.mubr.bf16.gmra.mxu0 %v897
        %v1294 = vpop.f32.mrf.mxu0
        %v1295 = vadd.f32 0.0, %v1294
        %v1296 = vpop.f32.mrf.mxu0
        %v1297 = vadd.f32 0.0, %v1296
        %v1298 = vpop.f32.mrf.mxu0
        %v1299 = vadd.f32 0.0, %v1298
        %v1300 = vpop.f32.mrf.mxu0
        %v1301 = vadd.f32 0.0, %v1300
        %1302 = vmatprep.mubr.bf16.mxu0 0
        %1303 = vmatmul.mubr.bf16.gmra.mxu0 %v898
        %v1304 = vpop.f32.mrf.mxu0
        %v1305 = vadd.f32 0.0, %v1304
        %v1306 = vpop.f32.mrf.mxu0
        %v1307 = vadd.f32 0.0, %v1306
        %v1308 = vpop.f32.mrf.mxu0
        %v1309 = vadd.f32 0.0, %v1308
        %v1310 = vpop.f32.mrf.mxu0
        %v1311 = vadd.f32 0.0, %v1310
        %1312 = vmatprep.mubr.bf16.mxu0 0
        %1313 = vmatmul.mubr.bf16.gmra.mxu0 %v899
        %v1314 = vpop.f32.mrf.mxu0
        %v1315 = vadd.f32 0.0, %v1314
        %v1316 = vpop.f32.mrf.mxu0
        %v1317 = vadd.f32 0.0, %v1316
        %v1318 = vpop.f32.mrf.mxu0
        %v1319 = vadd.f32 0.0, %v1318
        %v1320 = vpop.f32.mrf.mxu0
        %v1321 = vadd.f32 0.0, %v1320
        %1322 = vmatprep.mubr.bf16.mxu0 0
        %1323 = vmatmul.mubr.bf16.gmra.mxu0 %v900
        %v1324 = vpop.f32.mrf.mxu0
        %v1325 = vadd.f32 0.0, %v1324
        %v1326 = vpop.f32.mrf.mxu0
        %v1327 = vadd.f32 0.0, %v1326
        %v1328 = vpop.f32.mrf.mxu0
        %v1329 = vadd.f32 0.0, %v1328
        %v1330 = vpop.f32.mrf.mxu0
        %v1331 = vadd.f32 0.0, %v1330
        %1332 = vmatprep.mubr.bf16.mxu0 0
        %1333 = vmatmul.mubr.bf16.gmra.mxu0 %v901
        %v1334 = vpop.f32.mrf.mxu0
        %v1335 = vadd.f32 0.0, %v1334
        %v1336 = vpop.f32.mrf.mxu0
        %v1337 = vadd.f32 0.0, %v1336
        %v1338 = vpop.f32.mrf.mxu0
        %v1339 = vadd.f32 0.0, %v1338
        %v1340 = vpop.f32.mrf.mxu0
        %v1341 = vadd.f32 0.0, %v1340
        %1342 = vmatprep.mubr.bf16.mxu0 0
        %1343 = vmatmul.mubr.bf16.gmra.mxu0 %v902
        %v1344 = vpop.f32.mrf.mxu0
        %v1345 = vadd.f32 0.0, %v1344
        %v1346 = vpop.f32.mrf.mxu0
        %v1347 = vadd.f32 0.0, %v1346
        %v1348 = vpop.f32.mrf.mxu0
        %v1349 = vadd.f32 0.0, %v1348
        %v1350 = vpop.f32.mrf.mxu0
        %v1351 = vadd.f32 0.0, %v1350
        %1352 = vmatprep.mubr.bf16.mxu0 0
        %1353 = vmatmul.mubr.bf16.gmra.mxu0 %v903
        %v1354 = vpop.f32.mrf.mxu0
        %v1355 = vadd.f32 0.0, %v1354
        %v1356 = vpop.f32.mrf.mxu0
        %v1357 = vadd.f32 0.0, %v1356
        %v1358 = vpop.f32.mrf.mxu0
        %v1359 = vadd.f32 0.0, %v1358
        %v1360 = vpop.f32.mrf.mxu0
        %v1361 = vadd.f32 0.0, %v1360
        %1362 = vmatprep.mubr.bf16.mxu0 0
        %1363 = vmatmul.mubr.bf16.gmra.mxu0 %v904
        %v1364 = vpop.f32.mrf.mxu0
        %v1365 = vadd.f32 0.0, %v1364
        %v1366 = vpop.f32.mrf.mxu0
        %v1367 = vadd.f32 0.0, %v1366
        %v1368 = vpop.f32.mrf.mxu0
        %v1369 = vadd.f32 0.0, %v1368
        %v1370 = vpop.f32.mrf.mxu0
        %v1371 = vadd.f32 0.0, %v1370
        %1372 = vmatprep.mubr.bf16.mxu0 0
        %1373 = vmatmul.mubr.bf16.gmra.mxu0 %v905
        %v1374 = vpop.f32.mrf.mxu0
        %v1375 = vadd.f32 0.0, %v1374
        %v1376 = vpop.f32.mrf.mxu0
        %v1377 = vadd.f32 0.0, %v1376
        %v1378 = vpop.f32.mrf.mxu0
        %v1379 = vadd.f32 0.0, %v1378
        %v1380 = vpop.f32.mrf.mxu0
        %v1381 = vadd.f32 0.0, %v1380
        %1382 = vmatprep.mubr.bf16.mxu0 0
        %1383 = vmatmul.mubr.bf16.gmra.mxu0 %v906
        %v1384 = vpop.f32.mrf.mxu0
        %v1385 = vadd.f32 0.0, %v1384
        %v1386 = vpop.f32.mrf.mxu0
        %v1387 = vadd.f32 0.0, %v1386
        %v1388 = vpop.f32.mrf.mxu0
        %v1389 = vadd.f32 0.0, %v1388
        %v1390 = vpop.f32.mrf.mxu0
        %v1391 = vadd.f32 0.0, %v1390
        %1392 = vmatprep.mubr.bf16.mxu0 0
        %1393 = vmatmul.mubr.bf16.gmra.mxu0 %v907
        %v1394 = vpop.f32.mrf.mxu0
        %v1395 = vadd.f32 0.0, %v1394
        %v1396 = vpop.f32.mrf.mxu0
        %v1397 = vadd.f32 0.0, %v1396
        %v1398 = vpop.f32.mrf.mxu0
        %v1399 = vadd.f32 0.0, %v1398
        %v1400 = vpop.f32.mrf.mxu0
        %v1401 = vadd.f32 0.0, %v1400
        %1402 = vmatprep.mubr.bf16.mxu0 0
        %1403 = vmatmul.mubr.bf16.gmra.mxu0 %v908
        %v1404 = vpop.f32.mrf.mxu0
        %v1405 = vadd.f32 0.0, %v1404
        %v1406 = vpop.f32.mrf.mxu0
        %v1407 = vadd.f32 0.0, %v1406
        %v1408 = vpop.f32.mrf.mxu0
        %v1409 = vadd.f32 0.0, %v1408
        %v1410 = vpop.f32.mrf.mxu0
        %v1411 = vadd.f32 0.0, %v1410
        %1412 = vmatprep.mubr.bf16.mxu0 0
        %1413 = vmatmul.mubr.bf16.gmra.mxu0 %v909
        %v1414 = vpop.f32.mrf.mxu0
        %v1415 = vadd.f32 0.0, %v1414
        %v1416 = vpop.f32.mrf.mxu0
        %v1417 = vadd.f32 0.0, %v1416
        %v1418 = vpop.f32.mrf.mxu0
        %v1419 = vadd.f32 0.0, %v1418
        %v1420 = vpop.f32.mrf.mxu0
        %v1421 = vadd.f32 0.0, %v1420
        %1422 = vdwg.mxu0
        %1423 = vmatprep.subr.bf16.mxu0 0
        %1424 = vmatpush1.bf16.msra.mxu0 %v1045
        %1425 = vmatprep.subr.bf16.mxu0 0
        %1426 = vmatpush1.bf16.msra.mxu0 %v1042
        %1427 = vmatprep.subr.bf16.mxu0 0
        %1428 = vmatpush1.bf16.msra.mxu0 %v1039
        %1429 = vmatprep.subr.bf16.mxu0 0
        %1430 = vmatpush1.bf16.msra.mxu0 %v1036
        %1431 = vmatprep.subr.bf16.mxu0 0
        %1432 = vmatpush1.bf16.msra.mxu0 %v1033
        %1433 = vmatprep.subr.bf16.mxu0 0
        %1434 = vmatpush1.bf16.msra.mxu0 %v1030
        %1435 = vmatprep.subr.bf16.mxu0 0
        %1436 = vmatpush1.bf16.msra.mxu0 %v1027
        %1437 = vmatprep.subr.bf16.mxu0 0
        %1438 = vmatpush1.bf16.msra.mxu0 %v1024
        %1439 = vmatprep.subr.bf16.mxu0 0
        %1440 = vmatpush2.bf16.msra.mxu0 0
        %1441 = vmatprep.subr.bf16.mxu0 0
        %1442 = vmatpush2.bf16.msra.mxu0 0
        %1443 = vmatprep.subr.bf16.mxu0 0
        %1444 = vmatpush2.bf16.msra.mxu0 0
        %1445 = vmatprep.subr.bf16.mxu0 0
        %1446 = vmatpush2.bf16.msra.mxu0 0
        %1447 = vmatprep.subr.bf16.mxu0 0
        %1448 = vmatpush2.bf16.msra.mxu0 0
        %1449 = vmatprep.subr.bf16.mxu0 0
        %1450 = vmatpush2.bf16.msra.mxu0 0
        %1451 = vmatprep.subr.bf16.mxu0 0
        %1452 = vmatpush2.bf16.msra.mxu0 0
        %1453 = vmatprep.subr.bf16.mxu0 0
        %1454 = vmatpush2.bf16.msra.mxu0 0
        %1455 = vmatprep.mubr.bf16.mxu0 0
        %1456 = vmatmul.mubr.bf16.gmra.mxu0 %v878
        %v1457 = vpop.f32.mrf.mxu0
        %v1458 = vadd.f32 0.0, %v1457
        %v1459 = vpop.f32.mrf.mxu0
        %v1460 = vpop.f32.mrf.mxu0
        %v1461 = vadd.f32 0.0, %v1460
        %v1462 = vpop.f32.mrf.mxu0
        %1463 = vmatprep.mubr.bf16.mxu0 0
        %1464 = vmatmul.mubr.bf16.gmra.mxu0 %v879
        %v1465 = vpop.f32.mrf.mxu0
        %v1466 = vadd.f32 0.0, %v1465
        %v1467 = vpop.f32.mrf.mxu0
        %v1468 = vpop.f32.mrf.mxu0
        %v1469 = vadd.f32 0.0, %v1468
        %v1470 = vpop.f32.mrf.mxu0
        %1471 = vmatprep.mubr.bf16.mxu0 0
        %1472 = vmatmul.mubr.bf16.gmra.mxu0 %v880
        %v1473 = vpop.f32.mrf.mxu0
        %v1474 = vadd.f32 0.0, %v1473
        %v1475 = vpop.f32.mrf.mxu0
        %v1476 = vpop.f32.mrf.mxu0
        %v1477 = vadd.f32 0.0, %v1476
        %v1478 = vpop.f32.mrf.mxu0
        %1479 = vmatprep.mubr.bf16.mxu0 0
        %1480 = vmatmul.mubr.bf16.gmra.mxu0 %v881
        %v1481 = vpop.f32.mrf.mxu0
        %v1482 = vadd.f32 0.0, %v1481
        %v1483 = vpop.f32.mrf.mxu0
        %v1484 = vpop.f32.mrf.mxu0
        %v1485 = vadd.f32 0.0, %v1484
        %v1486 = vpop.f32.mrf.mxu0
        %1487 = vmatprep.mubr.bf16.mxu0 0
        %1488 = vmatmul.mubr.bf16.gmra.mxu0 %v882
        %v1489 = vpop.f32.mrf.mxu0
        %v1490 = vadd.f32 0.0, %v1489
        %v1491 = vpop.f32.mrf.mxu0
        %v1492 = vpop.f32.mrf.mxu0
        %v1493 = vadd.f32 0.0, %v1492
        %v1494 = vpop.f32.mrf.mxu0
        %1495 = vmatprep.mubr.bf16.mxu0 0
        %1496 = vmatmul.mubr.bf16.gmra.mxu0 %v883
        %v1497 = vpop.f32.mrf.mxu0
        %v1498 = vadd.f32 0.0, %v1497
        %v1499 = vpop.f32.mrf.mxu0
        %v1500 = vpop.f32.mrf.mxu0
        %v1501 = vadd.f32 0.0, %v1500
        %v1502 = vpop.f32.mrf.mxu0
        %1503 = vmatprep.mubr.bf16.mxu0 0
        %1504 = vmatmul.mubr.bf16.gmra.mxu0 %v884
        %v1505 = vpop.f32.mrf.mxu0
        %v1506 = vadd.f32 0.0, %v1505
        %v1507 = vpop.f32.mrf.mxu0
        %v1508 = vpop.f32.mrf.mxu0
        %v1509 = vadd.f32 0.0, %v1508
        %v1510 = vpop.f32.mrf.mxu0
        %1511 = vmatprep.mubr.bf16.mxu0 0
        %1512 = vmatmul.mubr.bf16.gmra.mxu0 %v885
        %v1513 = vpop.f32.mrf.mxu0
        %v1514 = vadd.f32 0.0, %v1513
        %v1515 = vpop.f32.mrf.mxu0
        %v1516 = vpop.f32.mrf.mxu0
        %v1517 = vadd.f32 0.0, %v1516
        %v1518 = vpop.f32.mrf.mxu0
        %1519 = vmatprep.mubr.bf16.mxu0 0
        %1520 = vmatmul.mubr.bf16.gmra.mxu0 %v886
        %v1521 = vpop.f32.mrf.mxu0
        %v1522 = vadd.f32 0.0, %v1521
        %v1523 = vpop.f32.mrf.mxu0
        %v1524 = vpop.f32.mrf.mxu0
        %v1525 = vadd.f32 0.0, %v1524
        %v1526 = vpop.f32.mrf.mxu0
        %1527 = vmatprep.mubr.bf16.mxu0 0
        %1528 = vmatmul.mubr.bf16.gmra.mxu0 %v887
        %v1529 = vpop.f32.mrf.mxu0
        %v1530 = vadd.f32 0.0, %v1529
        %v1531 = vpop.f32.mrf.mxu0
        %v1532 = vpop.f32.mrf.mxu0
        %v1533 = vadd.f32 0.0, %v1532
        %v1534 = vpop.f32.mrf.mxu0
        %1535 = vmatprep.mubr.bf16.mxu0 0
        %1536 = vmatmul.mubr.bf16.gmra.mxu0 %v888
        %v1537 = vpop.f32.mrf.mxu0
        %v1538 = vadd.f32 0.0, %v1537
        %v1539 = vpop.f32.mrf.mxu0
        %v1540 = vpop.f32.mrf.mxu0
        %v1541 = vadd.f32 0.0, %v1540
        %v1542 = vpop.f32.mrf.mxu0
        %1543 = vmatprep.mubr.bf16.mxu0 0
        %1544 = vmatmul.mubr.bf16.gmra.mxu0 %v889
        %v1545 = vpop.f32.mrf.mxu0
        %v1546 = vadd.f32 0.0, %v1545
        %v1547 = vpop.f32.mrf.mxu0
        %v1548 = vpop.f32.mrf.mxu0
        %v1549 = vadd.f32 0.0, %v1548
        %v1550 = vpop.f32.mrf.mxu0
        %1551 = vmatprep.mubr.bf16.mxu0 0
        %1552 = vmatmul.mubr.bf16.gmra.mxu0 %v890
        %v1553 = vpop.f32.mrf.mxu0
        %v1554 = vadd.f32 0.0, %v1553
        %v1555 = vpop.f32.mrf.mxu0
        %v1556 = vpop.f32.mrf.mxu0
        %v1557 = vadd.f32 0.0, %v1556
        %v1558 = vpop.f32.mrf.mxu0
        %1559 = vmatprep.mubr.bf16.mxu0 0
        %1560 = vmatmul.mubr.bf16.gmra.mxu0 %v891
        %v1561 = vpop.f32.mrf.mxu0
        %v1562 = vadd.f32 0.0, %v1561
        %v1563 = vpop.f32.mrf.mxu0
        %v1564 = vpop.f32.mrf.mxu0
        %v1565 = vadd.f32 0.0, %v1564
        %v1566 = vpop.f32.mrf.mxu0
        %1567 = vmatprep.mubr.bf16.mxu0 0
        %1568 = vmatmul.mubr.bf16.gmra.mxu0 %v892
        %v1569 = vpop.f32.mrf.mxu0
        %v1570 = vadd.f32 0.0, %v1569
        %v1571 = vpop.f32.mrf.mxu0
        %v1572 = vpop.f32.mrf.mxu0
        %v1573 = vadd.f32 0.0, %v1572
        %v1574 = vpop.f32.mrf.mxu0
        %1575 = vmatprep.mubr.bf16.mxu0 0
        %1576 = vmatmul.mubr.bf16.gmra.mxu0 %v893
        %v1577 = vpop.f32.mrf.mxu0
        %v1578 = vadd.f32 0.0, %v1577
        %v1579 = vpop.f32.mrf.mxu0
        %v1580 = vpop.f32.mrf.mxu0
        %v1581 = vadd.f32 0.0, %v1580
        %v1582 = vpop.f32.mrf.mxu0
        %1583 = vmatprep.mubr.bf16.mxu0 0
        %1584 = vmatmul.mubr.bf16.gmra.mxu0 %v894
        %v1585 = vpop.f32.mrf.mxu0
        %v1586 = vadd.f32 0.0, %v1585
        %v1587 = vpop.f32.mrf.mxu0
        %v1588 = vpop.f32.mrf.mxu0
        %v1589 = vadd.f32 0.0, %v1588
        %v1590 = vpop.f32.mrf.mxu0
        %1591 = vmatprep.mubr.bf16.mxu0 0
        %1592 = vmatmul.mubr.bf16.gmra.mxu0 %v895
        %v1593 = vpop.f32.mrf.mxu0
        %v1594 = vadd.f32 0.0, %v1593
        %v1595 = vpop.f32.mrf.mxu0
        %v1596 = vpop.f32.mrf.mxu0
        %v1597 = vadd.f32 0.0, %v1596
        %v1598 = vpop.f32.mrf.mxu0
        %1599 = vmatprep.mubr.bf16.mxu0 0
        %1600 = vmatmul.mubr.bf16.gmra.mxu0 %v896
        %v1601 = vpop.f32.mrf.mxu0
        %v1602 = vadd.f32 0.0, %v1601
        %v1603 = vpop.f32.mrf.mxu0
        %v1604 = vpop.f32.mrf.mxu0
        %v1605 = vadd.f32 0.0, %v1604
        %v1606 = vpop.f32.mrf.mxu0
        %1607 = vmatprep.mubr.bf16.mxu0 0
        %1608 = vmatmul.mubr.bf16.gmra.mxu0 %v897
        %v1609 = vpop.f32.mrf.mxu0
        %v1610 = vadd.f32 0.0, %v1609
        %v1611 = vpop.f32.mrf.mxu0
        %v1612 = vpop.f32.mrf.mxu0
        %v1613 = vadd.f32 0.0, %v1612
        %v1614 = vpop.f32.mrf.mxu0
        %1615 = vmatprep.mubr.bf16.mxu0 0
        %1616 = vmatmul.mubr.bf16.gmra.mxu0 %v898
        %v1617 = vpop.f32.mrf.mxu0
        %v1618 = vadd.f32 0.0, %v1617
        %v1619 = vpop.f32.mrf.mxu0
        %v1620 = vpop.f32.mrf.mxu0
        %v1621 = vadd.f32 0.0, %v1620
        %v1622 = vpop.f32.mrf.mxu0
        %1623 = vmatprep.mubr.bf16.mxu0 0
        %1624 = vmatmul.mubr.bf16.gmra.mxu0 %v899
        %v1625 = vpop.f32.mrf.mxu0
        %v1626 = vadd.f32 0.0, %v1625
        %v1627 = vpop.f32.mrf.mxu0
        %v1628 = vpop.f32.mrf.mxu0
        %v1629 = vadd.f32 0.0, %v1628
        %v1630 = vpop.f32.mrf.mxu0
        %1631 = vmatprep.mubr.bf16.mxu0 0
        %1632 = vmatmul.mubr.bf16.gmra.mxu0 %v900
        %v1633 = vpop.f32.mrf.mxu0
        %v1634 = vadd.f32 0.0, %v1633
        %v1635 = vpop.f32.mrf.mxu0
        %v1636 = vpop.f32.mrf.mxu0
        %v1637 = vadd.f32 0.0, %v1636
        %v1638 = vpop.f32.mrf.mxu0
        %1639 = vmatprep.mubr.bf16.mxu0 0
        %1640 = vmatmul.mubr.bf16.gmra.mxu0 %v901
        %v1641 = vpop.f32.mrf.mxu0
        %v1642 = vadd.f32 0.0, %v1641
        %v1643 = vpop.f32.mrf.mxu0
        %v1644 = vpop.f32.mrf.mxu0
        %v1645 = vadd.f32 0.0, %v1644
        %v1646 = vpop.f32.mrf.mxu0
        %1647 = vmatprep.mubr.bf16.mxu0 0
        %1648 = vmatmul.mubr.bf16.gmra.mxu0 %v902
        %v1649 = vpop.f32.mrf.mxu0
        %v1650 = vadd.f32 0.0, %v1649
        %v1651 = vpop.f32.mrf.mxu0
        %v1652 = vpop.f32.mrf.mxu0
        %v1653 = vadd.f32 0.0, %v1652
        %v1654 = vpop.f32.mrf.mxu0
        %1655 = vmatprep.mubr.bf16.mxu0 0
        %1656 = vmatmul.mubr.bf16.gmra.mxu0 %v903
        %v1657 = vpop.f32.mrf.mxu0
        %v1658 = vadd.f32 0.0, %v1657
        %v1659 = vpop.f32.mrf.mxu0
        %v1660 = vpop.f32.mrf.mxu0
        %v1661 = vadd.f32 0.0, %v1660
        %v1662 = vpop.f32.mrf.mxu0
        %1663 = vmatprep.mubr.bf16.mxu0 0
        %1664 = vmatmul.mubr.bf16.gmra.mxu0 %v904
        %v1665 = vpop.f32.mrf.mxu0
        %v1666 = vadd.f32 0.0, %v1665
        %v1667 = vpop.f32.mrf.mxu0
        %v1668 = vpop.f32.mrf.mxu0
        %v1669 = vadd.f32 0.0, %v1668
        %v1670 = vpop.f32.mrf.mxu0
        %1671 = vmatprep.mubr.bf16.mxu0 0
        %1672 = vmatmul.mubr.bf16.gmra.mxu0 %v905
        %v1673 = vpop.f32.mrf.mxu0
        %v1674 = vadd.f32 0.0, %v1673
        %v1675 = vpop.f32.mrf.mxu0
        %v1676 = vpop.f32.mrf.mxu0
        %v1677 = vadd.f32 0.0, %v1676
        %v1678 = vpop.f32.mrf.mxu0
        %1679 = vmatprep.mubr.bf16.mxu0 0
        %1680 = vmatmul.mubr.bf16.gmra.mxu0 %v906
        %v1681 = vpop.f32.mrf.mxu0
        %v1682 = vadd.f32 0.0, %v1681
        %v1683 = vpop.f32.mrf.mxu0
        %v1684 = vpop.f32.mrf.mxu0
        %v1685 = vadd.f32 0.0, %v1684
        %v1686 = vpop.f32.mrf.mxu0
        %1687 = vmatprep.mubr.bf16.mxu0 0
        %1688 = vmatmul.mubr.bf16.gmra.mxu0 %v907
        %v1689 = vpop.f32.mrf.mxu0
        %v1690 = vadd.f32 0.0, %v1689
        %v1691 = vpop.f32.mrf.mxu0
        %v1692 = vpop.f32.mrf.mxu0
        %v1693 = vadd.f32 0.0, %v1692
        %v1694 = vpop.f32.mrf.mxu0
        %1695 = vmatprep.mubr.bf16.mxu0 0
        %1696 = vmatmul.mubr.bf16.gmra.mxu0 %v908
        %v1697 = vpop.f32.mrf.mxu0
        %v1698 = vadd.f32 0.0, %v1697
        %v1699 = vpop.f32.mrf.mxu0
        %v1700 = vpop.f32.mrf.mxu0
        %v1701 = vadd.f32 0.0, %v1700
        %v1702 = vpop.f32.mrf.mxu0
        %1703 = vmatprep.mubr.bf16.mxu0 0
        %1704 = vmatmul.mubr.bf16.gmra.mxu0 %v909
        %v1705 = vpop.f32.mrf.mxu0
        %v1706 = vadd.f32 0.0, %v1705
        %v1707 = vpop.f32.mrf.mxu0
        %v1708 = vpop.f32.mrf.mxu0
        %v1709 = vadd.f32 0.0, %v1708
        %v1710 = vpop.f32.mrf.mxu0
        %1711 = vdwg.mxu0
        %v1712 = vadd.f32 %v462, %v1105
        %v1713 = vadd.f32 %v463, %v1107
        %v1714 = vadd.f32 %v464, %v1458
        %v1715 = vadd.f32 %v465, %v1109
        %v1716 = vadd.f32 %v466, %v1111
        %v1717 = vadd.f32 %v467, %v1461
        %v1718 = vadd.f32 %v468, %v1115
        %v1719 = vadd.f32 %v469, %v1117
        %v1720 = vadd.f32 %v470, %v1466
        %v1721 = vadd.f32 %v471, %v1119
        %v1722 = vadd.f32 %v472, %v1121
        %v1723 = vadd.f32 %v473, %v1469
        %v1724 = vadd.f32 %v474, %v1125
        %v1725 = vadd.f32 %v475, %v1127
        %v1726 = vadd.f32 %v476, %v1474
        %v1727 = vadd.f32 %v477, %v1129
        %v1728 = vadd.f32 %v478, %v1131
        %v1729 = vadd.f32 %v479, %v1477
        %v1730 = vadd.f32 %v480, %v1135
        %v1731 = vadd.f32 %v481, %v1137
        %v1732 = vadd.f32 %v482, %v1482
        %v1733 = vadd.f32 %v483, %v1139
        %v1734 = vadd.f32 %v484, %v1141
        %v1735 = vadd.f32 %v485, %v1485
        %v1736 = vadd.f32 %v486, %v1145
        %v1737 = vadd.f32 %v487, %v1147
        %v1738 = vadd.f32 %v488, %v1490
        %v1739 = vadd.f32 %v489, %v1149
        %v1740 = vadd.f32 %v490, %v1151
        %v1741 = vadd.f32 %v491, %v1493
        %v1742 = vadd.f32 %v492, %v1155
        %v1743 = vadd.f32 %v493, %v1157
        %v1744 = vadd.f32 %v494, %v1498
        %v1745 = vadd.f32 %v495, %v1159
        %v1746 = vadd.f32 %v496, %v1161
        %v1747 = vadd.f32 %v497, %v1501
        %v1748 = vadd.f32 %v498, %v1165
        %v1749 = vadd.f32 %v499, %v1167
        %v1750 = vadd.f32 %v500, %v1506
        %v1751 = vadd.f32 %v501, %v1169
        %v1752 = vadd.f32 %v502, %v1171
        %v1753 = vadd.f32 %v503, %v1509
        %v1754 = vadd.f32 %v504, %v1175
        %v1755 = vadd.f32 %v505, %v1177
        %v1756 = vadd.f32 %v506, %v1514
        %v1757 = vadd.f32 %v507, %v1179
        %v1758 = vadd.f32 %v508, %v1181
        %v1759 = vadd.f32 %v509, %v1517
        %v1760 = vadd.f32 %v510, %v1185
        %v1761 = vadd.f32 %v511, %v1187
        %v1762 = vadd.f32 %v512, %v1522
        %v1763 = vadd.f32 %v513, %v1189
        %v1764 = vadd.f32 %v514, %v1191
        %v1765 = vadd.f32 %v515, %v1525
        %v1766 = vadd.f32 %v516, %v1195
        %v1767 = vadd.f32 %v517, %v1197
        %v1768 = vadd.f32 %v518, %v1530
        %v1769 = vadd.f32 %v519, %v1199
        %v1770 = vadd.f32 %v520, %v1201
        %v1771 = vadd.f32 %v521, %v1533
        %v1772 = vadd.f32 %v522, %v1205
        %v1773 = vadd.f32 %v523, %v1207
        %v1774 = vadd.f32 %v524, %v1538
        %v1775 = vadd.f32 %v525, %v1209
        %v1776 = vadd.f32 %v526, %v1211
        %v1777 = vadd.f32 %v527, %v1541
        %v1778 = vadd.f32 %v528, %v1215
        %v1779 = vadd.f32 %v529, %v1217
        %v1780 = vadd.f32 %v530, %v1546
        %v1781 = vadd.f32 %v531, %v1219
        %v1782 = vadd.f32 %v532, %v1221
        %v1783 = vadd.f32 %v533, %v1549
        %v1784 = vadd.f32 %v534, %v1225
        %v1785 = vadd.f32 %v535, %v1227
        %v1786 = vadd.f32 %v536, %v1554
        %v1787 = vadd.f32 %v537, %v1229
        %v1788 = vadd.f32 %v538, %v1231
        %v1789 = vadd.f32 %v539, %v1557
        %v1790 = vadd.f32 %v540, %v1235
        %v1791 = vadd.f32 %v541, %v1237
        %v1792 = vadd.f32 %v542, %v1562
        %v1793 = vadd.f32 %v543, %v1239
        %v1794 = vadd.f32 %v544, %v1241
        %v1795 = vadd.f32 %v545, %v1565
        %v1796 = vadd.f32 %v546, %v1245
        %v1797 = vadd.f32 %v547, %v1247
        %v1798 = vadd.f32 %v548, %v1570
        %v1799 = vadd.f32 %v549, %v1249
        %v1800 = vadd.f32 %v550, %v1251
        %v1801 = vadd.f32 %v551, %v1573
        %v1802 = vadd.f32 %v552, %v1255
        %v1803 = vadd.f32 %v553, %v1257
        %v1804 = vadd.f32 %v554, %v1578
        %v1805 = vadd.f32 %v555, %v1259
        %v1806 = vadd.f32 %v556, %v1261
        %v1807 = vadd.f32 %v557, %v1581
        %v1808 = vadd.f32 %v558, %v1265
        %v1809 = vadd.f32 %v559, %v1267
        %v1810 = vadd.f32 %v560, %v1586
        %v1811 = vadd.f32 %v561, %v1269
        %v1812 = vadd.f32 %v562, %v1271
        %v1813 = vadd.f32 %v563, %v1589
        %v1814 = vadd.f32 %v564, %v1275
        %v1815 = vadd.f32 %v565, %v1277
        %v1816 = vadd.f32 %v566, %v1594
        %v1817 = vadd.f32 %v567, %v1279
        %v1818 = vadd.f32 %v568, %v1281
        %v1819 = vadd.f32 %v569, %v1597
        %v1820 = vadd.f32 %v570, %v1285
        %v1821 = vadd.f32 %v571, %v1287
        %v1822 = vadd.f32 %v572, %v1602
        %v1823 = vadd.f32 %v573, %v1289
        %v1824 = vadd.f32 %v574, %v1291
        %v1825 = vadd.f32 %v575, %v1605
        %v1826 = vadd.f32 %v576, %v1295
        %v1827 = vadd.f32 %v577, %v1297
        %v1828 = vadd.f32 %v578, %v1610
        %v1829 = vadd.f32 %v579, %v1299
        %v1830 = vadd.f32 %v580, %v1301
        %v1831 = vadd.f32 %v581, %v1613
        %v1832 = vadd.f32 %v582, %v1305
        %v1833 = vadd.f32 %v583, %v1307
        %v1834 = vadd.f32 %v584, %v1618
        %v1835 = vadd.f32 %v585, %v1309
        %v1836 = vadd.f32 %v586, %v1311
        %v1837 = vadd.f32 %v587, %v1621
        %v1838 = vadd.f32 %v588, %v1315
        %v1839 = vadd.f32 %v589, %v1317
        %v1840 = vadd.f32 %v590, %v1626
        %v1841 = vadd.f32 %v591, %v1319
        %v1842 = vadd.f32 %v592, %v1321
        %v1843 = vadd.f32 %v593, %v1629
        %v1844 = vadd.f32 %v594, %v1325
        %v1845 = vadd.f32 %v595, %v1327
        %v1846 = vadd.f32 %v596, %v1634
        %v1847 = vadd.f32 %v597, %v1329
        %v1848 = vadd.f32 %v598, %v1331
        %v1849 = vadd.f32 %v599, %v1637
        %v1850 = vadd.f32 %v600, %v1335
        %v1851 = vadd.f32 %v601, %v1337
        %v1852 = vadd.f32 %v602, %v1642
        %v1853 = vadd.f32 %v603, %v1339
        %v1854 = vadd.f32 %v604, %v1341
        %v1855 = vadd.f32 %v605, %v1645
        %v1856 = vadd.f32 %v606, %v1345
        %v1857 = vadd.f32 %v607, %v1347
        %v1858 = vadd.f32 %v608, %v1650
        %v1859 = vadd.f32 %v609, %v1349
        %v1860 = vadd.f32 %v610, %v1351
        %v1861 = vadd.f32 %v611, %v1653
        %v1862 = vadd.f32 %v612, %v1355
        %v1863 = vadd.f32 %v613, %v1357
        %v1864 = vadd.f32 %v614, %v1658
        %v1865 = vadd.f32 %v615, %v1359
        %v1866 = vadd.f32 %v616, %v1361
        %v1867 = vadd.f32 %v617, %v1661
        %v1868 = vadd.f32 %v618, %v1365
        %v1869 = vadd.f32 %v619, %v1367
        %v1870 = vadd.f32 %v620, %v1666
        %v1871 = vadd.f32 %v621, %v1369
        %v1872 = vadd.f32 %v622, %v1371
        %v1873 = vadd.f32 %v623, %v1669
        %v1874 = vadd.f32 %v624, %v1375
        %v1875 = vadd.f32 %v625, %v1377
        %v1876 = vadd.f32 %v626, %v1674
        %v1877 = vadd.f32 %v627, %v1379
        %v1878 = vadd.f32 %v628, %v1381
        %v1879 = vadd.f32 %v629, %v1677
        %v1880 = vadd.f32 %v630, %v1385
        %v1881 = vadd.f32 %v631, %v1387
        %v1882 = vadd.f32 %v632, %v1682
        %v1883 = vadd.f32 %v633, %v1389
        %v1884 = vadd.f32 %v634, %v1391
        %v1885 = vadd.f32 %v635, %v1685
        %v1886 = vadd.f32 %v636, %v1395
        %v1887 = vadd.f32 %v637, %v1397
        %v1888 = vadd.f32 %v638, %v1690
        %v1889 = vadd.f32 %v639, %v1399
        %v1890 = vadd.f32 %v640, %v1401
        %v1891 = vadd.f32 %v641, %v1693
        %v1892 = vadd.f32 %v642, %v1405
        %v1893 = vadd.f32 %v643, %v1407
        %v1894 = vadd.f32 %v644, %v1698
        %v1895 = vadd.f32 %v645, %v1409
        %v1896 = vadd.f32 %v646, %v1411
        %v1897 = vadd.f32 %v647, %v1701
        %v1898 = vadd.f32 %v648, %v1415
        %v1899 = vadd.f32 %v649, %v1417
        %v1900 = vadd.f32 %v650, %v1706
        %v1901 = vadd.f32 %v651, %v1419
        %v1902 = vadd.f32 %v652, %v1421
        %v1903 = vadd.f32 %v653, %v1709
        %1904 = vst [vmem:[#allocation2] sm:$0xff] %v1712
        %1905 = vst [vmem:[#allocation2 + $0x8] sm:$0xff] %v1713
        %1906 = vst [vmem:[#allocation2 + $0x10] sm:$0xff] %v1714
        %1907 = vst [vmem:[#allocation2 + $0x18] sm:$0xff] %v1715
        %1908 = vst [vmem:[#allocation2 + $0x20] sm:$0xff] %v1716
        %1909 = vst [vmem:[#allocation2 + $0x28] sm:$0xff] %v1717
        %1910 = vst [vmem:[#allocation2 + $0x30] sm:$0xff] %v1718
        %1911 = vst [vmem:[#allocation2 + $0x38] sm:$0xff] %v1719
        %1912 = vst [vmem:[#allocation2 + $0x40] sm:$0xff] %v1720
        %1913 = vst [vmem:[#allocation2 + $0x48] sm:$0xff] %v1721
        %1914 = vst [vmem:[#allocation2 + $0x50] sm:$0xff] %v1722
        %1915 = vst [vmem:[#allocation2 + $0x58] sm:$0xff] %v1723
        %1916 = vst [vmem:[#allocation2 + $0x60] sm:$0xff] %v1724
        %1917 = vst [vmem:[#allocation2 + $0x68] sm:$0xff] %v1725
        %1918 = vst [vmem:[#allocation2 + $0x70] sm:$0xff] %v1726
        %1919 = vst [vmem:[#allocation2 + $0x78] sm:$0xff] %v1727
        %1920 = vst [vmem:[#allocation2 + $0x80] sm:$0xff] %v1728
        %1921 = vst [vmem:[#allocation2 + $0x88] sm:$0xff] %v1729
        %1922 = vst [vmem:[#allocation2 + $0x90] sm:$0xff] %v1730
        %1923 = vst [vmem:[#allocation2 + $0x98] sm:$0xff] %v1731
        %1924 = vst [vmem:[#allocation2 + $0xa0] sm:$0xff] %v1732
        %1925 = vst [vmem:[#allocation2 + $0xa8] sm:$0xff] %v1733
        %1926 = vst [vmem:[#allocation2 + $0xb0] sm:$0xff] %v1734
        %1927 = vst [vmem:[#allocation2 + $0xb8] sm:$0xff] %v1735
        %1928 = vst [vmem:[#allocation2 + $0xc0] sm:$0xff] %v1736
        %1929 = vst [vmem:[#allocation2 + $0xc8] sm:$0xff] %v1737
        %1930 = vst [vmem:[#allocation2 + $0xd0] sm:$0xff] %v1738
        %1931 = vst [vmem:[#allocation2 + $0xd8] sm:$0xff] %v1739
        %1932 = vst [vmem:[#allocation2 + $0xe0] sm:$0xff] %v1740
        %1933 = vst [vmem:[#allocation2 + $0xe8] sm:$0xff] %v1741
        %1934 = vst [vmem:[#allocation2 + $0xf0] sm:$0xff] %v1742
        %1935 = vst [vmem:[#allocation2 + $0xf8] sm:$0xff] %v1743
        %1936 = vst [vmem:[#allocation2 + $0x100] sm:$0xff] %v1744
        %1937 = vst [vmem:[#allocation2 + $0x108] sm:$0xff] %v1745
        %1938 = vst [vmem:[#allocation2 + $0x110] sm:$0xff] %v1746
        %1939 = vst [vmem:[#allocation2 + $0x118] sm:$0xff] %v1747
        %1940 = vst [vmem:[#allocation2 + $0x120] sm:$0xff] %v1748
        %1941 = vst [vmem:[#allocation2 + $0x128] sm:$0xff] %v1749
        %1942 = vst [vmem:[#allocation2 + $0x130] sm:$0xff] %v1750
        %1943 = vst [vmem:[#allocation2 + $0x138] sm:$0xff] %v1751
        %1944 = vst [vmem:[#allocation2 + $0x140] sm:$0xff] %v1752
        %1945 = vst [vmem:[#allocation2 + $0x148] sm:$0xff] %v1753
        %1946 = vst [vmem:[#allocation2 + $0x150] sm:$0xff] %v1754
        %1947 = vst [vmem:[#allocation2 + $0x158] sm:$0xff] %v1755
        %1948 = vst [vmem:[#allocation2 + $0x160] sm:$0xff] %v1756
        %1949 = vst [vmem:[#allocation2 + $0x168] sm:$0xff] %v1757
        %1950 = vst [vmem:[#allocation2 + $0x170] sm:$0xff] %v1758
        %1951 = vst [vmem:[#allocation2 + $0x178] sm:$0xff] %v1759
        %1952 = vst [vmem:[#allocation2 + $0x180] sm:$0xff] %v1760
        %1953 = vst [vmem:[#allocation2 + $0x188] sm:$0xff] %v1761
        %1954 = vst [vmem:[#allocation2 + $0x190] sm:$0xff] %v1762
        %1955 = vst [vmem:[#allocation2 + $0x198] sm:$0xff] %v1763
        %1956 = vst [vmem:[#allocation2 + $0x1a0] sm:$0xff] %v1764
        %1957 = vst [vmem:[#allocation2 + $0x1a8] sm:$0xff] %v1765
        %1958 = vst [vmem:[#allocation2 + $0x1b0] sm:$0xff] %v1766
        %1959 = vst [vmem:[#allocation2 + $0x1b8] sm:$0xff] %v1767
        %1960 = vst [vmem:[#allocation2 + $0x1c0] sm:$0xff] %v1768
        %1961 = vst [vmem:[#allocation2 + $0x1c8] sm:$0xff] %v1769
        %1962 = vst [vmem:[#allocation2 + $0x1d0] sm:$0xff] %v1770
        %1963 = vst [vmem:[#allocation2 + $0x1d8] sm:$0xff] %v1771
        %1964 = vst [vmem:[#allocation2 + $0x1e0] sm:$0xff] %v1772
        %1965 = vst [vmem:[#allocation2 + $0x1e8] sm:$0xff] %v1773
        %1966 = vst [vmem:[#allocation2 + $0x1f0] sm:$0xff] %v1774
        %1967 = vst [vmem:[#allocation2 + $0x1f8] sm:$0xff] %v1775
        %1968 = vst [vmem:[#allocation2 + $0x200] sm:$0xff] %v1776
        %1969 = vst [vmem:[#allocation2 + $0x208] sm:$0xff] %v1777
        %1970 = vst [vmem:[#allocation2 + $0x210] sm:$0xff] %v1778
        %1971 = vst [vmem:[#allocation2 + $0x218] sm:$0xff] %v1779
        %1972 = vst [vmem:[#allocation2 + $0x220] sm:$0xff] %v1780
        %1973 = vst [vmem:[#allocation2 + $0x228] sm:$0xff] %v1781
        %1974 = vst [vmem:[#allocation2 + $0x230] sm:$0xff] %v1782
        %1975 = vst [vmem:[#allocation2 + $0x238] sm:$0xff] %v1783
        %1976 = vst [vmem:[#allocation2 + $0x240] sm:$0xff] %v1784
        %1977 = vst [vmem:[#allocation2 + $0x248] sm:$0xff] %v1785
        %1978 = vst [vmem:[#allocation2 + $0x250] sm:$0xff] %v1786
        %1979 = vst [vmem:[#allocation2 + $0x258] sm:$0xff] %v1787
        %1980 = vst [vmem:[#allocation2 + $0x260] sm:$0xff] %v1788
        %1981 = vst [vmem:[#allocation2 + $0x268] sm:$0xff] %v1789
        %1982 = vst [vmem:[#allocation2 + $0x270] sm:$0xff] %v1790
        %1983 = vst [vmem:[#allocation2 + $0x278] sm:$0xff] %v1791
        %1984 = vst [vmem:[#allocation2 + $0x280] sm:$0xff] %v1792
        %1985 = vst [vmem:[#allocation2 + $0x288] sm:$0xff] %v1793
        %1986 = vst [vmem:[#allocation2 + $0x290] sm:$0xff] %v1794
        %1987 = vst [vmem:[#allocation2 + $0x298] sm:$0xff] %v1795
        %1988 = vst [vmem:[#allocation2 + $0x2a0] sm:$0xff] %v1796
        %1989 = vst [vmem:[#allocation2 + $0x2a8] sm:$0xff] %v1797
        %1990 = vst [vmem:[#allocation2 + $0x2b0] sm:$0xff] %v1798
        %1991 = vst [vmem:[#allocation2 + $0x2b8] sm:$0xff] %v1799
        %1992 = vst [vmem:[#allocation2 + $0x2c0] sm:$0xff] %v1800
        %1993 = vst [vmem:[#allocation2 + $0x2c8] sm:$0xff] %v1801
        %1994 = vst [vmem:[#allocation2 + $0x2d0] sm:$0xff] %v1802
        %1995 = vst [vmem:[#allocation2 + $0x2d8] sm:$0xff] %v1803
        %1996 = vst [vmem:[#allocation2 + $0x2e0] sm:$0xff] %v1804
        %1997 = vst [vmem:[#allocation2 + $0x2e8] sm:$0xff] %v1805
        %1998 = vst [vmem:[#allocation2 + $0x2f0] sm:$0xff] %v1806
        %1999 = vst [vmem:[#allocation2 + $0x2f8] sm:$0xff] %v1807
        %2000 = vst [vmem:[#allocation2 + $0x300] sm:$0xff] %v1808
        %2001 = vst [vmem:[#allocation2 + $0x308] sm:$0xff] %v1809
        %2002 = vst [vmem:[#allocation2 + $0x310] sm:$0xff] %v1810
        %2003 = vst [vmem:[#allocation2 + $0x318] sm:$0xff] %v1811
        %2004 = vst [vmem:[#allocation2 + $0x320] sm:$0xff] %v1812
        %2005 = vst [vmem:[#allocation2 + $0x328] sm:$0xff] %v1813
        %2006 = vst [vmem:[#allocation2 + $0x330] sm:$0xff] %v1814
        %2007 = vst [vmem:[#allocation2 + $0x338] sm:$0xff] %v1815
        %2008 = vst [vmem:[#allocation2 + $0x340] sm:$0xff] %v1816
        %2009 = vst [vmem:[#allocation2 + $0x348] sm:$0xff] %v1817
        %2010 = vst [vmem:[#allocation2 + $0x350] sm:$0xff] %v1818
        %2011 = vst [vmem:[#allocation2 + $0x358] sm:$0xff] %v1819
        %2012 = vst [vmem:[#allocation2 + $0x360] sm:$0xff] %v1820
        %2013 = vst [vmem:[#allocation2 + $0x368] sm:$0xff] %v1821
        %2014 = vst [vmem:[#allocation2 + $0x370] sm:$0xff] %v1822
        %2015 = vst [vmem:[#allocation2 + $0x378] sm:$0xff] %v1823
        %2016 = vst [vmem:[#allocation2 + $0x380] sm:$0xff] %v1824
        %2017 = vst [vmem:[#allocation2 + $0x388] sm:$0xff] %v1825
        %2018 = vst [vmem:[#allocation2 + $0x390] sm:$0xff] %v1826
        %2019 = vst [vmem:[#allocation2 + $0x398] sm:$0xff] %v1827
        %2020 = vst [vmem:[#allocation2 + $0x3a0] sm:$0xff] %v1828
        %2021 = vst [vmem:[#allocation2 + $0x3a8] sm:$0xff] %v1829
        %2022 = vst [vmem:[#allocation2 + $0x3b0] sm:$0xff] %v1830
        %2023 = vst [vmem:[#allocation2 + $0x3b8] sm:$0xff] %v1831
        %2024 = vst [vmem:[#allocation2 + $0x3c0] sm:$0xff] %v1832
        %2025 = vst [vmem:[#allocation2 + $0x3c8] sm:$0xff] %v1833
        %2026 = vst [vmem:[#allocation2 + $0x3d0] sm:$0xff] %v1834
        %2027 = vst [vmem:[#allocation2 + $0x3d8] sm:$0xff] %v1835
        %2028 = vst [vmem:[#allocation2 + $0x3e0] sm:$0xff] %v1836
        %2029 = vst [vmem:[#allocation2 + $0x3e8] sm:$0xff] %v1837
        %2030 = vst [vmem:[#allocation2 + $0x3f0] sm:$0xff] %v1838
        %2031 = vst [vmem:[#allocation2 + $0x3f8] sm:$0xff] %v1839
        %2032 = vst [vmem:[#allocation2 + $0x400] sm:$0xff] %v1840
        %2033 = vst [vmem:[#allocation2 + $0x408] sm:$0xff] %v1841
        %2034 = vst [vmem:[#allocation2 + $0x410] sm:$0xff] %v1842
        %2035 = vst [vmem:[#allocation2 + $0x418] sm:$0xff] %v1843
        %2036 = vst [vmem:[#allocation2 + $0x420] sm:$0xff] %v1844
        %2037 = vst [vmem:[#allocation2 + $0x428] sm:$0xff] %v1845
        %2038 = vst [vmem:[#allocation2 + $0x430] sm:$0xff] %v1846
        %2039 = vst [vmem:[#allocation2 + $0x438] sm:$0xff] %v1847
        %2040 = vst [vmem:[#allocation2 + $0x440] sm:$0xff] %v1848
        %2041 = vst [vmem:[#allocation2 + $0x448] sm:$0xff] %v1849
        %2042 = vst [vmem:[#allocation2 + $0x450] sm:$0xff] %v1850
        %2043 = vst [vmem:[#allocation2 + $0x458] sm:$0xff] %v1851
        %2044 = vst [vmem:[#allocation2 + $0x460] sm:$0xff] %v1852
        %2045 = vst [vmem:[#allocation2 + $0x468] sm:$0xff] %v1853
        %2046 = vst [vmem:[#allocation2 + $0x470] sm:$0xff] %v1854
        %2047 = vst [vmem:[#allocation2 + $0x478] sm:$0xff] %v1855
        %2048 = vst [vmem:[#allocation2 + $0x480] sm:$0xff] %v1856
        %2049 = vst [vmem:[#allocation2 + $0x488] sm:$0xff] %v1857
        %2050 = vst [vmem:[#allocation2 + $0x490] sm:$0xff] %v1858
        %2051 = vst [vmem:[#allocation2 + $0x498] sm:$0xff] %v1859
        %2052 = vst [vmem:[#allocation2 + $0x4a0] sm:$0xff] %v1860
        %2053 = vst [vmem:[#allocation2 + $0x4a8] sm:$0xff] %v1861
        %2054 = vst [vmem:[#allocation2 + $0x4b0] sm:$0xff] %v1862
        %2055 = vst [vmem:[#allocation2 + $0x4b8] sm:$0xff] %v1863
        %2056 = vst [vmem:[#allocation2 + $0x4c0] sm:$0xff] %v1864
        %2057 = vst [vmem:[#allocation2 + $0x4c8] sm:$0xff] %v1865
        %2058 = vst [vmem:[#allocation2 + $0x4d0] sm:$0xff] %v1866
        %2059 = vst [vmem:[#allocation2 + $0x4d8] sm:$0xff] %v1867
        %2060 = vst [vmem:[#allocation2 + $0x4e0] sm:$0xff] %v1868
        %2061 = vst [vmem:[#allocation2 + $0x4e8] sm:$0xff] %v1869
        %2062 = vst [vmem:[#allocation2 + $0x4f0] sm:$0xff] %v1870
        %2063 = vst [vmem:[#allocation2 + $0x4f8] sm:$0xff] %v1871
        %2064 = vst [vmem:[#allocation2 + $0x500] sm:$0xff] %v1872
        %2065 = vst [vmem:[#allocation2 + $0x508] sm:$0xff] %v1873
        %2066 = vst [vmem:[#allocation2 + $0x510] sm:$0xff] %v1874
        %2067 = vst [vmem:[#allocation2 + $0x518] sm:$0xff] %v1875
        %2068 = vst [vmem:[#allocation2 + $0x520] sm:$0xff] %v1876
        %2069 = vst [vmem:[#allocation2 + $0x528] sm:$0xff] %v1877
        %2070 = vst [vmem:[#allocation2 + $0x530] sm:$0xff] %v1878
        %2071 = vst [vmem:[#allocation2 + $0x538] sm:$0xff] %v1879
        %2072 = vst [vmem:[#allocation2 + $0x540] sm:$0xff] %v1880
        %2073 = vst [vmem:[#allocation2 + $0x548] sm:$0xff] %v1881
        %2074 = vst [vmem:[#allocation2 + $0x550] sm:$0xff] %v1882
        %2075 = vst [vmem:[#allocation2 + $0x558] sm:$0xff] %v1883
        %2076 = vst [vmem:[#allocation2 + $0x560] sm:$0xff] %v1884
        %2077 = vst [vmem:[#allocation2 + $0x568] sm:$0xff] %v1885
        %2078 = vst [vmem:[#allocation2 + $0x570] sm:$0xff] %v1886
        %2079 = vst [vmem:[#allocation2 + $0x578] sm:$0xff] %v1887
        %2080 = vst [vmem:[#allocation2 + $0x580] sm:$0xff] %v1888
        %2081 = vst [vmem:[#allocation2 + $0x588] sm:$0xff] %v1889
        %2082 = vst [vmem:[#allocation2 + $0x590] sm:$0xff] %v1890
        %2083 = vst [vmem:[#allocation2 + $0x598] sm:$0xff] %v1891
        %2084 = vst [vmem:[#allocation2 + $0x5a0] sm:$0xff] %v1892
        %2085 = vst [vmem:[#allocation2 + $0x5a8] sm:$0xff] %v1893
        %2086 = vst [vmem:[#allocation2 + $0x5b0] sm:$0xff] %v1894
        %2087 = vst [vmem:[#allocation2 + $0x5b8] sm:$0xff] %v1895
        %2088 = vst [vmem:[#allocation2 + $0x5c0] sm:$0xff] %v1896
        %2089 = vst [vmem:[#allocation2 + $0x5c8] sm:$0xff] %v1897
        %2090 = vst [vmem:[#allocation2 + $0x5d0] sm:$0xff] %v1898
        %2091 = vst [vmem:[#allocation2 + $0x5d8] sm:$0xff] %v1899
        %2092 = vst [vmem:[#allocation2 + $0x5e0] sm:$0xff] %v1900
        %2093 = vst [vmem:[#allocation2 + $0x5e8] sm:$0xff] %v1901
        %2094 = vst [vmem:[#allocation2 + $0x5f0] sm:$0xff] %v1902
        %2095 = vst [vmem:[#allocation2 + $0x5f8] sm:$0xff] %v1903
        // Predicated region
        $region45: #{tpu_custom_call.1} parent=31 // pred_check
          %p2096 = pneg %p266
        $region46: #{tpu_custom_call.1} parent=31 // pred_check_branch
          %2098 = sbr.rel (%p2096) target = $region48
        $region47: #{tpu_custom_call.1} parent=31 // pred_region
          %v2099 = vld [vmem:[#allocation2] sm:$0xff]
          %v2100 = vld [vmem:[#allocation2 + $0x8] sm:$0xff]
          %v2101 = vld [vmem:[#allocation2 + $0x10] sm:$0xff]
          %v2102 = vld [vmem:[#allocation2 + $0x18] sm:$0xff]
          %v2103 = vld [vmem:[#allocation2 + $0x20] sm:$0xff]
          %v2104 = vld [vmem:[#allocation2 + $0x28] sm:$0xff]
          %v2105 = vld [vmem:[#allocation2 + $0x30] sm:$0xff]
          %v2106 = vld [vmem:[#allocation2 + $0x38] sm:$0xff]
          %v2107 = vld [vmem:[#allocation2 + $0x40] sm:$0xff]
          %v2108 = vld [vmem:[#allocation2 + $0x48] sm:$0xff]
          %v2109 = vld [vmem:[#allocation2 + $0x50] sm:$0xff]
          %v2110 = vld [vmem:[#allocation2 + $0x58] sm:$0xff]
          %v2111 = vld [vmem:[#allocation2 + $0x60] sm:$0xff]
          %v2112 = vld [vmem:[#allocation2 + $0x68] sm:$0xff]
          %v2113 = vld [vmem:[#allocation2 + $0x70] sm:$0xff]
          %v2114 = vld [vmem:[#allocation2 + $0x78] sm:$0xff]
          %v2115 = vld [vmem:[#allocation2 + $0x80] sm:$0xff]
          %v2116 = vld [vmem:[#allocation2 + $0x88] sm:$0xff]
          %v2117 = vld [vmem:[#allocation2 + $0x90] sm:$0xff]
          %v2118 = vld [vmem:[#allocation2 + $0x98] sm:$0xff]
          %v2119 = vld [vmem:[#allocation2 + $0xa0] sm:$0xff]
          %v2120 = vld [vmem:[#allocation2 + $0xa8] sm:$0xff]
          %v2121 = vld [vmem:[#allocation2 + $0xb0] sm:$0xff]
          %v2122 = vld [vmem:[#allocation2 + $0xb8] sm:$0xff]
          %v2123 = vld [vmem:[#allocation2 + $0xc0] sm:$0xff]
          %v2124 = vld [vmem:[#allocation2 + $0xc8] sm:$0xff]
          %v2125 = vld [vmem:[#allocation2 + $0xd0] sm:$0xff]
          %v2126 = vld [vmem:[#allocation2 + $0xd8] sm:$0xff]
          %v2127 = vld [vmem:[#allocation2 + $0xe0] sm:$0xff]
          %v2128 = vld [vmem:[#allocation2 + $0xe8] sm:$0xff]
          %v2129 = vld [vmem:[#allocation2 + $0xf0] sm:$0xff]
          %v2130 = vld [vmem:[#allocation2 + $0xf8] sm:$0xff]
          %v2131 = vld [vmem:[#allocation2 + $0x100] sm:$0xff]
          %v2132 = vld [vmem:[#allocation2 + $0x108] sm:$0xff]
          %v2133 = vld [vmem:[#allocation2 + $0x110] sm:$0xff]
          %v2134 = vld [vmem:[#allocation2 + $0x118] sm:$0xff]
          %v2135 = vld [vmem:[#allocation2 + $0x120] sm:$0xff]
          %v2136 = vld [vmem:[#allocation2 + $0x128] sm:$0xff]
          %v2137 = vld [vmem:[#allocation2 + $0x130] sm:$0xff]
          %v2138 = vld [vmem:[#allocation2 + $0x138] sm:$0xff]
          %v2139 = vld [vmem:[#allocation2 + $0x140] sm:$0xff]
          %v2140 = vld [vmem:[#allocation2 + $0x148] sm:$0xff]
          %v2141 = vld [vmem:[#allocation2 + $0x150] sm:$0xff]
          %v2142 = vld [vmem:[#allocation2 + $0x158] sm:$0xff]
          %v2143 = vld [vmem:[#allocation2 + $0x160] sm:$0xff]
          %v2144 = vld [vmem:[#allocation2 + $0x168] sm:$0xff]
          %v2145 = vld [vmem:[#allocation2 + $0x170] sm:$0xff]
          %v2146 = vld [vmem:[#allocation2 + $0x178] sm:$0xff]
          %v2147 = vld [vmem:[#allocation2 + $0x180] sm:$0xff]
          %v2148 = vld [vmem:[#allocation2 + $0x188] sm:$0xff]
          %v2149 = vld [vmem:[#allocation2 + $0x190] sm:$0xff]
          %v2150 = vld [vmem:[#allocation2 + $0x198] sm:$0xff]
          %v2151 = vld [vmem:[#allocation2 + $0x1a0] sm:$0xff]
          %v2152 = vld [vmem:[#allocation2 + $0x1a8] sm:$0xff]
          %v2153 = vld [vmem:[#allocation2 + $0x1b0] sm:$0xff]
          %v2154 = vld [vmem:[#allocation2 + $0x1b8] sm:$0xff]
          %v2155 = vld [vmem:[#allocation2 + $0x1c0] sm:$0xff]
          %v2156 = vld [vmem:[#allocation2 + $0x1c8] sm:$0xff]
          %v2157 = vld [vmem:[#allocation2 + $0x1d0] sm:$0xff]
          %v2158 = vld [vmem:[#allocation2 + $0x1d8] sm:$0xff]
          %v2159 = vld [vmem:[#allocation2 + $0x1e0] sm:$0xff]
          %v2160 = vld [vmem:[#allocation2 + $0x1e8] sm:$0xff]
          %v2161 = vld [vmem:[#allocation2 + $0x1f0] sm:$0xff]
          %v2162 = vld [vmem:[#allocation2 + $0x1f8] sm:$0xff]
          %v2163 = vld [vmem:[#allocation2 + $0x200] sm:$0xff]
          %v2164 = vld [vmem:[#allocation2 + $0x208] sm:$0xff]
          %v2165 = vld [vmem:[#allocation2 + $0x210] sm:$0xff]
          %v2166 = vld [vmem:[#allocation2 + $0x218] sm:$0xff]
          %v2167 = vld [vmem:[#allocation2 + $0x220] sm:$0xff]
          %v2168 = vld [vmem:[#allocation2 + $0x228] sm:$0xff]
          %v2169 = vld [vmem:[#allocation2 + $0x230] sm:$0xff]
          %v2170 = vld [vmem:[#allocation2 + $0x238] sm:$0xff]
          %v2171 = vld [vmem:[#allocation2 + $0x240] sm:$0xff]
          %v2172 = vld [vmem:[#allocation2 + $0x248] sm:$0xff]
          %v2173 = vld [vmem:[#allocation2 + $0x250] sm:$0xff]
          %v2174 = vld [vmem:[#allocation2 + $0x258] sm:$0xff]
          %v2175 = vld [vmem:[#allocation2 + $0x260] sm:$0xff]
          %v2176 = vld [vmem:[#allocation2 + $0x268] sm:$0xff]
          %v2177 = vld [vmem:[#allocation2 + $0x270] sm:$0xff]
          %v2178 = vld [vmem:[#allocation2 + $0x278] sm:$0xff]
          %v2179 = vld [vmem:[#allocation2 + $0x280] sm:$0xff]
          %v2180 = vld [vmem:[#allocation2 + $0x288] sm:$0xff]
          %v2181 = vld [vmem:[#allocation2 + $0x290] sm:$0xff]
          %v2182 = vld [vmem:[#allocation2 + $0x298] sm:$0xff]
          %v2183 = vld [vmem:[#allocation2 + $0x2a0] sm:$0xff]
          %v2184 = vld [vmem:[#allocation2 + $0x2a8] sm:$0xff]
          %v2185 = vld [vmem:[#allocation2 + $0x2b0] sm:$0xff]
          %v2186 = vld [vmem:[#allocation2 + $0x2b8] sm:$0xff]
          %v2187 = vld [vmem:[#allocation2 + $0x2c0] sm:$0xff]
          %v2188 = vld [vmem:[#allocation2 + $0x2c8] sm:$0xff]
          %v2189 = vld [vmem:[#allocation2 + $0x2d0] sm:$0xff]
          %v2190 = vld [vmem:[#allocation2 + $0x2d8] sm:$0xff]
          %v2191 = vld [vmem:[#allocation2 + $0x2e0] sm:$0xff]
          %v2192 = vld [vmem:[#allocation2 + $0x2e8] sm:$0xff]
          %v2193 = vld [vmem:[#allocation2 + $0x2f0] sm:$0xff]
          %v2194 = vld [vmem:[#allocation2 + $0x2f8] sm:$0xff]
          %v2195 = vld [vmem:[#allocation2 + $0x300] sm:$0xff]
          %v2196 = vld [vmem:[#allocation2 + $0x308] sm:$0xff]
          %v2197 = vld [vmem:[#allocation2 + $0x310] sm:$0xff]
          %v2198 = vld [vmem:[#allocation2 + $0x318] sm:$0xff]
          %v2199 = vld [vmem:[#allocation2 + $0x320] sm:$0xff]
          %v2200 = vld [vmem:[#allocation2 + $0x328] sm:$0xff]
          %v2201 = vld [vmem:[#allocation2 + $0x330] sm:$0xff]
          %v2202 = vld [vmem:[#allocation2 + $0x338] sm:$0xff]
          %v2203 = vld [vmem:[#allocation2 + $0x340] sm:$0xff]
          %v2204 = vld [vmem:[#allocation2 + $0x348] sm:$0xff]
          %v2205 = vld [vmem:[#allocation2 + $0x350] sm:$0xff]
          %v2206 = vld [vmem:[#allocation2 + $0x358] sm:$0xff]
          %v2207 = vld [vmem:[#allocation2 + $0x360] sm:$0xff]
          %v2208 = vld [vmem:[#allocation2 + $0x368] sm:$0xff]
          %v2209 = vld [vmem:[#allocation2 + $0x370] sm:$0xff]
          %v2210 = vld [vmem:[#allocation2 + $0x378] sm:$0xff]
          %v2211 = vld [vmem:[#allocation2 + $0x380] sm:$0xff]
          %v2212 = vld [vmem:[#allocation2 + $0x388] sm:$0xff]
          %v2213 = vld [vmem:[#allocation2 + $0x390] sm:$0xff]
          %v2214 = vld [vmem:[#allocation2 + $0x398] sm:$0xff]
          %v2215 = vld [vmem:[#allocation2 + $0x3a0] sm:$0xff]
          %v2216 = vld [vmem:[#allocation2 + $0x3a8] sm:$0xff]
          %v2217 = vld [vmem:[#allocation2 + $0x3b0] sm:$0xff]
          %v2218 = vld [vmem:[#allocation2 + $0x3b8] sm:$0xff]
          %v2219 = vld [vmem:[#allocation2 + $0x3c0] sm:$0xff]
          %v2220 = vld [vmem:[#allocation2 + $0x3c8] sm:$0xff]
          %v2221 = vld [vmem:[#allocation2 + $0x3d0] sm:$0xff]
          %v2222 = vld [vmem:[#allocation2 + $0x3d8] sm:$0xff]
          %v2223 = vld [vmem:[#allocation2 + $0x3e0] sm:$0xff]
          %v2224 = vld [vmem:[#allocation2 + $0x3e8] sm:$0xff]
          %v2225 = vld [vmem:[#allocation2 + $0x3f0] sm:$0xff]
          %v2226 = vld [vmem:[#allocation2 + $0x3f8] sm:$0xff]
          %v2227 = vld [vmem:[#allocation2 + $0x400] sm:$0xff]
          %v2228 = vld [vmem:[#allocation2 + $0x408] sm:$0xff]
          %v2229 = vld [vmem:[#allocation2 + $0x410] sm:$0xff]
          %v2230 = vld [vmem:[#allocation2 + $0x418] sm:$0xff]
          %v2231 = vld [vmem:[#allocation2 + $0x420] sm:$0xff]
          %v2232 = vld [vmem:[#allocation2 + $0x428] sm:$0xff]
          %v2233 = vld [vmem:[#allocation2 + $0x430] sm:$0xff]
          %v2234 = vld [vmem:[#allocation2 + $0x438] sm:$0xff]
          %v2235 = vld [vmem:[#allocation2 + $0x440] sm:$0xff]
          %v2236 = vld [vmem:[#allocation2 + $0x448] sm:$0xff]
          %v2237 = vld [vmem:[#allocation2 + $0x450] sm:$0xff]
          %v2238 = vld [vmem:[#allocation2 + $0x458] sm:$0xff]
          %v2239 = vld [vmem:[#allocation2 + $0x460] sm:$0xff]
          %v2240 = vld [vmem:[#allocation2 + $0x468] sm:$0xff]
          %v2241 = vld [vmem:[#allocation2 + $0x470] sm:$0xff]
          %v2242 = vld [vmem:[#allocation2 + $0x478] sm:$0xff]
          %v2243 = vld [vmem:[#allocation2 + $0x480] sm:$0xff]
          %v2244 = vld [vmem:[#allocation2 + $0x488] sm:$0xff]
          %v2245 = vld [vmem:[#allocation2 + $0x490] sm:$0xff]
          %v2246 = vld [vmem:[#allocation2 + $0x498] sm:$0xff]
          %v2247 = vld [vmem:[#allocation2 + $0x4a0] sm:$0xff]
          %v2248 = vld [vmem:[#allocation2 + $0x4a8] sm:$0xff]
          %v2249 = vld [vmem:[#allocation2 + $0x4b0] sm:$0xff]
          %v2250 = vld [vmem:[#allocation2 + $0x4b8] sm:$0xff]
          %v2251 = vld [vmem:[#allocation2 + $0x4c0] sm:$0xff]
          %v2252 = vld [vmem:[#allocation2 + $0x4c8] sm:$0xff]
          %v2253 = vld [vmem:[#allocation2 + $0x4d0] sm:$0xff]
          %v2254 = vld [vmem:[#allocation2 + $0x4d8] sm:$0xff]
          %v2255 = vld [vmem:[#allocation2 + $0x4e0] sm:$0xff]
          %v2256 = vld [vmem:[#allocation2 + $0x4e8] sm:$0xff]
          %v2257 = vld [vmem:[#allocation2 + $0x4f0] sm:$0xff]
          %v2258 = vld [vmem:[#allocation2 + $0x4f8] sm:$0xff]
          %v2259 = vld [vmem:[#allocation2 + $0x500] sm:$0xff]
          %v2260 = vld [vmem:[#allocation2 + $0x508] sm:$0xff]
          %v2261 = vld [vmem:[#allocation2 + $0x510] sm:$0xff]
          %v2262 = vld [vmem:[#allocation2 + $0x518] sm:$0xff]
          %v2263 = vld [vmem:[#allocation2 + $0x520] sm:$0xff]
          %v2264 = vld [vmem:[#allocation2 + $0x528] sm:$0xff]
          %v2265 = vld [vmem:[#allocation2 + $0x530] sm:$0xff]
          %v2266 = vld [vmem:[#allocation2 + $0x538] sm:$0xff]
          %v2267 = vld [vmem:[#allocation2 + $0x540] sm:$0xff]
          %v2268 = vld [vmem:[#allocation2 + $0x548] sm:$0xff]
          %v2269 = vld [vmem:[#allocation2 + $0x550] sm:$0xff]
          %v2270 = vld [vmem:[#allocation2 + $0x558] sm:$0xff]
          %v2271 = vld [vmem:[#allocation2 + $0x560] sm:$0xff]
          %v2272 = vld [vmem:[#allocation2 + $0x568] sm:$0xff]
          %v2273 = vld [vmem:[#allocation2 + $0x570] sm:$0xff]
          %v2274 = vld [vmem:[#allocation2 + $0x578] sm:$0xff]
          %v2275 = vld [vmem:[#allocation2 + $0x580] sm:$0xff]
          %v2276 = vld [vmem:[#allocation2 + $0x588] sm:$0xff]
          %v2277 = vld [vmem:[#allocation2 + $0x590] sm:$0xff]
          %v2278 = vld [vmem:[#allocation2 + $0x598] sm:$0xff]
          %v2279 = vld [vmem:[#allocation2 + $0x5a0] sm:$0xff]
          %v2280 = vld [vmem:[#allocation2 + $0x5a8] sm:$0xff]
          %v2281 = vld [vmem:[#allocation2 + $0x5b0] sm:$0xff]
          %v2282 = vld [vmem:[#allocation2 + $0x5b8] sm:$0xff]
          %v2283 = vld [vmem:[#allocation2 + $0x5c0] sm:$0xff]
          %v2284 = vld [vmem:[#allocation2 + $0x5c8] sm:$0xff]
          %v2285 = vld [vmem:[#allocation2 + $0x5d0] sm:$0xff]
          %v2286 = vld [vmem:[#allocation2 + $0x5d8] sm:$0xff]
          %v2287 = vld [vmem:[#allocation2 + $0x5e0] sm:$0xff]
          %v2288 = vld [vmem:[#allocation2 + $0x5e8] sm:$0xff]
          %v2289 = vld [vmem:[#allocation2 + $0x5f0] sm:$0xff]
          %v2290 = vld [vmem:[#allocation2 + $0x5f8] sm:$0xff]
          %v2291 = vld [vmem:[%s261] sm:$0x7]
          %v2293 = vlaneseq
          %v2294 = vshrl.u32 %v2293, 7
          %v2295 = vsub.s32 0, %v2294
          %v2296 = vrot.slane %v2291, %v2295
          %v2297 = vlaneseq
          %v2298 = vshrl.u32 %v2297, 7
          %v2299 = vsub.s32 1, %v2298
          %v2300 = vrot.slane %v2291, %v2299
          %v2301 = vlaneseq
          %v2302 = vshrl.u32 %v2301, 7
          %v2303 = vsub.s32 2, %v2302
          %v2304 = vrot.slane %v2291, %v2303
          %v2308 = vadd.f32 %v2099, %v2296
          %v2309 = vadd.f32 %v2100, %v2300
          %v2310 = vadd.f32 %v2101, %v2304
          %v2311 = vadd.f32 %v2102, %v2296
          %v2312 = vadd.f32 %v2103, %v2300
          %v2313 = vadd.f32 %v2104, %v2304
          %v2314 = vadd.f32 %v2105, %v2296
          %v2315 = vadd.f32 %v2106, %v2300
          %v2316 = vadd.f32 %v2107, %v2304
          %v2317 = vadd.f32 %v2108, %v2296
          %v2318 = vadd.f32 %v2109, %v2300
          %v2319 = vadd.f32 %v2110, %v2304
          %v2320 = vadd.f32 %v2111, %v2296
          %v2321 = vadd.f32 %v2112, %v2300
          %v2322 = vadd.f32 %v2113, %v2304
          %v2323 = vadd.f32 %v2114, %v2296
          %v2324 = vadd.f32 %v2115, %v2300
          %v2325 = vadd.f32 %v2116, %v2304
          %v2326 = vadd.f32 %v2117, %v2296
          %v2327 = vadd.f32 %v2118, %v2300
          %v2328 = vadd.f32 %v2119, %v2304
          %v2329 = vadd.f32 %v2120, %v2296
          %v2330 = vadd.f32 %v2121, %v2300
          %v2331 = vadd.f32 %v2122, %v2304
          %v2332 = vadd.f32 %v2123, %v2296
          %v2333 = vadd.f32 %v2124, %v2300
          %v2334 = vadd.f32 %v2125, %v2304
          %v2335 = vadd.f32 %v2126, %v2296
          %v2336 = vadd.f32 %v2127, %v2300
          %v2337 = vadd.f32 %v2128, %v2304
          %v2338 = vadd.f32 %v2129, %v2296
          %v2339 = vadd.f32 %v2130, %v2300
          %v2340 = vadd.f32 %v2131, %v2304
          %v2341 = vadd.f32 %v2132, %v2296
          %v2342 = vadd.f32 %v2133, %v2300
          %v2343 = vadd.f32 %v2134, %v2304
          %v2344 = vadd.f32 %v2135, %v2296
          %v2345 = vadd.f32 %v2136, %v2300
          %v2346 = vadd.f32 %v2137, %v2304
          %v2347 = vadd.f32 %v2138, %v2296
          %v2348 = vadd.f32 %v2139, %v2300
          %v2349 = vadd.f32 %v2140, %v2304
          %v2350 = vadd.f32 %v2141, %v2296
          %v2351 = vadd.f32 %v2142, %v2300
          %v2352 = vadd.f32 %v2143, %v2304
          %v2353 = vadd.f32 %v2144, %v2296
          %v2354 = vadd.f32 %v2145, %v2300
          %v2355 = vadd.f32 %v2146, %v2304
          %v2356 = vadd.f32 %v2147, %v2296
          %v2357 = vadd.f32 %v2148, %v2300
          %v2358 = vadd.f32 %v2149, %v2304
          %v2359 = vadd.f32 %v2150, %v2296
          %v2360 = vadd.f32 %v2151, %v2300
          %v2361 = vadd.f32 %v2152, %v2304
          %v2362 = vadd.f32 %v2153, %v2296
          %v2363 = vadd.f32 %v2154, %v2300
          %v2364 = vadd.f32 %v2155, %v2304
          %v2365 = vadd.f32 %v2156, %v2296
          %v2366 = vadd.f32 %v2157, %v2300
          %v2367 = vadd.f32 %v2158, %v2304
          %v2368 = vadd.f32 %v2159, %v2296
          %v2369 = vadd.f32 %v2160, %v2300
          %v2370 = vadd.f32 %v2161, %v2304
          %v2371 = vadd.f32 %v2162, %v2296
          %v2372 = vadd.f32 %v2163, %v2300
          %v2373 = vadd.f32 %v2164, %v2304
          %v2374 = vadd.f32 %v2165, %v2296
          %v2375 = vadd.f32 %v2166, %v2300
          %v2376 = vadd.f32 %v2167, %v2304
          %v2377 = vadd.f32 %v2168, %v2296
          %v2378 = vadd.f32 %v2169, %v2300
          %v2379 = vadd.f32 %v2170, %v2304
          %v2380 = vadd.f32 %v2171, %v2296
          %v2381 = vadd.f32 %v2172, %v2300
          %v2382 = vadd.f32 %v2173, %v2304
          %v2383 = vadd.f32 %v2174, %v2296
          %v2384 = vadd.f32 %v2175, %v2300
          %v2385 = vadd.f32 %v2176, %v2304
          %v2386 = vadd.f32 %v2177, %v2296
          %v2387 = vadd.f32 %v2178, %v2300
          %v2388 = vadd.f32 %v2179, %v2304
          %v2389 = vadd.f32 %v2180, %v2296
          %v2390 = vadd.f32 %v2181, %v2300
          %v2391 = vadd.f32 %v2182, %v2304
          %v2392 = vadd.f32 %v2183, %v2296
          %v2393 = vadd.f32 %v2184, %v2300
          %v2394 = vadd.f32 %v2185, %v2304
          %v2395 = vadd.f32 %v2186, %v2296
          %v2396 = vadd.f32 %v2187, %v2300
          %v2397 = vadd.f32 %v2188, %v2304
          %v2398 = vadd.f32 %v2189, %v2296
          %v2399 = vadd.f32 %v2190, %v2300
          %v2400 = vadd.f32 %v2191, %v2304
          %v2401 = vadd.f32 %v2192, %v2296
          %v2402 = vadd.f32 %v2193, %v2300
          %v2403 = vadd.f32 %v2194, %v2304
          %v2404 = vadd.f32 %v2195, %v2296
          %v2405 = vadd.f32 %v2196, %v2300
          %v2406 = vadd.f32 %v2197, %v2304
          %v2407 = vadd.f32 %v2198, %v2296
          %v2408 = vadd.f32 %v2199, %v2300
          %v2409 = vadd.f32 %v2200, %v2304
          %v2410 = vadd.f32 %v2201, %v2296
          %v2411 = vadd.f32 %v2202, %v2300
          %v2412 = vadd.f32 %v2203, %v2304
          %v2413 = vadd.f32 %v2204, %v2296
          %v2414 = vadd.f32 %v2205, %v2300
          %v2415 = vadd.f32 %v2206, %v2304
          %v2416 = vadd.f32 %v2207, %v2296
          %v2417 = vadd.f32 %v2208, %v2300
          %v2418 = vadd.f32 %v2209, %v2304
          %v2419 = vadd.f32 %v2210, %v2296
          %v2420 = vadd.f32 %v2211, %v2300
          %v2421 = vadd.f32 %v2212, %v2304
          %v2422 = vadd.f32 %v2213, %v2296
          %v2423 = vadd.f32 %v2214, %v2300
          %v2424 = vadd.f32 %v2215, %v2304
          %v2425 = vadd.f32 %v2216, %v2296
          %v2426 = vadd.f32 %v2217, %v2300
          %v2427 = vadd.f32 %v2218, %v2304
          %v2428 = vadd.f32 %v2219, %v2296
          %v2429 = vadd.f32 %v2220, %v2300
          %v2430 = vadd.f32 %v2221, %v2304
          %v2431 = vadd.f32 %v2222, %v2296
          %v2432 = vadd.f32 %v2223, %v2300
          %v2433 = vadd.f32 %v2224, %v2304
          %v2434 = vadd.f32 %v2225, %v2296
          %v2435 = vadd.f32 %v2226, %v2300
          %v2436 = vadd.f32 %v2227, %v2304
          %v2437 = vadd.f32 %v2228, %v2296
          %v2438 = vadd.f32 %v2229, %v2300
          %v2439 = vadd.f32 %v2230, %v2304
          %v2440 = vadd.f32 %v2231, %v2296
          %v2441 = vadd.f32 %v2232, %v2300
          %v2442 = vadd.f32 %v2233, %v2304
          %v2443 = vadd.f32 %v2234, %v2296
          %v2444 = vadd.f32 %v2235, %v2300
          %v2445 = vadd.f32 %v2236, %v2304
          %v2446 = vadd.f32 %v2237, %v2296
          %v2447 = vadd.f32 %v2238, %v2300
          %v2448 = vadd.f32 %v2239, %v2304
          %v2449 = vadd.f32 %v2240, %v2296
          %v2450 = vadd.f32 %v2241, %v2300
          %v2451 = vadd.f32 %v2242, %v2304
          %v2452 = vadd.f32 %v2243, %v2296
          %v2453 = vadd.f32 %v2244, %v2300
          %v2454 = vadd.f32 %v2245, %v2304
          %v2455 = vadd.f32 %v2246, %v2296
          %v2456 = vadd.f32 %v2247, %v2300
          %v2457 = vadd.f32 %v2248, %v2304
          %v2458 = vadd.f32 %v2249, %v2296
          %v2459 = vadd.f32 %v2250, %v2300
          %v2460 = vadd.f32 %v2251, %v2304
          %v2461 = vadd.f32 %v2252, %v2296
          %v2462 = vadd.f32 %v2253, %v2300
          %v2463 = vadd.f32 %v2254, %v2304
          %v2464 = vadd.f32 %v2255, %v2296
          %v2465 = vadd.f32 %v2256, %v2300
          %v2466 = vadd.f32 %v2257, %v2304
          %v2467 = vadd.f32 %v2258, %v2296
          %v2468 = vadd.f32 %v2259, %v2300
          %v2469 = vadd.f32 %v2260, %v2304
          %v2470 = vadd.f32 %v2261, %v2296
          %v2471 = vadd.f32 %v2262, %v2300
          %v2472 = vadd.f32 %v2263, %v2304
          %v2473 = vadd.f32 %v2264, %v2296
          %v2474 = vadd.f32 %v2265, %v2300
          %v2475 = vadd.f32 %v2266, %v2304
          %v2476 = vadd.f32 %v2267, %v2296
          %v2477 = vadd.f32 %v2268, %v2300
          %v2478 = vadd.f32 %v2269, %v2304
          %v2479 = vadd.f32 %v2270, %v2296
          %v2480 = vadd.f32 %v2271, %v2300
          %v2481 = vadd.f32 %v2272, %v2304
          %v2482 = vadd.f32 %v2273, %v2296
          %v2483 = vadd.f32 %v2274, %v2300
          %v2484 = vadd.f32 %v2275, %v2304
          %v2485 = vadd.f32 %v2276, %v2296
          %v2486 = vadd.f32 %v2277, %v2300
          %v2487 = vadd.f32 %v2278, %v2304
          %v2488 = vadd.f32 %v2279, %v2296
          %v2489 = vadd.f32 %v2280, %v2300
          %v2490 = vadd.f32 %v2281, %v2304
          %v2491 = vadd.f32 %v2282, %v2296
          %v2492 = vadd.f32 %v2283, %v2300
          %v2493 = vadd.f32 %v2284, %v2304
          %v2494 = vadd.f32 %v2285, %v2296
          %v2495 = vadd.f32 %v2286, %v2300
          %v2496 = vadd.f32 %v2287, %v2304
          %v2497 = vadd.f32 %v2288, %v2296
          %v2498 = vadd.f32 %v2289, %v2300
          %v2499 = vadd.f32 %v2290, %v2304
          %v2500 = vpack.c.bf16 %v2311, %v2308
          %v2501 = vpack.c.bf16 %v2312, %v2309
          %v2502 = vpack.c.bf16 %v2313, %v2310
          %v2503 = vpack.c.bf16 %v2317, %v2314
          %v2504 = vpack.c.bf16 %v2318, %v2315
          %v2505 = vpack.c.bf16 %v2319, %v2316
          %v2506 = vpack.c.bf16 %v2323, %v2320
          %v2507 = vpack.c.bf16 %v2324, %v2321
          %v2508 = vpack.c.bf16 %v2325, %v2322
          %v2509 = vpack.c.bf16 %v2329, %v2326
          %v2510 = vpack.c.bf16 %v2330, %v2327
          %v2511 = vpack.c.bf16 %v2331, %v2328
          %v2512 = vpack.c.bf16 %v2335, %v2332
          %v2513 = vpack.c.bf16 %v2336, %v2333
          %v2514 = vpack.c.bf16 %v2337, %v2334
          %v2515 = vpack.c.bf16 %v2341, %v2338
          %v2516 = vpack.c.bf16 %v2342, %v2339
          %v2517 = vpack.c.bf16 %v2343, %v2340
          %v2518 = vpack.c.bf16 %v2347, %v2344
          %v2519 = vpack.c.bf16 %v2348, %v2345
          %v2520 = vpack.c.bf16 %v2349, %v2346
          %v2521 = vpack.c.bf16 %v2353, %v2350
          %v2522 = vpack.c.bf16 %v2354, %v2351
          %v2523 = vpack.c.bf16 %v2355, %v2352
          %v2524 = vpack.c.bf16 %v2359, %v2356
          %v2525 = vpack.c.bf16 %v2360, %v2357
          %v2526 = vpack.c.bf16 %v2361, %v2358
          %v2527 = vpack.c.bf16 %v2365, %v2362
          %v2528 = vpack.c.bf16 %v2366, %v2363
          %v2529 = vpack.c.bf16 %v2367, %v2364
          %v2530 = vpack.c.bf16 %v2371, %v2368
          %v2531 = vpack.c.bf16 %v2372, %v2369
          %v2532 = vpack.c.bf16 %v2373, %v2370
          %v2533 = vpack.c.bf16 %v2377, %v2374
          %v2534 = vpack.c.bf16 %v2378, %v2375
          %v2535 = vpack.c.bf16 %v2379, %v2376
          %v2536 = vpack.c.bf16 %v2383, %v2380
          %v2537 = vpack.c.bf16 %v2384, %v2381
          %v2538 = vpack.c.bf16 %v2385, %v2382
          %v2539 = vpack.c.bf16 %v2389, %v2386
          %v2540 = vpack.c.bf16 %v2390, %v2387
          %v2541 = vpack.c.bf16 %v2391, %v2388
          %v2542 = vpack.c.bf16 %v2395, %v2392
          %v2543 = vpack.c.bf16 %v2396, %v2393
          %v2544 = vpack.c.bf16 %v2397, %v2394
          %v2545 = vpack.c.bf16 %v2401, %v2398
          %v2546 = vpack.c.bf16 %v2402, %v2399
          %v2547 = vpack.c.bf16 %v2403, %v2400
          %v2548 = vpack.c.bf16 %v2407, %v2404
          %v2549 = vpack.c.bf16 %v2408, %v2405
          %v2550 = vpack.c.bf16 %v2409, %v2406
          %v2551 = vpack.c.bf16 %v2413, %v2410
          %v2552 = vpack.c.bf16 %v2414, %v2411
          %v2553 = vpack.c.bf16 %v2415, %v2412
          %v2554 = vpack.c.bf16 %v2419, %v2416
          %v2555 = vpack.c.bf16 %v2420, %v2417
          %v2556 = vpack.c.bf16 %v2421, %v2418
          %v2557 = vpack.c.bf16 %v2425, %v2422
          %v2558 = vpack.c.bf16 %v2426, %v2423
          %v2559 = vpack.c.bf16 %v2427, %v2424
          %v2560 = vpack.c.bf16 %v2431, %v2428
          %v2561 = vpack.c.bf16 %v2432, %v2429
          %v2562 = vpack.c.bf16 %v2433, %v2430
          %v2563 = vpack.c.bf16 %v2437, %v2434
          %v2564 = vpack.c.bf16 %v2438, %v2435
          %v2565 = vpack.c.bf16 %v2439, %v2436
          %v2566 = vpack.c.bf16 %v2443, %v2440
          %v2567 = vpack.c.bf16 %v2444, %v2441
          %v2568 = vpack.c.bf16 %v2445, %v2442
          %v2569 = vpack.c.bf16 %v2449, %v2446
          %v2570 = vpack.c.bf16 %v2450, %v2447
          %v2571 = vpack.c.bf16 %v2451, %v2448
          %v2572 = vpack.c.bf16 %v2455, %v2452
          %v2573 = vpack.c.bf16 %v2456, %v2453
          %v2574 = vpack.c.bf16 %v2457, %v2454
          %v2575 = vpack.c.bf16 %v2461, %v2458
          %v2576 = vpack.c.bf16 %v2462, %v2459
          %v2577 = vpack.c.bf16 %v2463, %v2460
          %v2578 = vpack.c.bf16 %v2467, %v2464
          %v2579 = vpack.c.bf16 %v2468, %v2465
          %v2580 = vpack.c.bf16 %v2469, %v2466
          %v2581 = vpack.c.bf16 %v2473, %v2470
          %v2582 = vpack.c.bf16 %v2474, %v2471
          %v2583 = vpack.c.bf16 %v2475, %v2472
          %v2584 = vpack.c.bf16 %v2479, %v2476
          %v2585 = vpack.c.bf16 %v2480, %v2477
          %v2586 = vpack.c.bf16 %v2481, %v2478
          %v2587 = vpack.c.bf16 %v2485, %v2482
          %v2588 = vpack.c.bf16 %v2486, %v2483
          %v2589 = vpack.c.bf16 %v2487, %v2484
          %v2590 = vpack.c.bf16 %v2491, %v2488
          %v2591 = vpack.c.bf16 %v2492, %v2489
          %v2592 = vpack.c.bf16 %v2493, %v2490
          %v2593 = vpack.c.bf16 %v2497, %v2494
          %v2594 = vpack.c.bf16 %v2498, %v2495
          %v2595 = vpack.c.bf16 %v2499, %v2496
          %v2692 = vunpack.c.l.b16 %v2500
          %v2693 = vunpack.c.l.b16 %v2501
          %v2694 = vunpack.c.l.b16 %v2502
          %v2695 = vunpack.c.h.b16 %v2500
          %v2696 = vunpack.c.h.b16 %v2501
          %v2697 = vunpack.c.h.b16 %v2502
          %v2698 = vunpack.c.l.b16 %v2503
          %v2699 = vunpack.c.l.b16 %v2504
          %v2700 = vunpack.c.l.b16 %v2505
          %v2701 = vunpack.c.h.b16 %v2503
          %v2702 = vunpack.c.h.b16 %v2504
          %v2703 = vunpack.c.h.b16 %v2505
          %v2704 = vunpack.c.l.b16 %v2506
          %v2705 = vunpack.c.l.b16 %v2507
          %v2706 = vunpack.c.l.b16 %v2508
          %v2707 = vunpack.c.h.b16 %v2506
          %v2708 = vunpack.c.h.b16 %v2507
          %v2709 = vunpack.c.h.b16 %v2508
          %v2710 = vunpack.c.l.b16 %v2509
          %v2711 = vunpack.c.l.b16 %v2510
          %v2712 = vunpack.c.l.b16 %v2511
          %v2713 = vunpack.c.h.b16 %v2509
          %v2714 = vunpack.c.h.b16 %v2510
          %v2715 = vunpack.c.h.b16 %v2511
          %v2716 = vunpack.c.l.b16 %v2512
          %v2717 = vunpack.c.l.b16 %v2513
          %v2718 = vunpack.c.l.b16 %v2514
          %v2719 = vunpack.c.h.b16 %v2512
          %v2720 = vunpack.c.h.b16 %v2513
          %v2721 = vunpack.c.h.b16 %v2514
          %v2722 = vunpack.c.l.b16 %v2515
          %v2723 = vunpack.c.l.b16 %v2516
          %v2724 = vunpack.c.l.b16 %v2517
          %v2725 = vunpack.c.h.b16 %v2515
          %v2726 = vunpack.c.h.b16 %v2516
          %v2727 = vunpack.c.h.b16 %v2517
          %v2728 = vunpack.c.l.b16 %v2518
          %v2729 = vunpack.c.l.b16 %v2519
          %v2730 = vunpack.c.l.b16 %v2520
          %v2731 = vunpack.c.h.b16 %v2518
          %v2732 = vunpack.c.h.b16 %v2519
          %v2733 = vunpack.c.h.b16 %v2520
          %v2734 = vunpack.c.l.b16 %v2521
          %v2735 = vunpack.c.l.b16 %v2522
          %v2736 = vunpack.c.l.b16 %v2523
          %v2737 = vunpack.c.h.b16 %v2521
          %v2738 = vunpack.c.h.b16 %v2522
          %v2739 = vunpack.c.h.b16 %v2523
          %v2740 = vunpack.c.l.b16 %v2524
          %v2741 = vunpack.c.l.b16 %v2525
          %v2742 = vunpack.c.l.b16 %v2526
          %v2743 = vunpack.c.h.b16 %v2524
          %v2744 = vunpack.c.h.b16 %v2525
          %v2745 = vunpack.c.h.b16 %v2526
          %v2746 = vunpack.c.l.b16 %v2527
          %v2747 = vunpack.c.l.b16 %v2528
          %v2748 = vunpack.c.l.b16 %v2529
          %v2749 = vunpack.c.h.b16 %v2527
          %v2750 = vunpack.c.h.b16 %v2528
          %v2751 = vunpack.c.h.b16 %v2529
          %v2752 = vunpack.c.l.b16 %v2530
          %v2753 = vunpack.c.l.b16 %v2531
          %v2754 = vunpack.c.l.b16 %v2532
          %v2755 = vunpack.c.h.b16 %v2530
          %v2756 = vunpack.c.h.b16 %v2531
          %v2757 = vunpack.c.h.b16 %v2532
          %v2758 = vunpack.c.l.b16 %v2533
          %v2759 = vunpack.c.l.b16 %v2534
          %v2760 = vunpack.c.l.b16 %v2535
          %v2761 = vunpack.c.h.b16 %v2533
          %v2762 = vunpack.c.h.b16 %v2534
          %v2763 = vunpack.c.h.b16 %v2535
          %v2764 = vunpack.c.l.b16 %v2536
          %v2765 = vunpack.c.l.b16 %v2537
          %v2766 = vunpack.c.l.b16 %v2538
          %v2767 = vunpack.c.h.b16 %v2536
          %v2768 = vunpack.c.h.b16 %v2537
          %v2769 = vunpack.c.h.b16 %v2538
          %v2770 = vunpack.c.l.b16 %v2539
          %v2771 = vunpack.c.l.b16 %v2540
          %v2772 = vunpack.c.l.b16 %v2541
          %v2773 = vunpack.c.h.b16 %v2539
          %v2774 = vunpack.c.h.b16 %v2540
          %v2775 = vunpack.c.h.b16 %v2541
          %v2776 = vunpack.c.l.b16 %v2542
          %v2777 = vunpack.c.l.b16 %v2543
          %v2778 = vunpack.c.l.b16 %v2544
          %v2779 = vunpack.c.h.b16 %v2542
          %v2780 = vunpack.c.h.b16 %v2543
          %v2781 = vunpack.c.h.b16 %v2544
          %v2782 = vunpack.c.l.b16 %v2545
          %v2783 = vunpack.c.l.b16 %v2546
          %v2784 = vunpack.c.l.b16 %v2547
          %v2785 = vunpack.c.h.b16 %v2545
          %v2786 = vunpack.c.h.b16 %v2546
          %v2787 = vunpack.c.h.b16 %v2547
          %v2788 = vunpack.c.l.b16 %v2548
          %v2789 = vunpack.c.l.b16 %v2549
          %v2790 = vunpack.c.l.b16 %v2550
          %v2791 = vunpack.c.h.b16 %v2548
          %v2792 = vunpack.c.h.b16 %v2549
          %v2793 = vunpack.c.h.b16 %v2550
          %v2794 = vunpack.c.l.b16 %v2551
          %v2795 = vunpack.c.l.b16 %v2552
          %v2796 = vunpack.c.l.b16 %v2553
          %v2797 = vunpack.c.h.b16 %v2551
          %v2798 = vunpack.c.h.b16 %v2552
          %v2799 = vunpack.c.h.b16 %v2553
          %v2800 = vunpack.c.l.b16 %v2554
          %v2801 = vunpack.c.l.b16 %v2555
          %v2802 = vunpack.c.l.b16 %v2556
          %v2803 = vunpack.c.h.b16 %v2554
          %v2804 = vunpack.c.h.b16 %v2555
          %v2805 = vunpack.c.h.b16 %v2556
          %v2806 = vunpack.c.l.b16 %v2557
          %v2807 = vunpack.c.l.b16 %v2558
          %v2808 = vunpack.c.l.b16 %v2559
          %v2809 = vunpack.c.h.b16 %v2557
          %v2810 = vunpack.c.h.b16 %v2558
          %v2811 = vunpack.c.h.b16 %v2559
          %v2812 = vunpack.c.l.b16 %v2560
          %v2813 = vunpack.c.l.b16 %v2561
          %v2814 = vunpack.c.l.b16 %v2562
          %v2815 = vunpack.c.h.b16 %v2560
          %v2816 = vunpack.c.h.b16 %v2561
          %v2817 = vunpack.c.h.b16 %v2562
          %v2818 = vunpack.c.l.b16 %v2563
          %v2819 = vunpack.c.l.b16 %v2564
          %v2820 = vunpack.c.l.b16 %v2565
          %v2821 = vunpack.c.h.b16 %v2563
          %v2822 = vunpack.c.h.b16 %v2564
          %v2823 = vunpack.c.h.b16 %v2565
          %v2824 = vunpack.c.l.b16 %v2566
          %v2825 = vunpack.c.l.b16 %v2567
          %v2826 = vunpack.c.l.b16 %v2568
          %v2827 = vunpack.c.h.b16 %v2566
          %v2828 = vunpack.c.h.b16 %v2567
          %v2829 = vunpack.c.h.b16 %v2568
          %v2830 = vunpack.c.l.b16 %v2569
          %v2831 = vunpack.c.l.b16 %v2570
          %v2832 = vunpack.c.l.b16 %v2571
          %v2833 = vunpack.c.h.b16 %v2569
          %v2834 = vunpack.c.h.b16 %v2570
          %v2835 = vunpack.c.h.b16 %v2571
          %v2836 = vunpack.c.l.b16 %v2572
          %v2837 = vunpack.c.l.b16 %v2573
          %v2838 = vunpack.c.l.b16 %v2574
          %v2839 = vunpack.c.h.b16 %v2572
          %v2840 = vunpack.c.h.b16 %v2573
          %v2841 = vunpack.c.h.b16 %v2574
          %v2842 = vunpack.c.l.b16 %v2575
          %v2843 = vunpack.c.l.b16 %v2576
          %v2844 = vunpack.c.l.b16 %v2577
          %v2845 = vunpack.c.h.b16 %v2575
          %v2846 = vunpack.c.h.b16 %v2576
          %v2847 = vunpack.c.h.b16 %v2577
          %v2848 = vunpack.c.l.b16 %v2578
          %v2849 = vunpack.c.l.b16 %v2579
          %v2850 = vunpack.c.l.b16 %v2580
          %v2851 = vunpack.c.h.b16 %v2578
          %v2852 = vunpack.c.h.b16 %v2579
          %v2853 = vunpack.c.h.b16 %v2580
          %v2854 = vunpack.c.l.b16 %v2581
          %v2855 = vunpack.c.l.b16 %v2582
          %v2856 = vunpack.c.l.b16 %v2583
          %v2857 = vunpack.c.h.b16 %v2581
          %v2858 = vunpack.c.h.b16 %v2582
          %v2859 = vunpack.c.h.b16 %v2583
          %v2860 = vunpack.c.l.b16 %v2584
          %v2861 = vunpack.c.l.b16 %v2585
          %v2862 = vunpack.c.l.b16 %v2586
          %v2863 = vunpack.c.h.b16 %v2584
          %v2864 = vunpack.c.h.b16 %v2585
          %v2865 = vunpack.c.h.b16 %v2586
          %v2866 = vunpack.c.l.b16 %v2587
          %v2867 = vunpack.c.l.b16 %v2588
          %v2868 = vunpack.c.l.b16 %v2589
          %v2869 = vunpack.c.h.b16 %v2587
          %v2870 = vunpack.c.h.b16 %v2588
          %v2871 = vunpack.c.h.b16 %v2589
          %v2872 = vunpack.c.l.b16 %v2590
          %v2873 = vunpack.c.l.b16 %v2591
          %v2874 = vunpack.c.l.b16 %v2592
          %v2875 = vunpack.c.h.b16 %v2590
          %v2876 = vunpack.c.h.b16 %v2591
          %v2877 = vunpack.c.h.b16 %v2592
          %v2878 = vunpack.c.l.b16 %v2593
          %v2879 = vunpack.c.l.b16 %v2594
          %v2880 = vunpack.c.l.b16 %v2595
          %v2881 = vunpack.c.h.b16 %v2593
          %v2882 = vunpack.c.h.b16 %v2594
          %v2883 = vunpack.c.h.b16 %v2595
          %v2884 = vpack.c.b16 %v2693, %v2692
          %v2885 = vpack.c.b16 %v2694, %v2694
          %v2886 = vpack.c.b16 %v2696, %v2695
          %v2887 = vpack.c.b16 %v2697, %v2697
          %v2888 = vpack.c.b16 %v2699, %v2698
          %v2889 = vpack.c.b16 %v2700, %v2700
          %v2890 = vpack.c.b16 %v2702, %v2701
          %v2891 = vpack.c.b16 %v2703, %v2703
          %v2892 = vpack.c.b16 %v2705, %v2704
          %v2893 = vpack.c.b16 %v2706, %v2706
          %v2894 = vpack.c.b16 %v2708, %v2707
          %v2895 = vpack.c.b16 %v2709, %v2709
          %v2896 = vpack.c.b16 %v2711, %v2710
          %v2897 = vpack.c.b16 %v2712, %v2712
          %v2898 = vpack.c.b16 %v2714, %v2713
          %v2899 = vpack.c.b16 %v2715, %v2715
          %v2900 = vpack.c.b16 %v2717, %v2716
          %v2901 = vpack.c.b16 %v2718, %v2718
          %v2902 = vpack.c.b16 %v2720, %v2719
          %v2903 = vpack.c.b16 %v2721, %v2721
          %v2904 = vpack.c.b16 %v2723, %v2722
          %v2905 = vpack.c.b16 %v2724, %v2724
          %v2906 = vpack.c.b16 %v2726, %v2725
          %v2907 = vpack.c.b16 %v2727, %v2727
          %v2908 = vpack.c.b16 %v2729, %v2728
          %v2909 = vpack.c.b16 %v2730, %v2730
          %v2910 = vpack.c.b16 %v2732, %v2731
          %v2911 = vpack.c.b16 %v2733, %v2733
          %v2912 = vpack.c.b16 %v2735, %v2734
          %v2913 = vpack.c.b16 %v2736, %v2736
          %v2914 = vpack.c.b16 %v2738, %v2737
          %v2915 = vpack.c.b16 %v2739, %v2739
          %v2916 = vpack.c.b16 %v2741, %v2740
          %v2917 = vpack.c.b16 %v2742, %v2742
          %v2918 = vpack.c.b16 %v2744, %v2743
          %v2919 = vpack.c.b16 %v2745, %v2745
          %v2920 = vpack.c.b16 %v2747, %v2746
          %v2921 = vpack.c.b16 %v2748, %v2748
          %v2922 = vpack.c.b16 %v2750, %v2749
          %v2923 = vpack.c.b16 %v2751, %v2751
          %v2924 = vpack.c.b16 %v2753, %v2752
          %v2925 = vpack.c.b16 %v2754, %v2754
          %v2926 = vpack.c.b16 %v2756, %v2755
          %v2927 = vpack.c.b16 %v2757, %v2757
          %v2928 = vpack.c.b16 %v2759, %v2758
          %v2929 = vpack.c.b16 %v2760, %v2760
          %v2930 = vpack.c.b16 %v2762, %v2761
          %v2931 = vpack.c.b16 %v2763, %v2763
          %v2932 = vpack.c.b16 %v2765, %v2764
          %v2933 = vpack.c.b16 %v2766, %v2766
          %v2934 = vpack.c.b16 %v2768, %v2767
          %v2935 = vpack.c.b16 %v2769, %v2769
          %v2936 = vpack.c.b16 %v2771, %v2770
          %v2937 = vpack.c.b16 %v2772, %v2772
          %v2938 = vpack.c.b16 %v2774, %v2773
          %v2939 = vpack.c.b16 %v2775, %v2775
          %v2940 = vpack.c.b16 %v2777, %v2776
          %v2941 = vpack.c.b16 %v2778, %v2778
          %v2942 = vpack.c.b16 %v2780, %v2779
          %v2943 = vpack.c.b16 %v2781, %v2781
          %v2944 = vpack.c.b16 %v2783, %v2782
          %v2945 = vpack.c.b16 %v2784, %v2784
          %v2946 = vpack.c.b16 %v2786, %v2785
          %v2947 = vpack.c.b16 %v2787, %v2787
          %v2948 = vpack.c.b16 %v2789, %v2788
          %v2949 = vpack.c.b16 %v2790, %v2790
          %v2950 = vpack.c.b16 %v2792, %v2791
          %v2951 = vpack.c.b16 %v2793, %v2793
          %v2952 = vpack.c.b16 %v2795, %v2794
          %v2953 = vpack.c.b16 %v2796, %v2796
          %v2954 = vpack.c.b16 %v2798, %v2797
          %v2955 = vpack.c.b16 %v2799, %v2799
          %v2956 = vpack.c.b16 %v2801, %v2800
          %v2957 = vpack.c.b16 %v2802, %v2802
          %v2958 = vpack.c.b16 %v2804, %v2803
          %v2959 = vpack.c.b16 %v2805, %v2805
          %v2960 = vpack.c.b16 %v2807, %v2806
          %v2961 = vpack.c.b16 %v2808, %v2808
          %v2962 = vpack.c.b16 %v2810, %v2809
          %v2963 = vpack.c.b16 %v2811, %v2811
          %v2964 = vpack.c.b16 %v2813, %v2812
          %v2965 = vpack.c.b16 %v2814, %v2814
          %v2966 = vpack.c.b16 %v2816, %v2815
          %v2967 = vpack.c.b16 %v2817, %v2817
          %v2968 = vpack.c.b16 %v2819, %v2818
          %v2969 = vpack.c.b16 %v2820, %v2820
          %v2970 = vpack.c.b16 %v2822, %v2821
          %v2971 = vpack.c.b16 %v2823, %v2823
          %v2972 = vpack.c.b16 %v2825, %v2824
          %v2973 = vpack.c.b16 %v2826, %v2826
          %v2974 = vpack.c.b16 %v2828, %v2827
          %v2975 = vpack.c.b16 %v2829, %v2829
          %v2976 = vpack.c.b16 %v2831, %v2830
          %v2977 = vpack.c.b16 %v2832, %v2832
          %v2978 = vpack.c.b16 %v2834, %v2833
          %v2979 = vpack.c.b16 %v2835, %v2835
          %v2980 = vpack.c.b16 %v2837, %v2836
          %v2981 = vpack.c.b16 %v2838, %v2838
          %v2982 = vpack.c.b16 %v2840, %v2839
          %v2983 = vpack.c.b16 %v2841, %v2841
          %v2984 = vpack.c.b16 %v2843, %v2842
          %v2985 = vpack.c.b16 %v2844, %v2844
          %v2986 = vpack.c.b16 %v2846, %v2845
          %v2987 = vpack.c.b16 %v2847, %v2847
          %v2988 = vpack.c.b16 %v2849, %v2848
          %v2989 = vpack.c.b16 %v2850, %v2850
          %v2990 = vpack.c.b16 %v2852, %v2851
          %v2991 = vpack.c.b16 %v2853, %v2853
          %v2992 = vpack.c.b16 %v2855, %v2854
          %v2993 = vpack.c.b16 %v2856, %v2856
          %v2994 = vpack.c.b16 %v2858, %v2857
          %v2995 = vpack.c.b16 %v2859, %v2859
          %v2996 = vpack.c.b16 %v2861, %v2860
          %v2997 = vpack.c.b16 %v2862, %v2862
          %v2998 = vpack.c.b16 %v2864, %v2863
          %v2999 = vpack.c.b16 %v2865, %v2865
          %v3000 = vpack.c.b16 %v2867, %v2866
          %v3001 = vpack.c.b16 %v2868, %v2868
          %v3002 = vpack.c.b16 %v2870, %v2869
          %v3003 = vpack.c.b16 %v2871, %v2871
          %v3004 = vpack.c.b16 %v2873, %v2872
          %v3005 = vpack.c.b16 %v2874, %v2874
          %v3006 = vpack.c.b16 %v2876, %v2875
          %v3007 = vpack.c.b16 %v2877, %v2877
          %v3008 = vpack.c.b16 %v2879, %v2878
          %v3009 = vpack.c.b16 %v2880, %v2880
          %v3010 = vpack.c.b16 %v2882, %v2881
          %v3011 = vpack.c.b16 %v2883, %v2883
          %3140 = vst [vmem:[%s254] sm:$0xff] %v2884
          %3141 = vst [vmem:[%s254 + $0x8] sm:$0xf] %v2885
          %3142 = vst [vmem:[%s254 + $0xc] sm:$0xff] %v2886
          %3143 = vst [vmem:[%s254 + $0x14] sm:$0xf] %v2887
          %3144 = vst [vmem:[%s254 + $0x18] sm:$0xff] %v2888
          %3145 = vst [vmem:[%s254 + $0x20] sm:$0xf] %v2889
          %3146 = vst [vmem:[%s254 + $0x24] sm:$0xff] %v2890
          %3147 = vst [vmem:[%s254 + $0x2c] sm:$0xf] %v2891
          %3148 = vst [vmem:[%s254 + $0x30] sm:$0xff] %v2892
          %3149 = vst [vmem:[%s254 + $0x38] sm:$0xf] %v2893
          %3150 = vst [vmem:[%s254 + $0x3c] sm:$0xff] %v2894
          %3151 = vst [vmem:[%s254 + $0x44] sm:$0xf] %v2895
          %3152 = vst [vmem:[%s254 + $0x48] sm:$0xff] %v2896
          %3153 = vst [vmem:[%s254 + $0x50] sm:$0xf] %v2897
          %3154 = vst [vmem:[%s254 + $0x54] sm:$0xff] %v2898
          %3155 = vst [vmem:[%s254 + $0x5c] sm:$0xf] %v2899
          %3156 = vst [vmem:[%s254 + $0x60] sm:$0xff] %v2900
          %3157 = vst [vmem:[%s254 + $0x68] sm:$0xf] %v2901
          %3158 = vst [vmem:[%s254 + $0x6c] sm:$0xff] %v2902
          %3159 = vst [vmem:[%s254 + $0x74] sm:$0xf] %v2903
          %3160 = vst [vmem:[%s254 + $0x78] sm:$0xff] %v2904
          %3161 = vst [vmem:[%s254 + $0x80] sm:$0xf] %v2905
          %3162 = vst [vmem:[%s254 + $0x84] sm:$0xff] %v2906
          %3163 = vst [vmem:[%s254 + $0x8c] sm:$0xf] %v2907
          %3164 = vst [vmem:[%s254 + $0x90] sm:$0xff] %v2908
          %3165 = vst [vmem:[%s254 + $0x98] sm:$0xf] %v2909
          %3166 = vst [vmem:[%s254 + $0x9c] sm:$0xff] %v2910
          %3167 = vst [vmem:[%s254 + $0xa4] sm:$0xf] %v2911
          %3168 = vst [vmem:[%s254 + $0xa8] sm:$0xff] %v2912
          %3169 = vst [vmem:[%s254 + $0xb0] sm:$0xf] %v2913
          %3170 = vst [vmem:[%s254 + $0xb4] sm:$0xff] %v2914
          %3171 = vst [vmem:[%s254 + $0xbc] sm:$0xf] %v2915
          %3172 = vst [vmem:[%s254 + $0xc0] sm:$0xff] %v2916
          %3173 = vst [vmem:[%s254 + $0xc8] sm:$0xf] %v2917
          %3174 = vst [vmem:[%s254 + $0xcc] sm:$0xff] %v2918
          %3175 = vst [vmem:[%s254 + $0xd4] sm:$0xf] %v2919
          %3176 = vst [vmem:[%s254 + $0xd8] sm:$0xff] %v2920
          %3177 = vst [vmem:[%s254 + $0xe0] sm:$0xf] %v2921
          %3178 = vst [vmem:[%s254 + $0xe4] sm:$0xff] %v2922
          %3179 = vst [vmem:[%s254 + $0xec] sm:$0xf] %v2923
          %3180 = vst [vmem:[%s254 + $0xf0] sm:$0xff] %v2924
          %3181 = vst [vmem:[%s254 + $0xf8] sm:$0xf] %v2925
          %3182 = vst [vmem:[%s254 + $0xfc] sm:$0xff] %v2926
          %3183 = vst [vmem:[%s254 + $0x104] sm:$0xf] %v2927
          %3184 = vst [vmem:[%s254 + $0x108] sm:$0xff] %v2928
          %3185 = vst [vmem:[%s254 + $0x110] sm:$0xf] %v2929
          %3186 = vst [vmem:[%s254 + $0x114] sm:$0xff] %v2930
          %3187 = vst [vmem:[%s254 + $0x11c] sm:$0xf] %v2931
          %3188 = vst [vmem:[%s254 + $0x120] sm:$0xff] %v2932
          %3189 = vst [vmem:[%s254 + $0x128] sm:$0xf] %v2933
          %3190 = vst [vmem:[%s254 + $0x12c] sm:$0xff] %v2934
          %3191 = vst [vmem:[%s254 + $0x134] sm:$0xf] %v2935
          %3192 = vst [vmem:[%s254 + $0x138] sm:$0xff] %v2936
          %3193 = vst [vmem:[%s254 + $0x140] sm:$0xf] %v2937
          %3194 = vst [vmem:[%s254 + $0x144] sm:$0xff] %v2938
          %3195 = vst [vmem:[%s254 + $0x14c] sm:$0xf] %v2939
          %3196 = vst [vmem:[%s254 + $0x150] sm:$0xff] %v2940
          %3197 = vst [vmem:[%s254 + $0x158] sm:$0xf] %v2941
          %3198 = vst [vmem:[%s254 + $0x15c] sm:$0xff] %v2942
          %3199 = vst [vmem:[%s254 + $0x164] sm:$0xf] %v2943
          %3200 = vst [vmem:[%s254 + $0x168] sm:$0xff] %v2944
          %3201 = vst [vmem:[%s254 + $0x170] sm:$0xf] %v2945
          %3202 = vst [vmem:[%s254 + $0x174] sm:$0xff] %v2946
          %3203 = vst [vmem:[%s254 + $0x17c] sm:$0xf] %v2947
          %3204 = vst [vmem:[%s254 + $0x180] sm:$0xff] %v2948
          %3205 = vst [vmem:[%s254 + $0x188] sm:$0xf] %v2949
          %3206 = vst [vmem:[%s254 + $0x18c] sm:$0xff] %v2950
          %3207 = vst [vmem:[%s254 + $0x194] sm:$0xf] %v2951
          %3208 = vst [vmem:[%s254 + $0x198] sm:$0xff] %v2952
          %3209 = vst [vmem:[%s254 + $0x1a0] sm:$0xf] %v2953
          %3210 = vst [vmem:[%s254 + $0x1a4] sm:$0xff] %v2954
          %3211 = vst [vmem:[%s254 + $0x1ac] sm:$0xf] %v2955
          %3212 = vst [vmem:[%s254 + $0x1b0] sm:$0xff] %v2956
          %3213 = vst [vmem:[%s254 + $0x1b8] sm:$0xf] %v2957
          %3214 = vst [vmem:[%s254 + $0x1bc] sm:$0xff] %v2958
          %3215 = vst [vmem:[%s254 + $0x1c4] sm:$0xf] %v2959
          %3216 = vst [vmem:[%s254 + $0x1c8] sm:$0xff] %v2960
          %3217 = vst [vmem:[%s254 + $0x1d0] sm:$0xf] %v2961
          %3218 = vst [vmem:[%s254 + $0x1d4] sm:$0xff] %v2962
          %3219 = vst [vmem:[%s254 + $0x1dc] sm:$0xf] %v2963
          %3220 = vst [vmem:[%s254 + $0x1e0] sm:$0xff] %v2964
          %3221 = vst [vmem:[%s254 + $0x1e8] sm:$0xf] %v2965
          %3222 = vst [vmem:[%s254 + $0x1ec] sm:$0xff] %v2966
          %3223 = vst [vmem:[%s254 + $0x1f4] sm:$0xf] %v2967
          %3224 = vst [vmem:[%s254 + $0x1f8] sm:$0xff] %v2968
          %3225 = vst [vmem:[%s254 + $0x200] sm:$0xf] %v2969
          %3226 = vst [vmem:[%s254 + $0x204] sm:$0xff] %v2970
          %3227 = vst [vmem:[%s254 + $0x20c] sm:$0xf] %v2971
          %3228 = vst [vmem:[%s254 + $0x210] sm:$0xff] %v2972
          %3229 = vst [vmem:[%s254 + $0x218] sm:$0xf] %v2973
          %3230 = vst [vmem:[%s254 + $0x21c] sm:$0xff] %v2974
          %3231 = vst [vmem:[%s254 + $0x224] sm:$0xf] %v2975
          %3232 = vst [vmem:[%s254 + $0x228] sm:$0xff] %v2976
          %3233 = vst [vmem:[%s254 + $0x230] sm:$0xf] %v2977
          %3234 = vst [vmem:[%s254 + $0x234] sm:$0xff] %v2978
          %3235 = vst [vmem:[%s254 + $0x23c] sm:$0xf] %v2979
          %3236 = vst [vmem:[%s254 + $0x240] sm:$0xff] %v2980
          %3237 = vst [vmem:[%s254 + $0x248] sm:$0xf] %v2981
          %3238 = vst [vmem:[%s254 + $0x24c] sm:$0xff] %v2982
          %3239 = vst [vmem:[%s254 + $0x254] sm:$0xf] %v2983
          %3240 = vst [vmem:[%s254 + $0x258] sm:$0xff] %v2984
          %3241 = vst [vmem:[%s254 + $0x260] sm:$0xf] %v2985
          %3242 = vst [vmem:[%s254 + $0x264] sm:$0xff] %v2986
          %3243 = vst [vmem:[%s254 + $0x26c] sm:$0xf] %v2987
          %3244 = vst [vmem:[%s254 + $0x270] sm:$0xff] %v2988
          %3245 = vst [vmem:[%s254 + $0x278] sm:$0xf] %v2989
          %3246 = vst [vmem:[%s254 + $0x27c] sm:$0xff] %v2990
          %3247 = vst [vmem:[%s254 + $0x284] sm:$0xf] %v2991
          %3248 = vst [vmem:[%s254 + $0x288] sm:$0xff] %v2992
          %3249 = vst [vmem:[%s254 + $0x290] sm:$0xf] %v2993
          %3250 = vst [vmem:[%s254 + $0x294] sm:$0xff] %v2994
          %3251 = vst [vmem:[%s254 + $0x29c] sm:$0xf] %v2995
          %3252 = vst [vmem:[%s254 + $0x2a0] sm:$0xff] %v2996
          %3253 = vst [vmem:[%s254 + $0x2a8] sm:$0xf] %v2997
          %3254 = vst [vmem:[%s254 + $0x2ac] sm:$0xff] %v2998
          %3255 = vst [vmem:[%s254 + $0x2b4] sm:$0xf] %v2999
          %3256 = vst [vmem:[%s254 + $0x2b8] sm:$0xff] %v3000
          %3257 = vst [vmem:[%s254 + $0x2c0] sm:$0xf] %v3001
          %3258 = vst [vmem:[%s254 + $0x2c4] sm:$0xff] %v3002
          %3259 = vst [vmem:[%s254 + $0x2cc] sm:$0xf] %v3003
          %3260 = vst [vmem:[%s254 + $0x2d0] sm:$0xff] %v3004
          %3261 = vst [vmem:[%s254 + $0x2d8] sm:$0xf] %v3005
          %3262 = vst [vmem:[%s254 + $0x2dc] sm:$0xff] %v3006
          %3263 = vst [vmem:[%s254 + $0x2e4] sm:$0xf] %v3007
          %3264 = vst [vmem:[%s254 + $0x2e8] sm:$0xff] %v3008
          %3265 = vst [vmem:[%s254 + $0x2f0] sm:$0xf] %v3009
          %3266 = vst [vmem:[%s254 + $0x2f4] sm:$0xff] %v3010
          %3267 = vst [vmem:[%s254 + $0x2fc] sm:$0xf] %v3011
        $region48: #{tpu_custom_call.1} parent=31 // pred_fallthru
          _
        %s3268 = sand.u32 %s132, 1
        %s3269 = scalar_lea.sflag [#allocation5], %s3268
        %s3270 = sand.u32 %s132, 1
        %s3271 = smul.addr %s3270, 768
        %s3272 = scalar_lea.vmem [#allocation8], %s3271
        // Predicated region
        $region49: #{tpu_custom_call.1} parent=31 // pred_check
          %p3273 = pneg %p142
        $region50: #{tpu_custom_call.1} parent=31 // pred_check_branch
          %3275 = sbr.rel (%p3273) target = $region52
        $region51: #{tpu_custom_call.1} parent=31 // pred_region
          %s3276 = smul.u32 64, %s26
          %s3277 = smul.u32 3, %s27
          %s3279 = ssub.s32 12288, 12288
          %3280 = vsyncadd %s3269, %s3279
          %s3281 = smul.addr %s3276, 3
          %s3282 = sadd.s32 %s3277, %s3281
          %s3283 = smul.addr %s3282, 64
          %s3284 = scalar_lea.hbm %s3, %s3283
          %s3285 = sshll.u32 %s3272, 4
          %s3286 = int_to_ptr.vmem [resolvable:$true] %s3285
          %3291 = dma.vmem_to_hbm [thread:$0]  %s3286, 12288, %s3284, %s3269, 192, 192, 12
        $region52: #{tpu_custom_call.1} parent=31 // pred_fallthru
          _
      $region32: #{tpu_custom_call.1} parent=5 // pred_fallthru
        _
      %p3292 = scmp.le.s32.totalorder 2, %s16
      // Predicated region
      $region53: #{tpu_custom_call.1} parent=5 // pred_check
        %p3293 = pneg %p3292
      $region54: #{tpu_custom_call.1} parent=5 // pred_check_branch
        %3295 = sbr.rel (%p3293) target = $region56
      $region55: #{tpu_custom_call.1} parent=5 // pred_region
        %s3296 = ssub.s32 %s16, 2
        // Predicated region
        $region57: #{tpu_custom_call.1} parent=55 // pred_check
          %p3297 = pneg %p148
        $region58: #{tpu_custom_call.1} parent=55 // pred_check_branch
          %3299 = sbr.rel (%p3297) target = $region60
        $region59: #{tpu_custom_call.1} parent=55 // pred_region
          %s3300 = sand.u32 %s133, 1
          %s3301 = scalar_lea.sflag [#allocation5], %s3300
          %s3302 = sand.u32 %s133, 1
          %s3303 = smul.addr %s3302, 768
          %s3304 = scalar_lea.vmem [#allocation8], %s3303
          %3305 = dma.done %s3301, 12288
        $region60: #{tpu_custom_call.1} parent=55 // pred_fallthru
          _
      $region56: #{tpu_custom_call.1} parent=5 // pred_fallthru
        _
    $region6: #{tpu_custom_call.1} parent=1 // loop_footer
      %s20 = sadd.s32 1, %s16
    $region7: #{tpu_custom_call.1} parent=1 // loop_footer_branch
      %15 = sbr.rel target = $region3
    $region8: #{tpu_custom_call.1} parent=1 // loop_exit
      _
    %3306 = vsyncpa [#allocation4], 1
    %s3307 = scalar_lea.sflag [#allocation4], 1
    %3308 = vsyncpa %s3307, 1
    %3309 = vsyncpa [#allocation7], 1
    %3310 = vsyncpa [#allocation5], 1
    %s3311 = scalar_lea.sflag [#allocation5], 1
    %3312 = vsyncpa %s3311, 1

</llo_original>
